<compile_context>
chip_gen: v7x
topology: tpu7x:2x2x1
jax: 0.10.0
libtpu: 0.0.40
codegen_flags: <defaults>
</compile_context>

<pallas_src>
import jax
import jax.numpy as jnp
from jax.experimental import pallas as pl
from jax.experimental.pallas import tpu as pltpu

_LANES = 128  # lane-dense output width (vreg lane count)


def _inference_kernel(
    x_ref, lab_ref,
    w_in_ref, b_in_ref,    # fused [W1 | S1x] (bf16), [b1 | bs1 + b2@S1p] (f32)
    w_mid_ref, b2_ref,     # fused [W2 | W2@S1p] (bf16), b2 (f32)
    s2_ref,                # S2 as a [1, H] f32 row (VPU path, no MXU)
    out_ref,               # [TB, 128] f32: lanes 0..C-1 = probs, lane C = row loss
):
    TB = x_ref.shape[0]
    H = s2_ref.shape[1]
    C = b2_ref.shape[1]
    LANES = out_ref.shape[1]

    # x arrives f32; cast to bf16 in-kernel (removes a per-call wrapper op).
    x = x_ref[...].astype(jnp.bfloat16)

    # ---- fused first MXU pass: [x@W1 | x@S1x] + [b1 | bs1 + b2@S1p] ----
    xw = jnp.dot(x, w_in_ref[...],
                 preferred_element_type=jnp.float32) + b_in_ref[...]   # [TB, 2H] f32

    h = jnp.maximum(xw[:, :H], 0.0)                                    # [TB, H]

    # ---- fused second MXU pass: h @ [W2 | W2@S1p] -> [TB, C+H] ----
    out2 = jnp.dot(h.astype(jnp.bfloat16), w_mid_ref[...],
                   preferred_element_type=jnp.float32)                  # [TB, C+H] f32
    logits = out2[:, :C] + b2_ref[...]                                  # [TB, C]
    hs = jnp.maximum(xw[:, H:] + out2[:, C:], 0.0)                      # [TB, H]

    # ---- score: VPU multiply + lane reduction (replaces the N=1 matmul) ----
    # bs2 is added once in the wrapper (mean(score+bs2) == mean(score)+bs2).
    score = jnp.sum(hs * s2_ref[...], axis=-1, keepdims=True)           # [TB, 1]

    # ---- cross entropy per row: logsumexp - picked-logit (int labels) ----
    m = jnp.max(logits, axis=-1, keepdims=True)                         # [TB, 1]
    z = logits - m
    ez = jnp.exp(z)
    sez = jnp.sum(ez, axis=-1, keepdims=True)                           # [TB, 1]
    lse = m + jnp.log(sez)
    cols = jax.lax.broadcasted_iota(jnp.int32, (TB, C), 1)
    picked = jnp.sum(jnp.where(cols == lab_ref[...], logits, 0.0),
                     axis=-1, keepdims=True)                            # [TB, 1]
    ce = lse - picked                                                   # [TB, 1]

    # ---- exact softmax (per correctness feedback) ----
    probs = ez / sez                                                    # [TB, C]

    # ---- pack probs + per-row loss into one lane-dense 128-wide slab ----
    rowloss = score + ce                                                # [TB, 1]
    probs_pad = jnp.concatenate(
        [probs, jnp.zeros((TB, LANES - C), jnp.float32)], axis=-1)      # [TB, 128]
    lane = jax.lax.broadcasted_iota(jnp.int32, (TB, LANES), 1)
    out_ref[...] = jnp.where(lane == C, rowloss, probs_pad)


def _tensorcores_per_chip():
    """Best-effort TC count: v7x has 2 TensorCores/chip, v5e/v6e have 1."""
    try:
        kind = jax.devices()[0].device_kind.lower()
        if "v7" in kind:
            return 2
    except Exception:
        pass
    return 1


def pack_params(params):
    """One-time weight packing (call OUTSIDE the per-step forward path)."""
    (w1, b1, w2, b2, s1x, s1p, bs1, s2, bs2) = params
    # Fused first layer over shared LHS x.
    w_in = jnp.concatenate([w1, s1x], axis=1).astype(jnp.bfloat16)       # [D, 2H]
    # Fold b2@S1p into the score-branch bias of the first layer.
    b_in = jnp.concatenate([b1, bs1 + b2 @ s1p], axis=1)                 # [1, 2H] f32
    # Fold S1p through W2: one wider second matmul.
    w_mid = jnp.concatenate([w2, w2 @ s1p], axis=1).astype(jnp.bfloat16)  # [H, C+H]
    s2_row = s2.T                                                        # [1, H] f32
    return (w_in, b_in, w_mid, b2, s2_row, bs2.reshape(()))


def inference_forward(x, labels, packed, *, num_tiles=None):
    """x: [B, D] f32, labels: [B] int32, packed: tuple from pack_params."""
    B, D = x.shape
    (w_in, b_in, w_mid, b2, s2_row, bs2) = packed
    H = s2_row.shape[1]
    C = b2.shape[1]

    if num_tiles is None:
        num_tiles = _tensorcores_per_chip()     # 2 on v7x, 1 on v5e/v6e
    if B % num_tiles != 0 or (B // num_tiles) % 8 != 0:
        num_tiles = 1
    tile_b = B // num_tiles

    lab2d = labels.reshape(B, 1).astype(jnp.int32)

    def fixed(shape):
        # Constant block index -> weight stays VMEM-resident across grid steps.
        return pl.BlockSpec(shape, lambda i: (0, 0))

    packed_out = pl.pallas_call(
        _inference_kernel,
        grid=(num_tiles,),
        in_specs=[
            pl.BlockSpec((tile_b, D), lambda i: (i, 0)),   # x tile (f32, cast in-kernel)
            pl.BlockSpec((tile_b, 1), lambda i: (i, 0)),   # int32 labels tile
            fixed((D, 2 * H)),     # fused [W1 | S1x]       (bf16)
            fixed((1, 2 * H)),     # fused [b1 | bs1+b2S1p] (f32)
            fixed((H, C + H)),     # fused [W2 | W2@S1p]    (bf16)
            fixed((1, C)),         # b2                     (f32)
            fixed((1, H)),         # S2 row                 (f32)
        ],
        out_specs=pl.BlockSpec((tile_b, _LANES), lambda i: (i, 0)),
        out_shape=jax.ShapeDtypeStruct((B, _LANES), jnp.float32),
        compiler_params=pltpu.CompilerParams(
            dimension_semantics=("parallel",)),
    )(x, lab2d, w_in, b_in, w_mid, b2, s2_row)

    probs = packed_out[:, :C]
    rowloss = packed_out[:, C]
    # Reduce per-row contributions; divide by the TRUE batch size; add bs2 once.
    total_loss = jnp.sum(rowloss) / B + bs2
    return probs, total_loss


def reference_forward(x, labels, params):
    """Pure-JAX f32 reference of Infernece_module.forward (for verification)."""
    (w1, b1, w2, b2, s1x, s1p, bs1, s2, bs2) = params
    h = jnp.maximum(x @ w1 + b1, 0.0)
    logits = h @ w2 + b2
    hs = jnp.maximum(x @ s1x + logits @ s1p + bs1, 0.0)
    score = hs @ s2 + bs2
    score_loss = jnp.mean(score)
    lse = jax.scipy.special.logsumexp(logits, axis=-1)
    picked = jnp.take_along_axis(logits, labels[:, None], axis=-1)[:, 0]
    ce_loss = jnp.mean(lse - picked)
    probs = jax.nn.softmax(logits, axis=-1)
    return probs, score_loss + ce_loss


def make_params(key, D, H, C):
    ks = jax.random.split(key, 6)
    w1 = 0.1 * jax.random.normal(ks[0], (D, H), jnp.float32)
    b1 = jnp.zeros((1, H), jnp.float32)
    w2 = 0.1 * jax.random.normal(ks[1], (H, C), jnp.float32)
    b2 = jnp.zeros((1, C), jnp.float32)
    # score_net first layer over concat(x, y_pred): split into [D,H] and [C,H]
    s1x = 0.1 * jax.random.normal(ks[2], (D, H), jnp.float32)
    s1p = 0.1 * jax.random.normal(ks[3], (C, H), jnp.float32)
    bs1 = jnp.zeros((1, H), jnp.float32)
    s2 = 0.1 * jax.random.normal(ks[4], (H, 1), jnp.float32)
    bs2 = jnp.zeros((1, 1), jnp.float32)
    return (w1, b1, w2, b2, s1x, s1p, bs1, s2, bs2)


if __name__ == "__main__":
    # Batch >= 256 so launch/grid fixed cost is amortized over real work; the
    # grid is 1 step on v5e/v6e and 2 parallel steps (one per TC) on v7x.
    B, D, H, C = 512, 32, 32, 16

    key = jax.random.PRNGKey(0)
    kx, ky = jax.random.split(key)
    x = jax.random.normal(kx, (B, D), jnp.float32)
    y = jax.random.randint(ky, (B,), 0, C, dtype=jnp.int32)   # integer class labels

    params = make_params(jax.random.PRNGKey(42), D, H, C)
    packed = pack_params(params)        # one-time packing, OUT of the forward path

    probs, total_loss = inference_forward(x, y, packed)
    jax.block_until_ready((probs, total_loss))

    # Verify against the pure-JAX f32 reference (tolerances account for the
    # bf16 matmul operands).
    ref_probs, ref_loss = reference_forward(x, y, params)

    assert probs.shape == (B, C)
    assert jnp.isfinite(total_loss)
    assert jnp.allclose(jnp.sum(probs, axis=-1), 1.0, atol=1e-3)
    assert jnp.allclose(probs, ref_probs, atol=1e-2)
    assert jnp.allclose(total_loss, ref_loss, rtol=2e-2, atol=2e-2)
    print("KERNEL_OK")
</pallas_src>

<mosaic_0001>
module attributes {stable_mosaic.version = 11 : i64} {
  func.func @_inference_kernel(%arg0: i32, %arg1: memref<512x32xf32, #tpu.memory_space<vmem>>, %arg2: memref<512x1xi32, #tpu.memory_space<vmem>>, %arg3: memref<32x64xbf16, #tpu.memory_space<vmem>>, %arg4: memref<1x64xf32, #tpu.memory_space<vmem>>, %arg5: memref<32x48xbf16, #tpu.memory_space<vmem>>, %arg6: memref<1x16xf32, #tpu.memory_space<vmem>>, %arg7: memref<1x32xf32, #tpu.memory_space<vmem>>, %arg8: memref<512x128xf32, #tpu.memory_space<vmem>>) attributes {dimension_semantics = [#tpu.dimension_semantics<parallel>], iteration_bounds = array<i64: 1>, scalar_prefetch = 0 : i64, scratch_operands = 0 : i64, tpu.core_type = #tpu.core_type<tc>, window_params = [{transform_indices = @transform_0, window_bounds = array<i64: 512, 32>}, {transform_indices = @transform_1, window_bounds = array<i64: 512, 1>}, {pipeline_mode = #tpu.pipeline_mode<synchronous>, transform_indices = @transform_2, window_bounds = array<i64: 32, 64>}, {pipeline_mode = #tpu.pipeline_mode<synchronous>, transform_indices = @transform_3, window_bounds = array<i64: 1, 64>}, {pipeline_mode = #tpu.pipeline_mode<synchronous>, transform_indices = @transform_4, window_bounds = array<i64: 32, 48>}, {pipeline_mode = #tpu.pipeline_mode<synchronous>, transform_indices = @transform_5, window_bounds = array<i64: 1, 16>}, {pipeline_mode = #tpu.pipeline_mode<synchronous>, transform_indices = @transform_6, window_bounds = array<i64: 1, 32>}, {transform_indices = @transform_7, window_bounds = array<i64: 512, 128>}]} {
    %c0 = arith.constant 0 : index
    %c0_0 = arith.constant 0 : index
    %0 = vector.load %arg1[%c0, %c0_0] : memref<512x32xf32, #tpu.memory_space<vmem>>, vector<512x32xf32>
    %1 = arith.truncf %0 : vector<512x32xf32> to vector<512x32xbf16>
    %c0_1 = arith.constant 0 : index
    %c0_2 = arith.constant 0 : index
    %2 = vector.load %arg3[%c0_1, %c0_2] : memref<32x64xbf16, #tpu.memory_space<vmem>>, vector<32x64xbf16>
    %cst = arith.constant dense<0.000000e+00> : vector<512x64xf32>
    %3 = tpu.matmul %1, %2, %cst {dimension_numbers = #tpu.dot_dimension_numbers<[1], [0], [0], [1], [0, 0, 1, 1], [], []>} : vector<512x32xbf16>, vector<32x64xbf16>, vector<512x64xf32> -> vector<512x64xf32>
    %c0_3 = arith.constant 0 : index
    %c0_4 = arith.constant 0 : index
    %4 = vector.load %arg4[%c0_3, %c0_4] : memref<1x64xf32, #tpu.memory_space<vmem>>, vector<1x64xf32>
    %5 = vector.broadcast %4 : vector<1x64xf32> to vector<512x64xf32>
    %6 = arith.addf %3, %5 : vector<512x64xf32>
    %7 = vector.extract_strided_slice %6 {offsets = [0, 0], sizes = [512, 32], strides = [1, 1]} : vector<512x64xf32> to vector<512x32xf32>
    %cst_5 = arith.constant 0.000000e+00 : f32
    %8 = vector.broadcast %cst_5 : f32 to vector<512x32xf32>
    %9 = arith.maximumf %7, %8 : vector<512x32xf32>
    %10 = arith.truncf %9 : vector<512x32xf32> to vector<512x32xbf16>
    %c0_6 = arith.constant 0 : index
    %c0_7 = arith.constant 0 : index
    %11 = vector.load %arg5[%c0_6, %c0_7] : memref<32x48xbf16, #tpu.memory_space<vmem>>, vector<32x48xbf16>
    %cst_8 = arith.constant dense<0.000000e+00> : vector<512x48xf32>
    %12 = tpu.matmul %10, %11, %cst_8 {dimension_numbers = #tpu.dot_dimension_numbers<[1], [0], [0], [1], [0, 0, 1, 1], [], []>} : vector<512x32xbf16>, vector<32x48xbf16>, vector<512x48xf32> -> vector<512x48xf32>
    %13 = vector.extract_strided_slice %12 {offsets = [0, 0], sizes = [512, 16], strides = [1, 1]} : vector<512x48xf32> to vector<512x16xf32>
    %c0_9 = arith.constant 0 : index
    %c0_10 = arith.constant 0 : index
    %14 = vector.load %arg6[%c0_9, %c0_10] : memref<1x16xf32, #tpu.memory_space<vmem>>, vector<1x16xf32>
    %15 = vector.broadcast %14 : vector<1x16xf32> to vector<512x16xf32>
    %16 = arith.addf %13, %15 : vector<512x16xf32>
    %17 = vector.extract_strided_slice %6 {offsets = [0, 32], sizes = [512, 32], strides = [1, 1]} : vector<512x64xf32> to vector<512x32xf32>
    %18 = vector.extract_strided_slice %12 {offsets = [0, 16], sizes = [512, 32], strides = [1, 1]} : vector<512x48xf32> to vector<512x32xf32>
    %19 = arith.addf %17, %18 : vector<512x32xf32>
    %cst_11 = arith.constant 0.000000e+00 : f32
    %20 = vector.broadcast %cst_11 : f32 to vector<512x32xf32>
    %21 = arith.maximumf %19, %20 : vector<512x32xf32>
    %c0_12 = arith.constant 0 : index
    %c0_13 = arith.constant 0 : index
    %22 = vector.load %arg7[%c0_12, %c0_13] : memref<1x32xf32, #tpu.memory_space<vmem>>, vector<1x32xf32>
    %23 = vector.broadcast %22 : vector<1x32xf32> to vector<512x32xf32>
    %24 = arith.mulf %21, %23 : vector<512x32xf32>
    %cst_14 = arith.constant dense<0.000000e+00> : vector<512xf32>
    %25 = vector.multi_reduction <add>, %24, %cst_14 [1] : vector<512x32xf32> to vector<512xf32>
    %26 = vector.shape_cast %25 : vector<512xf32> to vector<512x1xf32>
    %cst_15 = arith.constant dense<0xFF800000> : vector<512xf32>
    %27 = vector.multi_reduction <maximumf>, %16, %cst_15 [1] : vector<512x16xf32> to vector<512xf32>
    %28 = vector.shape_cast %27 : vector<512xf32> to vector<512x1xf32>
    %29 = vector.broadcast %28 : vector<512x1xf32> to vector<512x16xf32>
    %30 = arith.subf %16, %29 : vector<512x16xf32>
    %31 = math.exp %30 : vector<512x16xf32>
    %cst_16 = arith.constant dense<0.000000e+00> : vector<512xf32>
    %32 = vector.multi_reduction <add>, %31, %cst_16 [1] : vector<512x16xf32> to vector<512xf32>
    %33 = vector.shape_cast %32 : vector<512xf32> to vector<512x1xf32>
    %34 = math.log %33 : vector<512x1xf32>
    %35 = arith.addf %28, %34 : vector<512x1xf32>
    %36 = tpu.iota {dimensions = array<i32: 1>} : vector<512x16xi32>
    %c0_17 = arith.constant 0 : index
    %c0_18 = arith.constant 0 : index
    %37 = vector.load %arg2[%c0_17, %c0_18] : memref<512x1xi32, #tpu.memory_space<vmem>>, vector<512x1xi32>
    %38 = vector.broadcast %37 : vector<512x1xi32> to vector<512x16xi32>
    %39 = arith.cmpi eq, %36, %38 : vector<512x16xi32>
    %cst_19 = arith.constant 0.000000e+00 : f32
    %40 = vector.broadcast %cst_19 : f32 to vector<512x16xf32>
    %41 = arith.select %39, %16, %40 : vector<512x16xi1>, vector<512x16xf32>
    %cst_20 = arith.constant dense<0.000000e+00> : vector<512xf32>
    %42 = vector.multi_reduction <add>, %41, %cst_20 [1] : vector<512x16xf32> to vector<512xf32>
    %43 = vector.shape_cast %42 : vector<512xf32> to vector<512x1xf32>
    %44 = arith.subf %35, %43 : vector<512x1xf32>
    %45 = vector.broadcast %33 : vector<512x1xf32> to vector<512x16xf32>
    %46 = arith.divf %31, %45 : vector<512x16xf32>
    %47 = arith.addf %26, %44 : vector<512x1xf32>
    %cst_21 = arith.constant 0.000000e+00 : f32
    %48 = vector.broadcast %cst_21 : f32 to vector<512x112xf32>
    %49 = tpu.concatenate %46, %48 in 1 : vector<512x16xf32>, vector<512x112xf32> -> vector<512x128xf32>
    %50 = tpu.iota {dimensions = array<i32: 1>} : vector<512x128xi32>
    %c16_i32 = arith.constant 16 : i32
    %51 = vector.broadcast %c16_i32 : i32 to vector<512x128xi32>
    %52 = arith.cmpi eq, %50, %51 : vector<512x128xi32>
    %53 = vector.shape_cast %47 : vector<512x1xf32> to vector<512x1xf32>
    %54 = vector.broadcast %53 : vector<512x1xf32> to vector<512x128xf32>
    %55 = arith.select %52, %54, %49 : vector<512x128xi1>, vector<512x128xf32>
    %c0_22 = arith.constant 0 : index
    %c0_23 = arith.constant 0 : index
    %56 = vector.load %arg8[%c0_22, %c0_23] : memref<512x128xf32, #tpu.memory_space<vmem>>, vector<512x128xf32>
    tpu.vector_store %arg8[%c0_22, %c0_23], %55 {strides = array<i32>} : memref<512x128xf32, #tpu.memory_space<vmem>>, vector<512x128xf32>,
    return
  }
  func.func @transform_0(%arg0: i32) -> (i32, i32) {
    %c0_i32 = arith.constant 0 : i32
    %c0_i32_0 = arith.constant 0 : i32
    return %arg0, %c0_i32 : i32, i32
  }
  func.func @transform_1(%arg0: i32) -> (i32, i32) {
    %c0_i32 = arith.constant 0 : i32
    %c0_i32_0 = arith.constant 0 : i32
    return %arg0, %c0_i32 : i32, i32
  }
  func.func @transform_2(%arg0: i32) -> (i32, i32) {
    %c0_i32 = arith.constant 0 : i32
    %c0_i32_0 = arith.constant 0 : i32
    %c0_i32_1 = arith.constant 0 : i32
    return %c0_i32, %c0_i32_0 : i32, i32
  }
  func.func @transform_3(%arg0: i32) -> (i32, i32) {
    %c0_i32 = arith.constant 0 : i32
    %c0_i32_0 = arith.constant 0 : i32
    %c0_i32_1 = arith.constant 0 : i32
    return %c0_i32, %c0_i32_0 : i32, i32
  }
  func.func @transform_4(%arg0: i32) -> (i32, i32) {
    %c0_i32 = arith.constant 0 : i32
    %c0_i32_0 = arith.constant 0 : i32
    %c0_i32_1 = arith.constant 0 : i32
    return %c0_i32, %c0_i32_0 : i32, i32
  }
  func.func @transform_5(%arg0: i32) -> (i32, i32) {
    %c0_i32 = arith.constant 0 : i32
    %c0_i32_0 = arith.constant 0 : i32
    %c0_i32_1 = arith.constant 0 : i32
    return %c0_i32, %c0_i32_0 : i32, i32
  }
  func.func @transform_6(%arg0: i32) -> (i32, i32) {
    %c0_i32 = arith.constant 0 : i32
    %c0_i32_0 = arith.constant 0 : i32
    %c0_i32_1 = arith.constant 0 : i32
    return %c0_i32, %c0_i32_0 : i32, i32
  }
  func.func @transform_7(%arg0: i32) -> (i32, i32) {
    %c0_i32 = arith.constant 0 : i32
    %c0_i32_0 = arith.constant 0 : i32
    return %arg0, %c0_i32 : i32, i32
  }
}

</mosaic_0001>

<llo_original>
// kernel: tpu_custom_call.1
$region0: #{tpu_custom_call.1}
  #allocation0 [shape = 'u32[]', space=smem, size = 0x4, offset = 0x4, fixed_abs, tag = 'smem constant byte address 0x4 - core index']
  #allocation1 [shape = 'u32[144,128]{1,0:T(1,128)}', space=vmem, size = 0x12000, scoped, tag = 'internal scratch']
  %s0 = inlined_call_operand.vmem [shape: f32[512,32], index: 0, kind: input, shape index: {}]
  %s1 = inlined_call_operand.vmem [shape: s32[512,1], index: 1, kind: input, shape index: {}]
  %s2 = inlined_call_operand.vmem [shape: bf16[32,64], index: 2, kind: input, shape index: {}]
  %s3 = inlined_call_operand.vmem [shape: f32[1,64], index: 3, kind: input, shape index: {}]
  %s4 = inlined_call_operand.vmem [shape: bf16[32,48], index: 4, kind: input, shape index: {}]
  %s5 = inlined_call_operand.vmem [shape: f32[1,16], index: 5, kind: input, shape index: {}]
  %s6 = inlined_call_operand.vmem [shape: f32[1,32], index: 6, kind: input, shape index: {}]
  %s7 = inlined_call_operand.hbm [shape: f32[512,128], index: 7, kind: output, shape index: {}]
  %s8 = sld [smem:[#allocation0]]
  $region38: #{tpu_custom_call.1} parent=0
    _
  %s10 = ssub.s32 1, %s8
  %s11 = scalar_select 0, %s10, %s8
  $region1: #{tpu_custom_call.1} parent=0
    #allocation2 [shape = 'u8[262144]{0}', space=vmem, size = 0x40000, scoped, tag = 'output window, operand 0, single buffered']
    #allocation3 [shape = 's32[1]{0}', space=sflag, size = 0x4, scoped, tag = 'scoped memory for tpu_custom_call.1']
    %12 = vsyncpa [#allocation3], 0
    // Predicated region
    $region2: #{tpu_custom_call.1} parent=1 // pred_check
      _
    $region3: #{tpu_custom_call.1} parent=1 // pred_check_branch
      %14 = sbr.rel (0) target = $region5
    $region4: #{tpu_custom_call.1} parent=1 // pred_region
      _
    $region5: #{tpu_custom_call.1} parent=1 // pred_fallthru
      _
    // Predicated region
    $region6: #{tpu_custom_call.1} parent=1 // pred_check
      _
    $region7: #{tpu_custom_call.1} parent=1 // pred_check_branch
      %16 = sbr.rel (0) target = $region9
    $region8: #{tpu_custom_call.1} parent=1 // pred_region
      _
    $region9: #{tpu_custom_call.1} parent=1 // pred_fallthru
      _
    // Predicated region
    $region10: #{tpu_custom_call.1} parent=1 // pred_check
      _
    $region11: #{tpu_custom_call.1} parent=1 // pred_check_branch
      %18 = sbr.rel (0) target = $region13
    $region12: #{tpu_custom_call.1} parent=1 // pred_region
      _
    $region13: #{tpu_custom_call.1} parent=1 // pred_fallthru
      _
    // Predicated region
    $region14: #{tpu_custom_call.1} parent=1 // pred_check
      _
    $region15: #{tpu_custom_call.1} parent=1 // pred_check_branch
      %20 = sbr.rel (0) target = $region17
    $region16: #{tpu_custom_call.1} parent=1 // pred_region
      _
    $region17: #{tpu_custom_call.1} parent=1 // pred_fallthru
      _
    // Predicated region
    $region18: #{tpu_custom_call.1} parent=1 // pred_check
      _
    $region19: #{tpu_custom_call.1} parent=1 // pred_check_branch
      %22 = sbr.rel (0) target = $region21
    $region20: #{tpu_custom_call.1} parent=1 // pred_region
      _
    $region21: #{tpu_custom_call.1} parent=1 // pred_fallthru
      _
    // Predicated region
    $region22: #{tpu_custom_call.1} parent=1 // pred_check
      _
    $region23: #{tpu_custom_call.1} parent=1 // pred_check_branch
      %24 = sbr.rel (0) target = $region25
    $region24: #{tpu_custom_call.1} parent=1 // pred_region
      _
    $region25: #{tpu_custom_call.1} parent=1 // pred_fallthru
      _
    // Predicated region
    $region26: #{tpu_custom_call.1} parent=1 // pred_check
      _
    $region27: #{tpu_custom_call.1} parent=1 // pred_check_branch
      %26 = sbr.rel (0) target = $region29
    $region28: #{tpu_custom_call.1} parent=1 // pred_region
      _
    $region29: #{tpu_custom_call.1} parent=1 // pred_fallthru
      _
    %v28 = vld [vmem:[%s0] sm:$0xff]
    %v29 = vld [vmem:[%s0 + $0x8] sm:$0xff]
    %v30 = vld [vmem:[%s0 + $0x10] sm:$0xff]
    %v31 = vld [vmem:[%s0 + $0x18] sm:$0xff]
    %v32 = vld [vmem:[%s0 + $0x20] sm:$0xff]
    %v33 = vld [vmem:[%s0 + $0x28] sm:$0xff]
    %v34 = vld [vmem:[%s0 + $0x30] sm:$0xff]
    %v35 = vld [vmem:[%s0 + $0x38] sm:$0xff]
    %v36 = vld [vmem:[%s0 + $0x40] sm:$0xff]
    %v37 = vld [vmem:[%s0 + $0x48] sm:$0xff]
    %v38 = vld [vmem:[%s0 + $0x50] sm:$0xff]
    %v39 = vld [vmem:[%s0 + $0x58] sm:$0xff]
    %v40 = vld [vmem:[%s0 + $0x60] sm:$0xff]
    %v41 = vld [vmem:[%s0 + $0x68] sm:$0xff]
    %v42 = vld [vmem:[%s0 + $0x70] sm:$0xff]
    %v43 = vld [vmem:[%s0 + $0x78] sm:$0xff]
    %v44 = vld [vmem:[%s0 + $0x80] sm:$0xff]
    %v45 = vld [vmem:[%s0 + $0x88] sm:$0xff]
    %v46 = vld [vmem:[%s0 + $0x90] sm:$0xff]
    %v47 = vld [vmem:[%s0 + $0x98] sm:$0xff]
    %v48 = vld [vmem:[%s0 + $0xa0] sm:$0xff]
    %v49 = vld [vmem:[%s0 + $0xa8] sm:$0xff]
    %v50 = vld [vmem:[%s0 + $0xb0] sm:$0xff]
    %v51 = vld [vmem:[%s0 + $0xb8] sm:$0xff]
    %v52 = vld [vmem:[%s0 + $0xc0] sm:$0xff]
    %v53 = vld [vmem:[%s0 + $0xc8] sm:$0xff]
    %v54 = vld [vmem:[%s0 + $0xd0] sm:$0xff]
    %v55 = vld [vmem:[%s0 + $0xd8] sm:$0xff]
    %v56 = vld [vmem:[%s0 + $0xe0] sm:$0xff]
    %v57 = vld [vmem:[%s0 + $0xe8] sm:$0xff]
    %v58 = vld [vmem:[%s0 + $0xf0] sm:$0xff]
    %v59 = vld [vmem:[%s0 + $0xf8] sm:$0xff]
    %v60 = vld [vmem:[%s0 + $0x100] sm:$0xff]
    %v61 = vld [vmem:[%s0 + $0x108] sm:$0xff]
    %v62 = vld [vmem:[%s0 + $0x110] sm:$0xff]
    %v63 = vld [vmem:[%s0 + $0x118] sm:$0xff]
    %v64 = vld [vmem:[%s0 + $0x120] sm:$0xff]
    %v65 = vld [vmem:[%s0 + $0x128] sm:$0xff]
    %v66 = vld [vmem:[%s0 + $0x130] sm:$0xff]
    %v67 = vld [vmem:[%s0 + $0x138] sm:$0xff]
    %v68 = vld [vmem:[%s0 + $0x140] sm:$0xff]
    %v69 = vld [vmem:[%s0 + $0x148] sm:$0xff]
    %v70 = vld [vmem:[%s0 + $0x150] sm:$0xff]
    %v71 = vld [vmem:[%s0 + $0x158] sm:$0xff]
    %v72 = vld [vmem:[%s0 + $0x160] sm:$0xff]
    %v73 = vld [vmem:[%s0 + $0x168] sm:$0xff]
    %v74 = vld [vmem:[%s0 + $0x170] sm:$0xff]
    %v75 = vld [vmem:[%s0 + $0x178] sm:$0xff]
    %v76 = vld [vmem:[%s0 + $0x180] sm:$0xff]
    %v77 = vld [vmem:[%s0 + $0x188] sm:$0xff]
    %v78 = vld [vmem:[%s0 + $0x190] sm:$0xff]
    %v79 = vld [vmem:[%s0 + $0x198] sm:$0xff]
    %v80 = vld [vmem:[%s0 + $0x1a0] sm:$0xff]
    %v81 = vld [vmem:[%s0 + $0x1a8] sm:$0xff]
    %v82 = vld [vmem:[%s0 + $0x1b0] sm:$0xff]
    %v83 = vld [vmem:[%s0 + $0x1b8] sm:$0xff]
    %v84 = vld [vmem:[%s0 + $0x1c0] sm:$0xff]
    %v85 = vld [vmem:[%s0 + $0x1c8] sm:$0xff]
    %v86 = vld [vmem:[%s0 + $0x1d0] sm:$0xff]
    %v87 = vld [vmem:[%s0 + $0x1d8] sm:$0xff]
    %v88 = vld [vmem:[%s0 + $0x1e0] sm:$0xff]
    %v89 = vld [vmem:[%s0 + $0x1e8] sm:$0xff]
    %v90 = vld [vmem:[%s0 + $0x1f0] sm:$0xff]
    %v91 = vld [vmem:[%s0 + $0x1f8] sm:$0xff]
    %v92 = vpack.c.bf16 %v29, %v28
    %v93 = vpack.c.bf16 %v31, %v30
    %v94 = vpack.c.bf16 %v33, %v32
    %v95 = vpack.c.bf16 %v35, %v34
    %v96 = vpack.c.bf16 %v37, %v36
    %v97 = vpack.c.bf16 %v39, %v38
    %v98 = vpack.c.bf16 %v41, %v40
    %v99 = vpack.c.bf16 %v43, %v42
    %v100 = vpack.c.bf16 %v45, %v44
    %v101 = vpack.c.bf16 %v47, %v46
    %v102 = vpack.c.bf16 %v49, %v48
    %v103 = vpack.c.bf16 %v51, %v50
    %v104 = vpack.c.bf16 %v53, %v52
    %v105 = vpack.c.bf16 %v55, %v54
    %v106 = vpack.c.bf16 %v57, %v56
    %v107 = vpack.c.bf16 %v59, %v58
    %v108 = vpack.c.bf16 %v61, %v60
    %v109 = vpack.c.bf16 %v63, %v62
    %v110 = vpack.c.bf16 %v65, %v64
    %v111 = vpack.c.bf16 %v67, %v66
    %v112 = vpack.c.bf16 %v69, %v68
    %v113 = vpack.c.bf16 %v71, %v70
    %v114 = vpack.c.bf16 %v73, %v72
    %v115 = vpack.c.bf16 %v75, %v74
    %v116 = vpack.c.bf16 %v77, %v76
    %v117 = vpack.c.bf16 %v79, %v78
    %v118 = vpack.c.bf16 %v81, %v80
    %v119 = vpack.c.bf16 %v83, %v82
    %v120 = vpack.c.bf16 %v85, %v84
    %v121 = vpack.c.bf16 %v87, %v86
    %v122 = vpack.c.bf16 %v89, %v88
    %v123 = vpack.c.bf16 %v91, %v90
    %v124 = vld [vmem:[%s2] sm:$0xf]
    %v125 = vld [vmem:[%s2 + $0x4] sm:$0xf]
    %v126 = vld [vmem:[%s2 + $0x8] sm:$0xf]
    %v127 = vld [vmem:[%s2 + $0xc] sm:$0xf]
    %v128 = vld [vmem:[%s3] sm:$0x1]
    %v130 = vlaneseq
    %v131 = vshrl.u32 %v130, 7
    %v132 = vsub.s32 0, %v131
    %v133 = vrot.slane %v128, %v132
    %v139 = vunpack.c.l.b16 %v124
    %v140 = vunpack.c.l.b16 %v125
    %v141 = vunpack.c.l.b16 %v126
    %v142 = vunpack.c.l.b16 %v127
    %v143 = vpack.c.b16 %v140, %v139
    %v144 = vpack.c.b16 %v142, %v141
    %vm147 = vcmask 261120
    %v149 = vsel %vm147, %v92, 0
    %v152 = vsel %vm147, %v93, 0
    %v155 = vsel %vm147, %v94, 0
    %v158 = vsel %vm147, %v95, 0
    %v161 = vsel %vm147, %v96, 0
    %v164 = vsel %vm147, %v97, 0
    %v167 = vsel %vm147, %v98, 0
    %v170 = vsel %vm147, %v99, 0
    %v173 = vsel %vm147, %v100, 0
    %v176 = vsel %vm147, %v101, 0
    %v179 = vsel %vm147, %v102, 0
    %v182 = vsel %vm147, %v103, 0
    %v185 = vsel %vm147, %v104, 0
    %v188 = vsel %vm147, %v105, 0
    %v191 = vsel %vm147, %v106, 0
    %v194 = vsel %vm147, %v107, 0
    %v197 = vsel %vm147, %v108, 0
    %v200 = vsel %vm147, %v109, 0
    %v203 = vsel %vm147, %v110, 0
    %v206 = vsel %vm147, %v111, 0
    %v209 = vsel %vm147, %v112, 0
    %v212 = vsel %vm147, %v113, 0
    %v215 = vsel %vm147, %v114, 0
    %v218 = vsel %vm147, %v115, 0
    %v221 = vsel %vm147, %v116, 0
    %v224 = vsel %vm147, %v117, 0
    %v227 = vsel %vm147, %v118, 0
    %v230 = vsel %vm147, %v119, 0
    %v233 = vsel %vm147, %v120, 0
    %v236 = vsel %vm147, %v121, 0
    %v239 = vsel %vm147, %v122, 0
    %v242 = vsel %vm147, %v123, 0
    %244 = vmatprep.subr.bf16.mxu0 0
    %245 = vmatpush1.bf16.msra.mxu0 %v143
    %246 = vmatprep.subr.bf16.mxu0 0
    %247 = vmatpush1.bf16.msra.mxu0 %v144
    %248 = vmatprep.subr.bf16.mxu0 0
    %249 = vmatpush1.bf16.msra.mxu0 0
    %250 = vmatprep.subr.bf16.mxu0 0
    %251 = vmatpush1.bf16.msra.mxu0 0
    %252 = vmatprep.subr.bf16.mxu0 0
    %253 = vmatpush1.bf16.msra.mxu0 0
    %254 = vmatprep.subr.bf16.mxu0 0
    %255 = vmatpush1.bf16.msra.mxu0 0
    %256 = vmatprep.subr.bf16.mxu0 0
    %257 = vmatpush1.bf16.msra.mxu0 0
    %258 = vmatprep.subr.bf16.mxu0 0
    %259 = vmatpush1.bf16.msra.mxu0 0
    %260 = vmatprep.subr.bf16.mxu0 0
    %261 = vmatpush1.bf16.msra.mxu0 0
    %262 = vmatprep.subr.bf16.mxu0 0
    %263 = vmatpush1.bf16.msra.mxu0 0
    %264 = vmatprep.subr.bf16.mxu0 0
    %265 = vmatpush1.bf16.msra.mxu0 0
    %266 = vmatprep.subr.bf16.mxu0 0
    %267 = vmatpush1.bf16.msra.mxu0 0
    %268 = vmatprep.subr.bf16.mxu0 0
    %269 = vmatpush1.bf16.msra.mxu0 0
    %270 = vmatprep.subr.bf16.mxu0 0
    %271 = vmatpush1.bf16.msra.mxu0 0
    %272 = vmatprep.subr.bf16.mxu0 0
    %273 = vmatpush1.bf16.msra.mxu0 0
    %274 = vmatprep.subr.bf16.mxu0 0
    %275 = vmatpush1.bf16.msra.mxu0 0
    %276 = vmatprep.mubr.bf16.mxu0 0
    %277 = vmatmul.mubr.bf16.gmra.mrb[0].mxu0 %v149
    %v278 = vpop.f32.mrb[0].mxu0
    %v279 = vadd.f32 %v133, %v278
    %v280 = vpop.f32.mrb[0].mxu0
    %v281 = vpop.f32.mrb[0].mxu0
    %v282 = vadd.f32 %v133, %v281
    %v283 = vpop.f32.mrb[0].mxu0
    %284 = vmatprep.mubr.bf16.mxu0 0
    %285 = vmatmul.mubr.bf16.gmra.mrb[0].mxu0 %v152
    %v286 = vpop.f32.mrb[0].mxu0
    %v287 = vadd.f32 %v133, %v286
    %v288 = vpop.f32.mrb[0].mxu0
    %v289 = vpop.f32.mrb[0].mxu0
    %v290 = vadd.f32 %v133, %v289
    %v291 = vpop.f32.mrb[0].mxu0
    %292 = vmatprep.mubr.bf16.mxu0 0
    %293 = vmatmul.mubr.bf16.gmra.mrb[0].mxu0 %v155
    %v294 = vpop.f32.mrb[0].mxu0
    %v295 = vadd.f32 %v133, %v294
    %v296 = vpop.f32.mrb[0].mxu0
    %v297 = vpop.f32.mrb[0].mxu0
    %v298 = vadd.f32 %v133, %v297
    %v299 = vpop.f32.mrb[0].mxu0
    %300 = vmatprep.mubr.bf16.mxu0 0
    %301 = vmatmul.mubr.bf16.gmra.mrb[0].mxu0 %v158
    %v302 = vpop.f32.mrb[0].mxu0
    %v303 = vadd.f32 %v133, %v302
    %v304 = vpop.f32.mrb[0].mxu0
    %v305 = vpop.f32.mrb[0].mxu0
    %v306 = vadd.f32 %v133, %v305
    %v307 = vpop.f32.mrb[0].mxu0
    %308 = vmatprep.mubr.bf16.mxu0 0
    %309 = vmatmul.mubr.bf16.gmra.mrb[0].mxu0 %v161
    %v310 = vpop.f32.mrb[0].mxu0
    %v311 = vadd.f32 %v133, %v310
    %v312 = vpop.f32.mrb[0].mxu0
    %v313 = vpop.f32.mrb[0].mxu0
    %v314 = vadd.f32 %v133, %v313
    %v315 = vpop.f32.mrb[0].mxu0
    %316 = vmatprep.mubr.bf16.mxu0 0
    %317 = vmatmul.mubr.bf16.gmra.mrb[0].mxu0 %v164
    %v318 = vpop.f32.mrb[0].mxu0
    %v319 = vadd.f32 %v133, %v318
    %v320 = vpop.f32.mrb[0].mxu0
    %v321 = vpop.f32.mrb[0].mxu0
    %v322 = vadd.f32 %v133, %v321
    %v323 = vpop.f32.mrb[0].mxu0
    %324 = vmatprep.mubr.bf16.mxu0 0
    %325 = vmatmul.mubr.bf16.gmra.mrb[0].mxu0 %v167
    %v326 = vpop.f32.mrb[0].mxu0
    %v327 = vadd.f32 %v133, %v326
    %v328 = vpop.f32.mrb[0].mxu0
    %v329 = vpop.f32.mrb[0].mxu0
    %v330 = vadd.f32 %v133, %v329
    %v331 = vpop.f32.mrb[0].mxu0
    %332 = vmatprep.mubr.bf16.mxu0 0
    %333 = vmatmul.mubr.bf16.gmra.mrb[0].mxu0 %v170
    %v334 = vpop.f32.mrb[0].mxu0
    %v335 = vadd.f32 %v133, %v334
    %v336 = vpop.f32.mrb[0].mxu0
    %v337 = vpop.f32.mrb[0].mxu0
    %v338 = vadd.f32 %v133, %v337
    %v339 = vpop.f32.mrb[0].mxu0
    %340 = vmatprep.mubr.bf16.mxu0 0
    %341 = vmatmul.mubr.bf16.gmra.mrb[0].mxu0 %v173
    %v342 = vpop.f32.mrb[0].mxu0
    %v343 = vadd.f32 %v133, %v342
    %v344 = vpop.f32.mrb[0].mxu0
    %v345 = vpop.f32.mrb[0].mxu0
    %v346 = vadd.f32 %v133, %v345
    %v347 = vpop.f32.mrb[0].mxu0
    %348 = vmatprep.mubr.bf16.mxu0 0
    %349 = vmatmul.mubr.bf16.gmra.mrb[0].mxu0 %v176
    %v350 = vpop.f32.mrb[0].mxu0
    %v351 = vadd.f32 %v133, %v350
    %v352 = vpop.f32.mrb[0].mxu0
    %v353 = vpop.f32.mrb[0].mxu0
    %v354 = vadd.f32 %v133, %v353
    %v355 = vpop.f32.mrb[0].mxu0
    %356 = vmatprep.mubr.bf16.mxu0 0
    %357 = vmatmul.mubr.bf16.gmra.mrb[0].mxu0 %v179
    %v358 = vpop.f32.mrb[0].mxu0
    %v359 = vadd.f32 %v133, %v358
    %v360 = vpop.f32.mrb[0].mxu0
    %v361 = vpop.f32.mrb[0].mxu0
    %v362 = vadd.f32 %v133, %v361
    %v363 = vpop.f32.mrb[0].mxu0
    %364 = vmatprep.mubr.bf16.mxu0 0
    %365 = vmatmul.mubr.bf16.gmra.mrb[0].mxu0 %v182
    %v366 = vpop.f32.mrb[0].mxu0
    %v367 = vadd.f32 %v133, %v366
    %v368 = vpop.f32.mrb[0].mxu0
    %v369 = vpop.f32.mrb[0].mxu0
    %v370 = vadd.f32 %v133, %v369
    %v371 = vpop.f32.mrb[0].mxu0
    %372 = vmatprep.mubr.bf16.mxu0 0
    %373 = vmatmul.mubr.bf16.gmra.mrb[0].mxu0 %v185
    %v374 = vpop.f32.mrb[0].mxu0
    %v375 = vadd.f32 %v133, %v374
    %v376 = vpop.f32.mrb[0].mxu0
    %v377 = vpop.f32.mrb[0].mxu0
    %v378 = vadd.f32 %v133, %v377
    %v379 = vpop.f32.mrb[0].mxu0
    %380 = vmatprep.mubr.bf16.mxu0 0
    %381 = vmatmul.mubr.bf16.gmra.mrb[0].mxu0 %v188
    %v382 = vpop.f32.mrb[0].mxu0
    %v383 = vadd.f32 %v133, %v382
    %v384 = vpop.f32.mrb[0].mxu0
    %v385 = vpop.f32.mrb[0].mxu0
    %v386 = vadd.f32 %v133, %v385
    %v387 = vpop.f32.mrb[0].mxu0
    %388 = vmatprep.mubr.bf16.mxu0 0
    %389 = vmatmul.mubr.bf16.gmra.mrb[0].mxu0 %v191
    %v390 = vpop.f32.mrb[0].mxu0
    %v391 = vadd.f32 %v133, %v390
    %v392 = vpop.f32.mrb[0].mxu0
    %v393 = vpop.f32.mrb[0].mxu0
    %v394 = vadd.f32 %v133, %v393
    %v395 = vpop.f32.mrb[0].mxu0
    %396 = vmatprep.mubr.bf16.mxu0 0
    %397 = vmatmul.mubr.bf16.gmra.mrb[0].mxu0 %v194
    %v398 = vpop.f32.mrb[0].mxu0
    %v399 = vadd.f32 %v133, %v398
    %v400 = vpop.f32.mrb[0].mxu0
    %v401 = vpop.f32.mrb[0].mxu0
    %v402 = vadd.f32 %v133, %v401
    %v403 = vpop.f32.mrb[0].mxu0
    %404 = vmatprep.mubr.bf16.mxu0 0
    %405 = vmatmul.mubr.bf16.gmra.mrb[0].mxu0 %v197
    %v406 = vpop.f32.mrb[0].mxu0
    %v407 = vadd.f32 %v133, %v406
    %v408 = vpop.f32.mrb[0].mxu0
    %v409 = vpop.f32.mrb[0].mxu0
    %v410 = vadd.f32 %v133, %v409
    %v411 = vpop.f32.mrb[0].mxu0
    %412 = vmatprep.mubr.bf16.mxu0 0
    %413 = vmatmul.mubr.bf16.gmra.mrb[0].mxu0 %v200
    %v414 = vpop.f32.mrb[0].mxu0
    %v415 = vadd.f32 %v133, %v414
    %v416 = vpop.f32.mrb[0].mxu0
    %v417 = vpop.f32.mrb[0].mxu0
    %v418 = vadd.f32 %v133, %v417
    %v419 = vpop.f32.mrb[0].mxu0
    %420 = vmatprep.mubr.bf16.mxu0 0
    %421 = vmatmul.mubr.bf16.gmra.mrb[0].mxu0 %v203
    %v422 = vpop.f32.mrb[0].mxu0
    %v423 = vadd.f32 %v133, %v422
    %v424 = vpop.f32.mrb[0].mxu0
    %v425 = vpop.f32.mrb[0].mxu0
    %v426 = vadd.f32 %v133, %v425
    %v427 = vpop.f32.mrb[0].mxu0
    %428 = vmatprep.mubr.bf16.mxu0 0
    %429 = vmatmul.mubr.bf16.gmra.mrb[0].mxu0 %v206
    %v430 = vpop.f32.mrb[0].mxu0
    %v431 = vadd.f32 %v133, %v430
    %v432 = vpop.f32.mrb[0].mxu0
    %v433 = vpop.f32.mrb[0].mxu0
    %v434 = vadd.f32 %v133, %v433
    %v435 = vpop.f32.mrb[0].mxu0
    %436 = vmatprep.mubr.bf16.mxu0 0
    %437 = vmatmul.mubr.bf16.gmra.mrb[0].mxu0 %v209
    %v438 = vpop.f32.mrb[0].mxu0
    %v439 = vadd.f32 %v133, %v438
    %v440 = vpop.f32.mrb[0].mxu0
    %v441 = vpop.f32.mrb[0].mxu0
    %v442 = vadd.f32 %v133, %v441
    %v443 = vpop.f32.mrb[0].mxu0
    %444 = vmatprep.mubr.bf16.mxu0 0
    %445 = vmatmul.mubr.bf16.gmra.mrb[0].mxu0 %v212
    %v446 = vpop.f32.mrb[0].mxu0
    %v447 = vadd.f32 %v133, %v446
    %v448 = vpop.f32.mrb[0].mxu0
    %v449 = vpop.f32.mrb[0].mxu0
    %v450 = vadd.f32 %v133, %v449
    %v451 = vpop.f32.mrb[0].mxu0
    %452 = vmatprep.mubr.bf16.mxu0 0
    %453 = vmatmul.mubr.bf16.gmra.mrb[0].mxu0 %v215
    %v454 = vpop.f32.mrb[0].mxu0
    %v455 = vadd.f32 %v133, %v454
    %v456 = vpop.f32.mrb[0].mxu0
    %v457 = vpop.f32.mrb[0].mxu0
    %v458 = vadd.f32 %v133, %v457
    %v459 = vpop.f32.mrb[0].mxu0
    %460 = vmatprep.mubr.bf16.mxu0 0
    %461 = vmatmul.mubr.bf16.gmra.mrb[0].mxu0 %v218
    %v462 = vpop.f32.mrb[0].mxu0
    %v463 = vadd.f32 %v133, %v462
    %v464 = vpop.f32.mrb[0].mxu0
    %v465 = vpop.f32.mrb[0].mxu0
    %v466 = vadd.f32 %v133, %v465
    %v467 = vpop.f32.mrb[0].mxu0
    %468 = vmatprep.mubr.bf16.mxu0 0
    %469 = vmatmul.mubr.bf16.gmra.mrb[0].mxu0 %v221
    %v470 = vpop.f32.mrb[0].mxu0
    %v471 = vadd.f32 %v133, %v470
    %v472 = vpop.f32.mrb[0].mxu0
    %v473 = vpop.f32.mrb[0].mxu0
    %v474 = vadd.f32 %v133, %v473
    %v475 = vpop.f32.mrb[0].mxu0
    %476 = vmatprep.mubr.bf16.mxu0 0
    %477 = vmatmul.mubr.bf16.gmra.mrb[0].mxu0 %v224
    %v478 = vpop.f32.mrb[0].mxu0
    %v479 = vadd.f32 %v133, %v478
    %v480 = vpop.f32.mrb[0].mxu0
    %v481 = vpop.f32.mrb[0].mxu0
    %v482 = vadd.f32 %v133, %v481
    %v483 = vpop.f32.mrb[0].mxu0
    %484 = vmatprep.mubr.bf16.mxu0 0
    %485 = vmatmul.mubr.bf16.gmra.mrb[0].mxu0 %v227
    %v486 = vpop.f32.mrb[0].mxu0
    %v487 = vadd.f32 %v133, %v486
    %v488 = vpop.f32.mrb[0].mxu0
    %v489 = vpop.f32.mrb[0].mxu0
    %v490 = vadd.f32 %v133, %v489
    %v491 = vpop.f32.mrb[0].mxu0
    %492 = vmatprep.mubr.bf16.mxu0 0
    %493 = vmatmul.mubr.bf16.gmra.mrb[0].mxu0 %v230
    %v494 = vpop.f32.mrb[0].mxu0
    %v495 = vadd.f32 %v133, %v494
    %v496 = vpop.f32.mrb[0].mxu0
    %v497 = vpop.f32.mrb[0].mxu0
    %v498 = vadd.f32 %v133, %v497
    %v499 = vpop.f32.mrb[0].mxu0
    %500 = vmatprep.mubr.bf16.mxu0 0
    %501 = vmatmul.mubr.bf16.gmra.mrb[0].mxu0 %v233
    %v502 = vpop.f32.mrb[0].mxu0
    %v503 = vadd.f32 %v133, %v502
    %v504 = vpop.f32.mrb[0].mxu0
    %v505 = vpop.f32.mrb[0].mxu0
    %v506 = vadd.f32 %v133, %v505
    %v507 = vpop.f32.mrb[0].mxu0
    %508 = vmatprep.mubr.bf16.mxu0 0
    %509 = vmatmul.mubr.bf16.gmra.mrb[0].mxu0 %v236
    %v510 = vpop.f32.mrb[0].mxu0
    %v511 = vadd.f32 %v133, %v510
    %v512 = vpop.f32.mrb[0].mxu0
    %v513 = vpop.f32.mrb[0].mxu0
    %v514 = vadd.f32 %v133, %v513
    %v515 = vpop.f32.mrb[0].mxu0
    %516 = vmatprep.mubr.bf16.mxu0 0
    %517 = vmatmul.mubr.bf16.gmra.mrb[0].mxu0 %v239
    %v518 = vpop.f32.mrb[0].mxu0
    %v519 = vadd.f32 %v133, %v518
    %v520 = vpop.f32.mrb[0].mxu0
    %v521 = vpop.f32.mrb[0].mxu0
    %v522 = vadd.f32 %v133, %v521
    %v523 = vpop.f32.mrb[0].mxu0
    %524 = vmatprep.mubr.bf16.mxu0 0
    %525 = vmatmul.mubr.bf16.gmra.mrb[0].mxu0 %v242
    %v526 = vpop.f32.mrb[0].mxu0
    %v527 = vadd.f32 %v133, %v526
    %v528 = vpop.f32.mrb[0].mxu0
    %v529 = vpop.f32.mrb[0].mxu0
    %v530 = vadd.f32 %v133, %v529
    %v531 = vpop.f32.mrb[0].mxu0
    %532 = vdwg.mxu0
    %v533 = vmax.f32 %v279, 0.0
    %v534 = vmax.f32 %v282, 0.0
    %v535 = vmax.f32 %v287, 0.0
    %v536 = vmax.f32 %v290, 0.0
    %v537 = vmax.f32 %v295, 0.0
    %v538 = vmax.f32 %v298, 0.0
    %v539 = vmax.f32 %v303, 0.0
    %v540 = vmax.f32 %v306, 0.0
    %v541 = vmax.f32 %v311, 0.0
    %v542 = vmax.f32 %v314, 0.0
    %v543 = vmax.f32 %v319, 0.0
    %v544 = vmax.f32 %v322, 0.0
    %v545 = vmax.f32 %v327, 0.0
    %v546 = vmax.f32 %v330, 0.0
    %v547 = vmax.f32 %v335, 0.0
    %v548 = vmax.f32 %v338, 0.0
    %v549 = vmax.f32 %v343, 0.0
    %v550 = vmax.f32 %v346, 0.0
    %v551 = vmax.f32 %v351, 0.0
    %v552 = vmax.f32 %v354, 0.0
    %v553 = vmax.f32 %v359, 0.0
    %v554 = vmax.f32 %v362, 0.0
    %v555 = vmax.f32 %v367, 0.0
    %v556 = vmax.f32 %v370, 0.0
    %v557 = vmax.f32 %v375, 0.0
    %v558 = vmax.f32 %v378, 0.0
    %v559 = vmax.f32 %v383, 0.0
    %v560 = vmax.f32 %v386, 0.0
    %v561 = vmax.f32 %v391, 0.0
    %v562 = vmax.f32 %v394, 0.0
    %v563 = vmax.f32 %v399, 0.0
    %v564 = vmax.f32 %v402, 0.0
    %v565 = vmax.f32 %v407, 0.0
    %v566 = vmax.f32 %v410, 0.0
    %v567 = vmax.f32 %v415, 0.0
    %v568 = vmax.f32 %v418, 0.0
    %v569 = vmax.f32 %v423, 0.0
    %v570 = vmax.f32 %v426, 0.0
    %v571 = vmax.f32 %v431, 0.0
    %v572 = vmax.f32 %v434, 0.0
    %v573 = vmax.f32 %v439, 0.0
    %v574 = vmax.f32 %v442, 0.0
    %v575 = vmax.f32 %v447, 0.0
    %v576 = vmax.f32 %v450, 0.0
    %v577 = vmax.f32 %v455, 0.0
    %v578 = vmax.f32 %v458, 0.0
    %v579 = vmax.f32 %v463, 0.0
    %v580 = vmax.f32 %v466, 0.0
    %v581 = vmax.f32 %v471, 0.0
    %v582 = vmax.f32 %v474, 0.0
    %v583 = vmax.f32 %v479, 0.0
    %v584 = vmax.f32 %v482, 0.0
    %v585 = vmax.f32 %v487, 0.0
    %v586 = vmax.f32 %v490, 0.0
    %v587 = vmax.f32 %v495, 0.0
    %v588 = vmax.f32 %v498, 0.0
    %v589 = vmax.f32 %v503, 0.0
    %v590 = vmax.f32 %v506, 0.0
    %v591 = vmax.f32 %v511, 0.0
    %v592 = vmax.f32 %v514, 0.0
    %v593 = vmax.f32 %v519, 0.0
    %v594 = vmax.f32 %v522, 0.0
    %v595 = vmax.f32 %v527, 0.0
    %v596 = vmax.f32 %v530, 0.0
    %v597 = vpack.c.bf16 %v534, %v533
    %v598 = vpack.c.bf16 %v536, %v535
    %v599 = vpack.c.bf16 %v538, %v537
    %v600 = vpack.c.bf16 %v540, %v539
    %v601 = vpack.c.bf16 %v542, %v541
    %v602 = vpack.c.bf16 %v544, %v543
    %v603 = vpack.c.bf16 %v546, %v545
    %v604 = vpack.c.bf16 %v548, %v547
    %v605 = vpack.c.bf16 %v550, %v549
    %v606 = vpack.c.bf16 %v552, %v551
    %v607 = vpack.c.bf16 %v554, %v553
    %v608 = vpack.c.bf16 %v556, %v555
    %v609 = vpack.c.bf16 %v558, %v557
    %v610 = vpack.c.bf16 %v560, %v559
    %v611 = vpack.c.bf16 %v562, %v561
    %v612 = vpack.c.bf16 %v564, %v563
    %v613 = vpack.c.bf16 %v566, %v565
    %v614 = vpack.c.bf16 %v568, %v567
    %v615 = vpack.c.bf16 %v570, %v569
    %v616 = vpack.c.bf16 %v572, %v571
    %v617 = vpack.c.bf16 %v574, %v573
    %v618 = vpack.c.bf16 %v576, %v575
    %v619 = vpack.c.bf16 %v578, %v577
    %v620 = vpack.c.bf16 %v580, %v579
    %v621 = vpack.c.bf16 %v582, %v581
    %v622 = vpack.c.bf16 %v584, %v583
    %v623 = vpack.c.bf16 %v586, %v585
    %v624 = vpack.c.bf16 %v588, %v587
    %v625 = vpack.c.bf16 %v590, %v589
    %v626 = vpack.c.bf16 %v592, %v591
    %v627 = vpack.c.bf16 %v594, %v593
    %v628 = vpack.c.bf16 %v596, %v595
    %v629 = vld [vmem:[%s4] sm:$0xf]
    %v630 = vld [vmem:[%s4 + $0x4] sm:$0xf]
    %v631 = vld [vmem:[%s4 + $0x8] sm:$0xf]
    %v632 = vld [vmem:[%s4 + $0xc] sm:$0xf]
    %v637 = vunpack.c.l.b16 %v629
    %v638 = vunpack.c.l.b16 %v630
    %v639 = vunpack.c.l.b16 %v631
    %v640 = vunpack.c.l.b16 %v632
    %v641 = vpack.c.b16 %v638, %v637
    %v642 = vpack.c.b16 %v640, %v639
    %v646 = vsel %vm147, %v597, 0
    %v649 = vsel %vm147, %v598, 0
    %v652 = vsel %vm147, %v599, 0
    %v655 = vsel %vm147, %v600, 0
    %v658 = vsel %vm147, %v601, 0
    %v661 = vsel %vm147, %v602, 0
    %v664 = vsel %vm147, %v603, 0
    %v667 = vsel %vm147, %v604, 0
    %v670 = vsel %vm147, %v605, 0
    %v673 = vsel %vm147, %v606, 0
    %v676 = vsel %vm147, %v607, 0
    %v679 = vsel %vm147, %v608, 0
    %v682 = vsel %vm147, %v609, 0
    %v685 = vsel %vm147, %v610, 0
    %v688 = vsel %vm147, %v611, 0
    %v691 = vsel %vm147, %v612, 0
    %v694 = vsel %vm147, %v613, 0
    %v697 = vsel %vm147, %v614, 0
    %v700 = vsel %vm147, %v615, 0
    %v703 = vsel %vm147, %v616, 0
    %v706 = vsel %vm147, %v617, 0
    %v709 = vsel %vm147, %v618, 0
    %v712 = vsel %vm147, %v619, 0
    %v715 = vsel %vm147, %v620, 0
    %v718 = vsel %vm147, %v621, 0
    %v721 = vsel %vm147, %v622, 0
    %v724 = vsel %vm147, %v623, 0
    %v727 = vsel %vm147, %v624, 0
    %v730 = vsel %vm147, %v625, 0
    %v733 = vsel %vm147, %v626, 0
    %v736 = vsel %vm147, %v627, 0
    %v739 = vsel %vm147, %v628, 0
    %741 = vmatprep.subr.bf16.mxu0 0
    %742 = vmatpush1.bf16.msra.mxu0 %v641
    %743 = vmatprep.subr.bf16.mxu0 0
    %744 = vmatpush1.bf16.msra.mxu0 %v642
    %745 = vmatprep.subr.bf16.mxu0 0
    %746 = vmatpush1.bf16.msra.mxu0 0
    %747 = vmatprep.subr.bf16.mxu0 0
    %748 = vmatpush1.bf16.msra.mxu0 0
    %749 = vmatprep.subr.bf16.mxu0 0
    %750 = vmatpush1.bf16.msra.mxu0 0
    %751 = vmatprep.subr.bf16.mxu0 0
    %752 = vmatpush1.bf16.msra.mxu0 0
    %753 = vmatprep.subr.bf16.mxu0 0
    %754 = vmatpush1.bf16.msra.mxu0 0
    %755 = vmatprep.subr.bf16.mxu0 0
    %756 = vmatpush1.bf16.msra.mxu0 0
    %757 = vmatprep.subr.bf16.mxu0 0
    %758 = vmatpush1.bf16.msra.mxu0 0
    %759 = vmatprep.subr.bf16.mxu0 0
    %760 = vmatpush1.bf16.msra.mxu0 0
    %761 = vmatprep.subr.bf16.mxu0 0
    %762 = vmatpush1.bf16.msra.mxu0 0
    %763 = vmatprep.subr.bf16.mxu0 0
    %764 = vmatpush1.bf16.msra.mxu0 0
    %765 = vmatprep.subr.bf16.mxu0 0
    %766 = vmatpush1.bf16.msra.mxu0 0
    %767 = vmatprep.subr.bf16.mxu0 0
    %768 = vmatpush1.bf16.msra.mxu0 0
    %769 = vmatprep.subr.bf16.mxu0 0
    %770 = vmatpush1.bf16.msra.mxu0 0
    %771 = vmatprep.subr.bf16.mxu0 0
    %772 = vmatpush1.bf16.msra.mxu0 0
    %773 = vmatprep.mubr.bf16.mxu0 0
    %774 = vmatmul.mubr.bf16.gmra.mrb[0].mxu0 %v646
    %v775 = vpop.f32.mrb[0].mxu0
    %v776 = vadd.f32 0.0, %v775
    %v777 = vpop.f32.mrb[0].mxu0
    %v778 = vpop.f32.mrb[0].mxu0
    %v779 = vadd.f32 0.0, %v778
    %v780 = vpop.f32.mrb[0].mxu0
    %781 = vmatprep.mubr.bf16.mxu0 0
    %782 = vmatmul.mubr.bf16.gmra.mrb[0].mxu0 %v649
    %v783 = vpop.f32.mrb[0].mxu0
    %v784 = vadd.f32 0.0, %v783
    %v785 = vpop.f32.mrb[0].mxu0
    %v786 = vpop.f32.mrb[0].mxu0
    %v787 = vadd.f32 0.0, %v786
    %v788 = vpop.f32.mrb[0].mxu0
    %789 = vmatprep.mubr.bf16.mxu0 0
    %790 = vmatmul.mubr.bf16.gmra.mrb[0].mxu0 %v652
    %v791 = vpop.f32.mrb[0].mxu0
    %v792 = vadd.f32 0.0, %v791
    %v793 = vpop.f32.mrb[0].mxu0
    %v794 = vpop.f32.mrb[0].mxu0
    %v795 = vadd.f32 0.0, %v794
    %v796 = vpop.f32.mrb[0].mxu0
    %797 = vmatprep.mubr.bf16.mxu0 0
    %798 = vmatmul.mubr.bf16.gmra.mrb[0].mxu0 %v655
    %v799 = vpop.f32.mrb[0].mxu0
    %v800 = vadd.f32 0.0, %v799
    %v801 = vpop.f32.mrb[0].mxu0
    %v802 = vpop.f32.mrb[0].mxu0
    %v803 = vadd.f32 0.0, %v802
    %v804 = vpop.f32.mrb[0].mxu0
    %805 = vmatprep.mubr.bf16.mxu0 0
    %806 = vmatmul.mubr.bf16.gmra.mrb[0].mxu0 %v658
    %v807 = vpop.f32.mrb[0].mxu0
    %v808 = vadd.f32 0.0, %v807
    %v809 = vpop.f32.mrb[0].mxu0
    %v810 = vpop.f32.mrb[0].mxu0
    %v811 = vadd.f32 0.0, %v810
    %v812 = vpop.f32.mrb[0].mxu0
    %813 = vmatprep.mubr.bf16.mxu0 0
    %814 = vmatmul.mubr.bf16.gmra.mrb[0].mxu0 %v661
    %v815 = vpop.f32.mrb[0].mxu0
    %v816 = vadd.f32 0.0, %v815
    %v817 = vpop.f32.mrb[0].mxu0
    %v818 = vpop.f32.mrb[0].mxu0
    %v819 = vadd.f32 0.0, %v818
    %v820 = vpop.f32.mrb[0].mxu0
    %821 = vmatprep.mubr.bf16.mxu0 0
    %822 = vmatmul.mubr.bf16.gmra.mrb[0].mxu0 %v664
    %v823 = vpop.f32.mrb[0].mxu0
    %v824 = vadd.f32 0.0, %v823
    %v825 = vpop.f32.mrb[0].mxu0
    %v826 = vpop.f32.mrb[0].mxu0
    %v827 = vadd.f32 0.0, %v826
    %v828 = vpop.f32.mrb[0].mxu0
    %829 = vmatprep.mubr.bf16.mxu0 0
    %830 = vmatmul.mubr.bf16.gmra.mrb[0].mxu0 %v667
    %v831 = vpop.f32.mrb[0].mxu0
    %v832 = vadd.f32 0.0, %v831
    %v833 = vpop.f32.mrb[0].mxu0
    %v834 = vpop.f32.mrb[0].mxu0
    %v835 = vadd.f32 0.0, %v834
    %v836 = vpop.f32.mrb[0].mxu0
    %837 = vmatprep.mubr.bf16.mxu0 0
    %838 = vmatmul.mubr.bf16.gmra.mrb[0].mxu0 %v670
    %v839 = vpop.f32.mrb[0].mxu0
    %v840 = vadd.f32 0.0, %v839
    %v841 = vpop.f32.mrb[0].mxu0
    %v842 = vpop.f32.mrb[0].mxu0
    %v843 = vadd.f32 0.0, %v842
    %v844 = vpop.f32.mrb[0].mxu0
    %845 = vmatprep.mubr.bf16.mxu0 0
    %846 = vmatmul.mubr.bf16.gmra.mrb[0].mxu0 %v673
    %v847 = vpop.f32.mrb[0].mxu0
    %v848 = vadd.f32 0.0, %v847
    %v849 = vpop.f32.mrb[0].mxu0
    %v850 = vpop.f32.mrb[0].mxu0
    %v851 = vadd.f32 0.0, %v850
    %v852 = vpop.f32.mrb[0].mxu0
    %853 = vmatprep.mubr.bf16.mxu0 0
    %854 = vmatmul.mubr.bf16.gmra.mrb[0].mxu0 %v676
    %v855 = vpop.f32.mrb[0].mxu0
    %v856 = vadd.f32 0.0, %v855
    %v857 = vpop.f32.mrb[0].mxu0
    %v858 = vpop.f32.mrb[0].mxu0
    %v859 = vadd.f32 0.0, %v858
    %v860 = vpop.f32.mrb[0].mxu0
    %861 = vmatprep.mubr.bf16.mxu0 0
    %862 = vmatmul.mubr.bf16.gmra.mrb[0].mxu0 %v679
    %v863 = vpop.f32.mrb[0].mxu0
    %v864 = vadd.f32 0.0, %v863
    %v865 = vpop.f32.mrb[0].mxu0
    %v866 = vpop.f32.mrb[0].mxu0
    %v867 = vadd.f32 0.0, %v866
    %v868 = vpop.f32.mrb[0].mxu0
    %869 = vmatprep.mubr.bf16.mxu0 0
    %870 = vmatmul.mubr.bf16.gmra.mrb[0].mxu0 %v682
    %v871 = vpop.f32.mrb[0].mxu0
    %v872 = vadd.f32 0.0, %v871
    %v873 = vpop.f32.mrb[0].mxu0
    %v874 = vpop.f32.mrb[0].mxu0
    %v875 = vadd.f32 0.0, %v874
    %v876 = vpop.f32.mrb[0].mxu0
    %877 = vmatprep.mubr.bf16.mxu0 0
    %878 = vmatmul.mubr.bf16.gmra.mrb[0].mxu0 %v685
    %v879 = vpop.f32.mrb[0].mxu0
    %v880 = vadd.f32 0.0, %v879
    %v881 = vpop.f32.mrb[0].mxu0
    %v882 = vpop.f32.mrb[0].mxu0
    %v883 = vadd.f32 0.0, %v882
    %v884 = vpop.f32.mrb[0].mxu0
    %885 = vmatprep.mubr.bf16.mxu0 0
    %886 = vmatmul.mubr.bf16.gmra.mrb[0].mxu0 %v688
    %v887 = vpop.f32.mrb[0].mxu0
    %v888 = vadd.f32 0.0, %v887
    %v889 = vpop.f32.mrb[0].mxu0
    %v890 = vpop.f32.mrb[0].mxu0
    %v891 = vadd.f32 0.0, %v890
    %v892 = vpop.f32.mrb[0].mxu0
    %893 = vmatprep.mubr.bf16.mxu0 0
    %894 = vmatmul.mubr.bf16.gmra.mrb[0].mxu0 %v691
    %v895 = vpop.f32.mrb[0].mxu0
    %v896 = vadd.f32 0.0, %v895
    %v897 = vpop.f32.mrb[0].mxu0
    %v898 = vpop.f32.mrb[0].mxu0
    %v899 = vadd.f32 0.0, %v898
    %v900 = vpop.f32.mrb[0].mxu0
    %901 = vmatprep.mubr.bf16.mxu0 0
    %902 = vmatmul.mubr.bf16.gmra.mrb[0].mxu0 %v694
    %v903 = vpop.f32.mrb[0].mxu0
    %v904 = vadd.f32 0.0, %v903
    %v905 = vpop.f32.mrb[0].mxu0
    %v906 = vpop.f32.mrb[0].mxu0
    %v907 = vadd.f32 0.0, %v906
    %v908 = vpop.f32.mrb[0].mxu0
    %909 = vmatprep.mubr.bf16.mxu0 0
    %910 = vmatmul.mubr.bf16.gmra.mrb[0].mxu0 %v697
    %v911 = vpop.f32.mrb[0].mxu0
    %v912 = vadd.f32 0.0, %v911
    %v913 = vpop.f32.mrb[0].mxu0
    %v914 = vpop.f32.mrb[0].mxu0
    %v915 = vadd.f32 0.0, %v914
    %v916 = vpop.f32.mrb[0].mxu0
    %917 = vmatprep.mubr.bf16.mxu0 0
    %918 = vmatmul.mubr.bf16.gmra.mrb[0].mxu0 %v700
    %v919 = vpop.f32.mrb[0].mxu0
    %v920 = vadd.f32 0.0, %v919
    %v921 = vpop.f32.mrb[0].mxu0
    %v922 = vpop.f32.mrb[0].mxu0
    %v923 = vadd.f32 0.0, %v922
    %v924 = vpop.f32.mrb[0].mxu0
    %925 = vmatprep.mubr.bf16.mxu0 0
    %926 = vmatmul.mubr.bf16.gmra.mrb[0].mxu0 %v703
    %v927 = vpop.f32.mrb[0].mxu0
    %v928 = vadd.f32 0.0, %v927
    %v929 = vpop.f32.mrb[0].mxu0
    %v930 = vpop.f32.mrb[0].mxu0
    %v931 = vadd.f32 0.0, %v930
    %v932 = vpop.f32.mrb[0].mxu0
    %933 = vmatprep.mubr.bf16.mxu0 0
    %934 = vmatmul.mubr.bf16.gmra.mrb[0].mxu0 %v706
    %v935 = vpop.f32.mrb[0].mxu0
    %v936 = vadd.f32 0.0, %v935
    %v937 = vpop.f32.mrb[0].mxu0
    %v938 = vpop.f32.mrb[0].mxu0
    %v939 = vadd.f32 0.0, %v938
    %v940 = vpop.f32.mrb[0].mxu0
    %941 = vmatprep.mubr.bf16.mxu0 0
    %942 = vmatmul.mubr.bf16.gmra.mrb[0].mxu0 %v709
    %v943 = vpop.f32.mrb[0].mxu0
    %v944 = vadd.f32 0.0, %v943
    %v945 = vpop.f32.mrb[0].mxu0
    %v946 = vpop.f32.mrb[0].mxu0
    %v947 = vadd.f32 0.0, %v946
    %v948 = vpop.f32.mrb[0].mxu0
    %949 = vmatprep.mubr.bf16.mxu0 0
    %950 = vmatmul.mubr.bf16.gmra.mrb[0].mxu0 %v712
    %v951 = vpop.f32.mrb[0].mxu0
    %v952 = vadd.f32 0.0, %v951
    %v953 = vpop.f32.mrb[0].mxu0
    %v954 = vpop.f32.mrb[0].mxu0
    %v955 = vadd.f32 0.0, %v954
    %v956 = vpop.f32.mrb[0].mxu0
    %957 = vmatprep.mubr.bf16.mxu0 0
    %958 = vmatmul.mubr.bf16.gmra.mrb[0].mxu0 %v715
    %v959 = vpop.f32.mrb[0].mxu0
    %v960 = vadd.f32 0.0, %v959
    %v961 = vpop.f32.mrb[0].mxu0
    %v962 = vpop.f32.mrb[0].mxu0
    %v963 = vadd.f32 0.0, %v962
    %v964 = vpop.f32.mrb[0].mxu0
    %965 = vmatprep.mubr.bf16.mxu0 0
    %966 = vmatmul.mubr.bf16.gmra.mrb[0].mxu0 %v718
    %v967 = vpop.f32.mrb[0].mxu0
    %v968 = vadd.f32 0.0, %v967
    %v969 = vpop.f32.mrb[0].mxu0
    %v970 = vpop.f32.mrb[0].mxu0
    %v971 = vadd.f32 0.0, %v970
    %v972 = vpop.f32.mrb[0].mxu0
    %973 = vmatprep.mubr.bf16.mxu0 0
    %974 = vmatmul.mubr.bf16.gmra.mrb[0].mxu0 %v721
    %v975 = vpop.f32.mrb[0].mxu0
    %v976 = vadd.f32 0.0, %v975
    %v977 = vpop.f32.mrb[0].mxu0
    %v978 = vpop.f32.mrb[0].mxu0
    %v979 = vadd.f32 0.0, %v978
    %v980 = vpop.f32.mrb[0].mxu0
    %981 = vmatprep.mubr.bf16.mxu0 0
    %982 = vmatmul.mubr.bf16.gmra.mrb[0].mxu0 %v724
    %v983 = vpop.f32.mrb[0].mxu0
    %v984 = vadd.f32 0.0, %v983
    %v985 = vpop.f32.mrb[0].mxu0
    %v986 = vpop.f32.mrb[0].mxu0
    %v987 = vadd.f32 0.0, %v986
    %v988 = vpop.f32.mrb[0].mxu0
    %989 = vmatprep.mubr.bf16.mxu0 0
    %990 = vmatmul.mubr.bf16.gmra.mrb[0].mxu0 %v727
    %v991 = vpop.f32.mrb[0].mxu0
    %v992 = vadd.f32 0.0, %v991
    %v993 = vpop.f32.mrb[0].mxu0
    %v994 = vpop.f32.mrb[0].mxu0
    %v995 = vadd.f32 0.0, %v994
    %v996 = vpop.f32.mrb[0].mxu0
    %997 = vmatprep.mubr.bf16.mxu0 0
    %998 = vmatmul.mubr.bf16.gmra.mrb[0].mxu0 %v730
    %v999 = vpop.f32.mrb[0].mxu0
    %v1000 = vadd.f32 0.0, %v999
    %v1001 = vpop.f32.mrb[0].mxu0
    %v1002 = vpop.f32.mrb[0].mxu0
    %v1003 = vadd.f32 0.0, %v1002
    %v1004 = vpop.f32.mrb[0].mxu0
    %1005 = vmatprep.mubr.bf16.mxu0 0
    %1006 = vmatmul.mubr.bf16.gmra.mrb[0].mxu0 %v733
    %v1007 = vpop.f32.mrb[0].mxu0
    %v1008 = vadd.f32 0.0, %v1007
    %v1009 = vpop.f32.mrb[0].mxu0
    %v1010 = vpop.f32.mrb[0].mxu0
    %v1011 = vadd.f32 0.0, %v1010
    %v1012 = vpop.f32.mrb[0].mxu0
    %1013 = vmatprep.mubr.bf16.mxu0 0
    %1014 = vmatmul.mubr.bf16.gmra.mrb[0].mxu0 %v736
    %v1015 = vpop.f32.mrb[0].mxu0
    %v1016 = vadd.f32 0.0, %v1015
    %v1017 = vpop.f32.mrb[0].mxu0
    %v1018 = vpop.f32.mrb[0].mxu0
    %v1019 = vadd.f32 0.0, %v1018
    %v1020 = vpop.f32.mrb[0].mxu0
    %1021 = vmatprep.mubr.bf16.mxu0 0
    %1022 = vmatmul.mubr.bf16.gmra.mrb[0].mxu0 %v739
    %v1023 = vpop.f32.mrb[0].mxu0
    %v1024 = vadd.f32 0.0, %v1023
    %v1025 = vpop.f32.mrb[0].mxu0
    %v1026 = vpop.f32.mrb[0].mxu0
    %v1027 = vadd.f32 0.0, %v1026
    %v1028 = vpop.f32.mrb[0].mxu0
    %1029 = vdwg.mxu0
    %v1030 = vld [vmem:[%s5] sm:$0x1]
    %v1032 = vlaneseq
    %v1033 = vshrl.u32 %v1032, 7
    %v1034 = vsub.s32 0, %v1033
    %v1035 = vrot.slane %v1030, %v1034
    %v1037 = vadd.f32 %v776, %v1035
    %v1038 = vadd.f32 %v779, %v1035
    %v1039 = vadd.f32 %v784, %v1035
    %v1040 = vadd.f32 %v787, %v1035
    %v1041 = vadd.f32 %v792, %v1035
    %v1042 = vadd.f32 %v795, %v1035
    %v1043 = vadd.f32 %v800, %v1035
    %v1044 = vadd.f32 %v803, %v1035
    %v1045 = vadd.f32 %v808, %v1035
    %v1046 = vadd.f32 %v811, %v1035
    %v1047 = vadd.f32 %v816, %v1035
    %v1048 = vadd.f32 %v819, %v1035
    %v1049 = vadd.f32 %v824, %v1035
    %v1050 = vadd.f32 %v827, %v1035
    %v1051 = vadd.f32 %v832, %v1035
    %v1052 = vadd.f32 %v835, %v1035
    %v1053 = vadd.f32 %v840, %v1035
    %v1054 = vadd.f32 %v843, %v1035
    %v1055 = vadd.f32 %v848, %v1035
    %v1056 = vadd.f32 %v851, %v1035
    %v1057 = vadd.f32 %v856, %v1035
    %v1058 = vadd.f32 %v859, %v1035
    %v1059 = vadd.f32 %v864, %v1035
    %v1060 = vadd.f32 %v867, %v1035
    %v1061 = vadd.f32 %v872, %v1035
    %v1062 = vadd.f32 %v875, %v1035
    %v1063 = vadd.f32 %v880, %v1035
    %v1064 = vadd.f32 %v883, %v1035
    %v1065 = vadd.f32 %v888, %v1035
    %v1066 = vadd.f32 %v891, %v1035
    %v1067 = vadd.f32 %v896, %v1035
    %v1068 = vadd.f32 %v899, %v1035
    %v1069 = vadd.f32 %v904, %v1035
    %v1070 = vadd.f32 %v907, %v1035
    %v1071 = vadd.f32 %v912, %v1035
    %v1072 = vadd.f32 %v915, %v1035
    %v1073 = vadd.f32 %v920, %v1035
    %v1074 = vadd.f32 %v923, %v1035
    %v1075 = vadd.f32 %v928, %v1035
    %v1076 = vadd.f32 %v931, %v1035
    %v1077 = vadd.f32 %v936, %v1035
    %v1078 = vadd.f32 %v939, %v1035
    %v1079 = vadd.f32 %v944, %v1035
    %v1080 = vadd.f32 %v947, %v1035
    %v1081 = vadd.f32 %v952, %v1035
    %v1082 = vadd.f32 %v955, %v1035
    %v1083 = vadd.f32 %v960, %v1035
    %v1084 = vadd.f32 %v963, %v1035
    %v1085 = vadd.f32 %v968, %v1035
    %v1086 = vadd.f32 %v971, %v1035
    %v1087 = vadd.f32 %v976, %v1035
    %v1088 = vadd.f32 %v979, %v1035
    %v1089 = vadd.f32 %v984, %v1035
    %v1090 = vadd.f32 %v987, %v1035
    %v1091 = vadd.f32 %v992, %v1035
    %v1092 = vadd.f32 %v995, %v1035
    %v1093 = vadd.f32 %v1000, %v1035
    %v1094 = vadd.f32 %v1003, %v1035
    %v1095 = vadd.f32 %v1008, %v1035
    %v1096 = vadd.f32 %v1011, %v1035
    %v1097 = vadd.f32 %v1016, %v1035
    %v1098 = vadd.f32 %v1019, %v1035
    %v1099 = vadd.f32 %v1024, %v1035
    %v1100 = vadd.f32 %v1027, %v1035
    %1165 = vrot.lane.b32.xlu0 %v776, 16
    %v1166 = vpop.permute.xlu0 %1165
    %1167 = vrot.lane.b32.xlu0 %v779, 16
    %v1168 = vpop.permute.xlu0 %1167
    %1169 = vrot.lane.b32.xlu0 %v784, 16
    %v1170 = vpop.permute.xlu0 %1169
    %1171 = vrot.lane.b32.xlu0 %v787, 16
    %v1172 = vpop.permute.xlu0 %1171
    %1173 = vrot.lane.b32.xlu0 %v792, 16
    %v1174 = vpop.permute.xlu0 %1173
    %1175 = vrot.lane.b32.xlu0 %v795, 16
    %v1176 = vpop.permute.xlu0 %1175
    %1177 = vrot.lane.b32.xlu0 %v800, 16
    %v1178 = vpop.permute.xlu0 %1177
    %1179 = vrot.lane.b32.xlu0 %v803, 16
    %v1180 = vpop.permute.xlu0 %1179
    %1181 = vrot.lane.b32.xlu0 %v808, 16
    %v1182 = vpop.permute.xlu0 %1181
    %1183 = vrot.lane.b32.xlu0 %v811, 16
    %v1184 = vpop.permute.xlu0 %1183
    %1185 = vrot.lane.b32.xlu0 %v816, 16
    %v1186 = vpop.permute.xlu0 %1185
    %1187 = vrot.lane.b32.xlu0 %v819, 16
    %v1188 = vpop.permute.xlu0 %1187
    %1189 = vrot.lane.b32.xlu0 %v824, 16
    %v1190 = vpop.permute.xlu0 %1189
    %1191 = vrot.lane.b32.xlu0 %v827, 16
    %v1192 = vpop.permute.xlu0 %1191
    %1193 = vrot.lane.b32.xlu0 %v832, 16
    %v1194 = vpop.permute.xlu0 %1193
    %1195 = vrot.lane.b32.xlu0 %v835, 16
    %v1196 = vpop.permute.xlu0 %1195
    %1197 = vrot.lane.b32.xlu0 %v840, 16
    %v1198 = vpop.permute.xlu0 %1197
    %1199 = vrot.lane.b32.xlu0 %v843, 16
    %v1200 = vpop.permute.xlu0 %1199
    %1201 = vrot.lane.b32.xlu0 %v848, 16
    %v1202 = vpop.permute.xlu0 %1201
    %1203 = vrot.lane.b32.xlu0 %v851, 16
    %v1204 = vpop.permute.xlu0 %1203
    %1205 = vrot.lane.b32.xlu0 %v856, 16
    %v1206 = vpop.permute.xlu0 %1205
    %1207 = vrot.lane.b32.xlu0 %v859, 16
    %v1208 = vpop.permute.xlu0 %1207
    %1209 = vrot.lane.b32.xlu0 %v864, 16
    %v1210 = vpop.permute.xlu0 %1209
    %1211 = vrot.lane.b32.xlu0 %v867, 16
    %v1212 = vpop.permute.xlu0 %1211
    %1213 = vrot.lane.b32.xlu0 %v872, 16
    %v1214 = vpop.permute.xlu0 %1213
    %1215 = vrot.lane.b32.xlu0 %v875, 16
    %v1216 = vpop.permute.xlu0 %1215
    %1217 = vrot.lane.b32.xlu0 %v880, 16
    %v1218 = vpop.permute.xlu0 %1217
    %1219 = vrot.lane.b32.xlu0 %v883, 16
    %v1220 = vpop.permute.xlu0 %1219
    %1221 = vrot.lane.b32.xlu0 %v888, 16
    %v1222 = vpop.permute.xlu0 %1221
    %1223 = vrot.lane.b32.xlu0 %v891, 16
    %v1224 = vpop.permute.xlu0 %1223
    %1225 = vrot.lane.b32.xlu0 %v896, 16
    %v1226 = vpop.permute.xlu0 %1225
    %1227 = vrot.lane.b32.xlu0 %v899, 16
    %v1228 = vpop.permute.xlu0 %1227
    %1229 = vrot.lane.b32.xlu0 %v904, 16
    %v1230 = vpop.permute.xlu0 %1229
    %1231 = vrot.lane.b32.xlu0 %v907, 16
    %v1232 = vpop.permute.xlu0 %1231
    %1233 = vrot.lane.b32.xlu0 %v912, 16
    %v1234 = vpop.permute.xlu0 %1233
    %1235 = vrot.lane.b32.xlu0 %v915, 16
    %v1236 = vpop.permute.xlu0 %1235
    %1237 = vrot.lane.b32.xlu0 %v920, 16
    %v1238 = vpop.permute.xlu0 %1237
    %1239 = vrot.lane.b32.xlu0 %v923, 16
    %v1240 = vpop.permute.xlu0 %1239
    %1241 = vrot.lane.b32.xlu0 %v928, 16
    %v1242 = vpop.permute.xlu0 %1241
    %1243 = vrot.lane.b32.xlu0 %v931, 16
    %v1244 = vpop.permute.xlu0 %1243
    %1245 = vrot.lane.b32.xlu0 %v936, 16
    %v1246 = vpop.permute.xlu0 %1245
    %1247 = vrot.lane.b32.xlu0 %v939, 16
    %v1248 = vpop.permute.xlu0 %1247
    %1249 = vrot.lane.b32.xlu0 %v944, 16
    %v1250 = vpop.permute.xlu0 %1249
    %1251 = vrot.lane.b32.xlu0 %v947, 16
    %v1252 = vpop.permute.xlu0 %1251
    %1253 = vrot.lane.b32.xlu0 %v952, 16
    %v1254 = vpop.permute.xlu0 %1253
    %1255 = vrot.lane.b32.xlu0 %v955, 16
    %v1256 = vpop.permute.xlu0 %1255
    %1257 = vrot.lane.b32.xlu0 %v960, 16
    %v1258 = vpop.permute.xlu0 %1257
    %1259 = vrot.lane.b32.xlu0 %v963, 16
    %v1260 = vpop.permute.xlu0 %1259
    %1261 = vrot.lane.b32.xlu0 %v968, 16
    %v1262 = vpop.permute.xlu0 %1261
    %1263 = vrot.lane.b32.xlu0 %v971, 16
    %v1264 = vpop.permute.xlu0 %1263
    %1265 = vrot.lane.b32.xlu0 %v976, 16
    %v1266 = vpop.permute.xlu0 %1265
    %1267 = vrot.lane.b32.xlu0 %v979, 16
    %v1268 = vpop.permute.xlu0 %1267
    %1269 = vrot.lane.b32.xlu0 %v984, 16
    %v1270 = vpop.permute.xlu0 %1269
    %1271 = vrot.lane.b32.xlu0 %v987, 16
    %v1272 = vpop.permute.xlu0 %1271
    %1273 = vrot.lane.b32.xlu0 %v992, 16
    %v1274 = vpop.permute.xlu0 %1273
    %1275 = vrot.lane.b32.xlu0 %v995, 16
    %v1276 = vpop.permute.xlu0 %1275
    %1277 = vrot.lane.b32.xlu0 %v1000, 16
    %v1278 = vpop.permute.xlu0 %1277
    %1279 = vrot.lane.b32.xlu0 %v1003, 16
    %v1280 = vpop.permute.xlu0 %1279
    %1281 = vrot.lane.b32.xlu0 %v1008, 16
    %v1282 = vpop.permute.xlu0 %1281
    %1283 = vrot.lane.b32.xlu0 %v1011, 16
    %v1284 = vpop.permute.xlu0 %1283
    %1285 = vrot.lane.b32.xlu0 %v1016, 16
    %v1286 = vpop.permute.xlu0 %1285
    %1287 = vrot.lane.b32.xlu0 %v1019, 16
    %v1288 = vpop.permute.xlu0 %1287
    %1289 = vrot.lane.b32.xlu0 %v1024, 16
    %v1290 = vpop.permute.xlu0 %1289
    %1291 = vrot.lane.b32.xlu0 %v1027, 16
    %v1292 = vpop.permute.xlu0 %1291
    %v1357 = vadd.f32 %v279, %v1166
    %v1358 = vadd.f32 %v282, %v1168
    %v1359 = vadd.f32 %v287, %v1170
    %v1360 = vadd.f32 %v290, %v1172
    %v1361 = vadd.f32 %v295, %v1174
    %v1362 = vadd.f32 %v298, %v1176
    %v1363 = vadd.f32 %v303, %v1178
    %v1364 = vadd.f32 %v306, %v1180
    %v1365 = vadd.f32 %v311, %v1182
    %v1366 = vadd.f32 %v314, %v1184
    %v1367 = vadd.f32 %v319, %v1186
    %v1368 = vadd.f32 %v322, %v1188
    %v1369 = vadd.f32 %v327, %v1190
    %v1370 = vadd.f32 %v330, %v1192
    %v1371 = vadd.f32 %v335, %v1194
    %v1372 = vadd.f32 %v338, %v1196
    %v1373 = vadd.f32 %v343, %v1198
    %v1374 = vadd.f32 %v346, %v1200
    %v1375 = vadd.f32 %v351, %v1202
    %v1376 = vadd.f32 %v354, %v1204
    %v1377 = vadd.f32 %v359, %v1206
    %v1378 = vadd.f32 %v362, %v1208
    %v1379 = vadd.f32 %v367, %v1210
    %v1380 = vadd.f32 %v370, %v1212
    %v1381 = vadd.f32 %v375, %v1214
    %v1382 = vadd.f32 %v378, %v1216
    %v1383 = vadd.f32 %v383, %v1218
    %v1384 = vadd.f32 %v386, %v1220
    %v1385 = vadd.f32 %v391, %v1222
    %v1386 = vadd.f32 %v394, %v1224
    %v1387 = vadd.f32 %v399, %v1226
    %v1388 = vadd.f32 %v402, %v1228
    %v1389 = vadd.f32 %v407, %v1230
    %v1390 = vadd.f32 %v410, %v1232
    %v1391 = vadd.f32 %v415, %v1234
    %v1392 = vadd.f32 %v418, %v1236
    %v1393 = vadd.f32 %v423, %v1238
    %v1394 = vadd.f32 %v426, %v1240
    %v1395 = vadd.f32 %v431, %v1242
    %v1396 = vadd.f32 %v434, %v1244
    %v1397 = vadd.f32 %v439, %v1246
    %v1398 = vadd.f32 %v442, %v1248
    %v1399 = vadd.f32 %v447, %v1250
    %v1400 = vadd.f32 %v450, %v1252
    %v1401 = vadd.f32 %v455, %v1254
    %v1402 = vadd.f32 %v458, %v1256
    %v1403 = vadd.f32 %v463, %v1258
    %v1404 = vadd.f32 %v466, %v1260
    %v1405 = vadd.f32 %v471, %v1262
    %v1406 = vadd.f32 %v474, %v1264
    %v1407 = vadd.f32 %v479, %v1266
    %v1408 = vadd.f32 %v482, %v1268
    %v1409 = vadd.f32 %v487, %v1270
    %v1410 = vadd.f32 %v490, %v1272
    %v1411 = vadd.f32 %v495, %v1274
    %v1412 = vadd.f32 %v498, %v1276
    %v1413 = vadd.f32 %v503, %v1278
    %v1414 = vadd.f32 %v506, %v1280
    %v1415 = vadd.f32 %v511, %v1282
    %v1416 = vadd.f32 %v514, %v1284
    %v1417 = vadd.f32 %v519, %v1286
    %v1418 = vadd.f32 %v522, %v1288
    %v1419 = vadd.f32 %v527, %v1290
    %v1420 = vadd.f32 %v530, %v1292
    %v1421 = vmax.f32 %v1357, 0.0
    %v1422 = vmax.f32 %v1358, 0.0
    %v1423 = vmax.f32 %v1359, 0.0
    %v1424 = vmax.f32 %v1360, 0.0
    %v1425 = vmax.f32 %v1361, 0.0
    %v1426 = vmax.f32 %v1362, 0.0
    %v1427 = vmax.f32 %v1363, 0.0
    %v1428 = vmax.f32 %v1364, 0.0
    %v1429 = vmax.f32 %v1365, 0.0
    %v1430 = vmax.f32 %v1366, 0.0
    %v1431 = vmax.f32 %v1367, 0.0
    %v1432 = vmax.f32 %v1368, 0.0
    %v1433 = vmax.f32 %v1369, 0.0
    %v1434 = vmax.f32 %v1370, 0.0
    %v1435 = vmax.f32 %v1371, 0.0
    %v1436 = vmax.f32 %v1372, 0.0
    %v1437 = vmax.f32 %v1373, 0.0
    %v1438 = vmax.f32 %v1374, 0.0
    %v1439 = vmax.f32 %v1375, 0.0
    %v1440 = vmax.f32 %v1376, 0.0
    %v1441 = vmax.f32 %v1377, 0.0
    %v1442 = vmax.f32 %v1378, 0.0
    %v1443 = vmax.f32 %v1379, 0.0
    %v1444 = vmax.f32 %v1380, 0.0
    %v1445 = vmax.f32 %v1381, 0.0
    %v1446 = vmax.f32 %v1382, 0.0
    %v1447 = vmax.f32 %v1383, 0.0
    %v1448 = vmax.f32 %v1384, 0.0
    %v1449 = vmax.f32 %v1385, 0.0
    %v1450 = vmax.f32 %v1386, 0.0
    %v1451 = vmax.f32 %v1387, 0.0
    %v1452 = vmax.f32 %v1388, 0.0
    %v1453 = vmax.f32 %v1389, 0.0
    %v1454 = vmax.f32 %v1390, 0.0
    %v1455 = vmax.f32 %v1391, 0.0
    %v1456 = vmax.f32 %v1392, 0.0
    %v1457 = vmax.f32 %v1393, 0.0
    %v1458 = vmax.f32 %v1394, 0.0
    %v1459 = vmax.f32 %v1395, 0.0
    %v1460 = vmax.f32 %v1396, 0.0
    %v1461 = vmax.f32 %v1397, 0.0
    %v1462 = vmax.f32 %v1398, 0.0
    %v1463 = vmax.f32 %v1399, 0.0
    %v1464 = vmax.f32 %v1400, 0.0
    %v1465 = vmax.f32 %v1401, 0.0
    %v1466 = vmax.f32 %v1402, 0.0
    %v1467 = vmax.f32 %v1403, 0.0
    %v1468 = vmax.f32 %v1404, 0.0
    %v1469 = vmax.f32 %v1405, 0.0
    %v1470 = vmax.f32 %v1406, 0.0
    %v1471 = vmax.f32 %v1407, 0.0
    %v1472 = vmax.f32 %v1408, 0.0
    %v1473 = vmax.f32 %v1409, 0.0
    %v1474 = vmax.f32 %v1410, 0.0
    %v1475 = vmax.f32 %v1411, 0.0
    %v1476 = vmax.f32 %v1412, 0.0
    %v1477 = vmax.f32 %v1413, 0.0
    %v1478 = vmax.f32 %v1414, 0.0
    %v1479 = vmax.f32 %v1415, 0.0
    %v1480 = vmax.f32 %v1416, 0.0
    %v1481 = vmax.f32 %v1417, 0.0
    %v1482 = vmax.f32 %v1418, 0.0
    %v1483 = vmax.f32 %v1419, 0.0
    %v1484 = vmax.f32 %v1420, 0.0
    %v1485 = vld [vmem:[%s6] sm:$0x1]
    %v1487 = vlaneseq
    %v1488 = vshrl.u32 %v1487, 7
    %v1489 = vsub.s32 0, %v1488
    %v1490 = vrot.slane %v1485, %v1489
    %1491 = vrot.lane.b32.xlu0 %v1490, 32
    %v1492 = vpop.permute.xlu0 %1491
    %v1494 = vmul.f32 %v1421, %v1492
    %v1495 = vmul.f32 %v1422, %v1492
    %v1496 = vmul.f32 %v1423, %v1492
    %v1497 = vmul.f32 %v1424, %v1492
    %v1498 = vmul.f32 %v1425, %v1492
    %v1499 = vmul.f32 %v1426, %v1492
    %v1500 = vmul.f32 %v1427, %v1492
    %v1501 = vmul.f32 %v1428, %v1492
    %v1502 = vmul.f32 %v1429, %v1492
    %v1503 = vmul.f32 %v1430, %v1492
    %v1504 = vmul.f32 %v1431, %v1492
    %v1505 = vmul.f32 %v1432, %v1492
    %v1506 = vmul.f32 %v1433, %v1492
    %v1507 = vmul.f32 %v1434, %v1492
    %v1508 = vmul.f32 %v1435, %v1492
    %v1509 = vmul.f32 %v1436, %v1492
    %v1510 = vmul.f32 %v1437, %v1492
    %v1511 = vmul.f32 %v1438, %v1492
    %v1512 = vmul.f32 %v1439, %v1492
    %v1513 = vmul.f32 %v1440, %v1492
    %v1514 = vmul.f32 %v1441, %v1492
    %v1515 = vmul.f32 %v1442, %v1492
    %v1516 = vmul.f32 %v1443, %v1492
    %v1517 = vmul.f32 %v1444, %v1492
    %v1518 = vmul.f32 %v1445, %v1492
    %v1519 = vmul.f32 %v1446, %v1492
    %v1520 = vmul.f32 %v1447, %v1492
    %v1521 = vmul.f32 %v1448, %v1492
    %v1522 = vmul.f32 %v1449, %v1492
    %v1523 = vmul.f32 %v1450, %v1492
    %v1524 = vmul.f32 %v1451, %v1492
    %v1525 = vmul.f32 %v1452, %v1492
    %v1526 = vmul.f32 %v1453, %v1492
    %v1527 = vmul.f32 %v1454, %v1492
    %v1528 = vmul.f32 %v1455, %v1492
    %v1529 = vmul.f32 %v1456, %v1492
    %v1530 = vmul.f32 %v1457, %v1492
    %v1531 = vmul.f32 %v1458, %v1492
    %v1532 = vmul.f32 %v1459, %v1492
    %v1533 = vmul.f32 %v1460, %v1492
    %v1534 = vmul.f32 %v1461, %v1492
    %v1535 = vmul.f32 %v1462, %v1492
    %v1536 = vmul.f32 %v1463, %v1492
    %v1537 = vmul.f32 %v1464, %v1492
    %v1538 = vmul.f32 %v1465, %v1492
    %v1539 = vmul.f32 %v1466, %v1492
    %v1540 = vmul.f32 %v1467, %v1492
    %v1541 = vmul.f32 %v1468, %v1492
    %v1542 = vmul.f32 %v1469, %v1492
    %v1543 = vmul.f32 %v1470, %v1492
    %v1544 = vmul.f32 %v1471, %v1492
    %v1545 = vmul.f32 %v1472, %v1492
    %v1546 = vmul.f32 %v1473, %v1492
    %v1547 = vmul.f32 %v1474, %v1492
    %v1548 = vmul.f32 %v1475, %v1492
    %v1549 = vmul.f32 %v1476, %v1492
    %v1550 = vmul.f32 %v1477, %v1492
    %v1551 = vmul.f32 %v1478, %v1492
    %v1552 = vmul.f32 %v1479, %v1492
    %v1553 = vmul.f32 %v1480, %v1492
    %v1554 = vmul.f32 %v1481, %v1492
    %v1555 = vmul.f32 %v1482, %v1492
    %v1556 = vmul.f32 %v1483, %v1492
    %v1557 = vmul.f32 %v1484, %v1492
    %1622 = vrot.lane.b32.xlu0 %v1494, 96
    %v1623 = vpop.permute.xlu0 %1622
    %1624 = vrot.lane.b32.xlu0 %v1495, 96
    %v1625 = vpop.permute.xlu0 %1624
    %1626 = vrot.lane.b32.xlu0 %v1496, 96
    %v1627 = vpop.permute.xlu0 %1626
    %1628 = vrot.lane.b32.xlu0 %v1497, 96
    %v1629 = vpop.permute.xlu0 %1628
    %1630 = vrot.lane.b32.xlu0 %v1498, 96
    %v1631 = vpop.permute.xlu0 %1630
    %1632 = vrot.lane.b32.xlu0 %v1499, 96
    %v1633 = vpop.permute.xlu0 %1632
    %1634 = vrot.lane.b32.xlu0 %v1500, 96
    %v1635 = vpop.permute.xlu0 %1634
    %1636 = vrot.lane.b32.xlu0 %v1501, 96
    %v1637 = vpop.permute.xlu0 %1636
    %1638 = vrot.lane.b32.xlu0 %v1502, 96
    %v1639 = vpop.permute.xlu0 %1638
    %1640 = vrot.lane.b32.xlu0 %v1503, 96
    %v1641 = vpop.permute.xlu0 %1640
    %1642 = vrot.lane.b32.xlu0 %v1504, 96
    %v1643 = vpop.permute.xlu0 %1642
    %1644 = vrot.lane.b32.xlu0 %v1505, 96
    %v1645 = vpop.permute.xlu0 %1644
    %1646 = vrot.lane.b32.xlu0 %v1506, 96
    %v1647 = vpop.permute.xlu0 %1646
    %1648 = vrot.lane.b32.xlu0 %v1507, 96
    %v1649 = vpop.permute.xlu0 %1648
    %1650 = vrot.lane.b32.xlu0 %v1508, 96
    %v1651 = vpop.permute.xlu0 %1650
    %1652 = vrot.lane.b32.xlu0 %v1509, 96
    %v1653 = vpop.permute.xlu0 %1652
    %1654 = vrot.lane.b32.xlu0 %v1510, 96
    %v1655 = vpop.permute.xlu0 %1654
    %1656 = vrot.lane.b32.xlu0 %v1511, 96
    %v1657 = vpop.permute.xlu0 %1656
    %1658 = vrot.lane.b32.xlu0 %v1512, 96
    %v1659 = vpop.permute.xlu0 %1658
    %1660 = vrot.lane.b32.xlu0 %v1513, 96
    %v1661 = vpop.permute.xlu0 %1660
    %1662 = vrot.lane.b32.xlu0 %v1514, 96
    %v1663 = vpop.permute.xlu0 %1662
    %1664 = vrot.lane.b32.xlu0 %v1515, 96
    %v1665 = vpop.permute.xlu0 %1664
    %1666 = vrot.lane.b32.xlu0 %v1516, 96
    %v1667 = vpop.permute.xlu0 %1666
    %1668 = vrot.lane.b32.xlu0 %v1517, 96
    %v1669 = vpop.permute.xlu0 %1668
    %1670 = vrot.lane.b32.xlu0 %v1518, 96
    %v1671 = vpop.permute.xlu0 %1670
    %1672 = vrot.lane.b32.xlu0 %v1519, 96
    %v1673 = vpop.permute.xlu0 %1672
    %1674 = vrot.lane.b32.xlu0 %v1520, 96
    %v1675 = vpop.permute.xlu0 %1674
    %1676 = vrot.lane.b32.xlu0 %v1521, 96
    %v1677 = vpop.permute.xlu0 %1676
    %1678 = vrot.lane.b32.xlu0 %v1522, 96
    %v1679 = vpop.permute.xlu0 %1678
    %1680 = vrot.lane.b32.xlu0 %v1523, 96
    %v1681 = vpop.permute.xlu0 %1680
    %1682 = vrot.lane.b32.xlu0 %v1524, 96
    %v1683 = vpop.permute.xlu0 %1682
    %1684 = vrot.lane.b32.xlu0 %v1525, 96
    %v1685 = vpop.permute.xlu0 %1684
    %1686 = vrot.lane.b32.xlu0 %v1526, 96
    %v1687 = vpop.permute.xlu0 %1686
    %1688 = vrot.lane.b32.xlu0 %v1527, 96
    %v1689 = vpop.permute.xlu0 %1688
    %1690 = vrot.lane.b32.xlu0 %v1528, 96
    %v1691 = vpop.permute.xlu0 %1690
    %1692 = vrot.lane.b32.xlu0 %v1529, 96
    %v1693 = vpop.permute.xlu0 %1692
    %1694 = vrot.lane.b32.xlu0 %v1530, 96
    %v1695 = vpop.permute.xlu0 %1694
    %1696 = vrot.lane.b32.xlu0 %v1531, 96
    %v1697 = vpop.permute.xlu0 %1696
    %1698 = vrot.lane.b32.xlu0 %v1532, 96
    %v1699 = vpop.permute.xlu0 %1698
    %1700 = vrot.lane.b32.xlu0 %v1533, 96
    %v1701 = vpop.permute.xlu0 %1700
    %1702 = vrot.lane.b32.xlu0 %v1534, 96
    %v1703 = vpop.permute.xlu0 %1702
    %1704 = vrot.lane.b32.xlu0 %v1535, 96
    %v1705 = vpop.permute.xlu0 %1704
    %1706 = vrot.lane.b32.xlu0 %v1536, 96
    %v1707 = vpop.permute.xlu0 %1706
    %1708 = vrot.lane.b32.xlu0 %v1537, 96
    %v1709 = vpop.permute.xlu0 %1708
    %1710 = vrot.lane.b32.xlu0 %v1538, 96
    %v1711 = vpop.permute.xlu0 %1710
    %1712 = vrot.lane.b32.xlu0 %v1539, 96
    %v1713 = vpop.permute.xlu0 %1712
    %1714 = vrot.lane.b32.xlu0 %v1540, 96
    %v1715 = vpop.permute.xlu0 %1714
    %1716 = vrot.lane.b32.xlu0 %v1541, 96
    %v1717 = vpop.permute.xlu0 %1716
    %1718 = vrot.lane.b32.xlu0 %v1542, 96
    %v1719 = vpop.permute.xlu0 %1718
    %1720 = vrot.lane.b32.xlu0 %v1543, 96
    %v1721 = vpop.permute.xlu0 %1720
    %1722 = vrot.lane.b32.xlu0 %v1544, 96
    %v1723 = vpop.permute.xlu0 %1722
    %1724 = vrot.lane.b32.xlu0 %v1545, 96
    %v1725 = vpop.permute.xlu0 %1724
    %1726 = vrot.lane.b32.xlu0 %v1546, 96
    %v1727 = vpop.permute.xlu0 %1726
    %1728 = vrot.lane.b32.xlu0 %v1547, 96
    %v1729 = vpop.permute.xlu0 %1728
    %1730 = vrot.lane.b32.xlu0 %v1548, 96
    %v1731 = vpop.permute.xlu0 %1730
    %1732 = vrot.lane.b32.xlu0 %v1549, 96
    %v1733 = vpop.permute.xlu0 %1732
    %1734 = vrot.lane.b32.xlu0 %v1550, 96
    %v1735 = vpop.permute.xlu0 %1734
    %1736 = vrot.lane.b32.xlu0 %v1551, 96
    %v1737 = vpop.permute.xlu0 %1736
    %1738 = vrot.lane.b32.xlu0 %v1552, 96
    %v1739 = vpop.permute.xlu0 %1738
    %1740 = vrot.lane.b32.xlu0 %v1553, 96
    %v1741 = vpop.permute.xlu0 %1740
    %1742 = vrot.lane.b32.xlu0 %v1554, 96
    %v1743 = vpop.permute.xlu0 %1742
    %1744 = vrot.lane.b32.xlu0 %v1555, 96
    %v1745 = vpop.permute.xlu0 %1744
    %1746 = vrot.lane.b32.xlu0 %v1556, 96
    %v1747 = vpop.permute.xlu0 %1746
    %1748 = vrot.lane.b32.xlu0 %v1557, 96
    %v1749 = vpop.permute.xlu0 %1748
    %v1814 = vsel %vm147, %v1623, 0.0
    %1815 = vadd.xlane.f32.xlu0 %v1814
    %v1816 = vpop.xlane.xlu0 %1815
    %v1817 = vsel %vm147, %v1625, 0.0
    %1818 = vadd.xlane.f32.xlu0 %v1817
    %v1819 = vpop.xlane.xlu0 %1818
    %v1820 = vsel %vm147, %v1627, 0.0
    %1821 = vadd.xlane.f32.xlu0 %v1820
    %v1822 = vpop.xlane.xlu0 %1821
    %v1823 = vsel %vm147, %v1629, 0.0
    %1824 = vadd.xlane.f32.xlu0 %v1823
    %v1825 = vpop.xlane.xlu0 %1824
    %v1826 = vsel %vm147, %v1631, 0.0
    %1827 = vadd.xlane.f32.xlu0 %v1826
    %v1828 = vpop.xlane.xlu0 %1827
    %v1829 = vsel %vm147, %v1633, 0.0
    %1830 = vadd.xlane.f32.xlu0 %v1829
    %v1831 = vpop.xlane.xlu0 %1830
    %v1832 = vsel %vm147, %v1635, 0.0
    %1833 = vadd.xlane.f32.xlu0 %v1832
    %v1834 = vpop.xlane.xlu0 %1833
    %v1835 = vsel %vm147, %v1637, 0.0
    %1836 = vadd.xlane.f32.xlu0 %v1835
    %v1837 = vpop.xlane.xlu0 %1836
    %v1838 = vsel %vm147, %v1639, 0.0
    %1839 = vadd.xlane.f32.xlu0 %v1838
    %v1840 = vpop.xlane.xlu0 %1839
    %v1841 = vsel %vm147, %v1641, 0.0
    %1842 = vadd.xlane.f32.xlu0 %v1841
    %v1843 = vpop.xlane.xlu0 %1842
    %v1844 = vsel %vm147, %v1643, 0.0
    %1845 = vadd.xlane.f32.xlu0 %v1844
    %v1846 = vpop.xlane.xlu0 %1845
    %v1847 = vsel %vm147, %v1645, 0.0
    %1848 = vadd.xlane.f32.xlu0 %v1847
    %v1849 = vpop.xlane.xlu0 %1848
    %v1850 = vsel %vm147, %v1647, 0.0
    %1851 = vadd.xlane.f32.xlu0 %v1850
    %v1852 = vpop.xlane.xlu0 %1851
    %v1853 = vsel %vm147, %v1649, 0.0
    %1854 = vadd.xlane.f32.xlu0 %v1853
    %v1855 = vpop.xlane.xlu0 %1854
    %v1856 = vsel %vm147, %v1651, 0.0
    %1857 = vadd.xlane.f32.xlu0 %v1856
    %v1858 = vpop.xlane.xlu0 %1857
    %v1859 = vsel %vm147, %v1653, 0.0
    %1860 = vadd.xlane.f32.xlu0 %v1859
    %v1861 = vpop.xlane.xlu0 %1860
    %v1862 = vsel %vm147, %v1655, 0.0
    %1863 = vadd.xlane.f32.xlu0 %v1862
    %v1864 = vpop.xlane.xlu0 %1863
    %v1865 = vsel %vm147, %v1657, 0.0
    %1866 = vadd.xlane.f32.xlu0 %v1865
    %v1867 = vpop.xlane.xlu0 %1866
    %v1868 = vsel %vm147, %v1659, 0.0
    %1869 = vadd.xlane.f32.xlu0 %v1868
    %v1870 = vpop.xlane.xlu0 %1869
    %v1871 = vsel %vm147, %v1661, 0.0
    %1872 = vadd.xlane.f32.xlu0 %v1871
    %v1873 = vpop.xlane.xlu0 %1872
    %v1874 = vsel %vm147, %v1663, 0.0
    %1875 = vadd.xlane.f32.xlu0 %v1874
    %v1876 = vpop.xlane.xlu0 %1875
    %v1877 = vsel %vm147, %v1665, 0.0
    %1878 = vadd.xlane.f32.xlu0 %v1877
    %v1879 = vpop.xlane.xlu0 %1878
    %v1880 = vsel %vm147, %v1667, 0.0
    %1881 = vadd.xlane.f32.xlu0 %v1880
    %v1882 = vpop.xlane.xlu0 %1881
    %v1883 = vsel %vm147, %v1669, 0.0
    %1884 = vadd.xlane.f32.xlu0 %v1883
    %v1885 = vpop.xlane.xlu0 %1884
    %v1886 = vsel %vm147, %v1671, 0.0
    %1887 = vadd.xlane.f32.xlu0 %v1886
    %v1888 = vpop.xlane.xlu0 %1887
    %v1889 = vsel %vm147, %v1673, 0.0
    %1890 = vadd.xlane.f32.xlu0 %v1889
    %v1891 = vpop.xlane.xlu0 %1890
    %v1892 = vsel %vm147, %v1675, 0.0
    %1893 = vadd.xlane.f32.xlu0 %v1892
    %v1894 = vpop.xlane.xlu0 %1893
    %v1895 = vsel %vm147, %v1677, 0.0
    %1896 = vadd.xlane.f32.xlu0 %v1895
    %v1897 = vpop.xlane.xlu0 %1896
    %v1898 = vsel %vm147, %v1679, 0.0
    %1899 = vadd.xlane.f32.xlu0 %v1898
    %v1900 = vpop.xlane.xlu0 %1899
    %v1901 = vsel %vm147, %v1681, 0.0
    %1902 = vadd.xlane.f32.xlu0 %v1901
    %v1903 = vpop.xlane.xlu0 %1902
    %v1904 = vsel %vm147, %v1683, 0.0
    %1905 = vadd.xlane.f32.xlu0 %v1904
    %v1906 = vpop.xlane.xlu0 %1905
    %v1907 = vsel %vm147, %v1685, 0.0
    %1908 = vadd.xlane.f32.xlu0 %v1907
    %v1909 = vpop.xlane.xlu0 %1908
    %v1910 = vsel %vm147, %v1687, 0.0
    %1911 = vadd.xlane.f32.xlu0 %v1910
    %v1912 = vpop.xlane.xlu0 %1911
    %v1913 = vsel %vm147, %v1689, 0.0
    %1914 = vadd.xlane.f32.xlu0 %v1913
    %v1915 = vpop.xlane.xlu0 %1914
    %v1916 = vsel %vm147, %v1691, 0.0
    %1917 = vadd.xlane.f32.xlu0 %v1916
    %v1918 = vpop.xlane.xlu0 %1917
    %v1919 = vsel %vm147, %v1693, 0.0
    %1920 = vadd.xlane.f32.xlu0 %v1919
    %v1921 = vpop.xlane.xlu0 %1920
    %v1922 = vsel %vm147, %v1695, 0.0
    %1923 = vadd.xlane.f32.xlu0 %v1922
    %v1924 = vpop.xlane.xlu0 %1923
    %v1925 = vsel %vm147, %v1697, 0.0
    %1926 = vadd.xlane.f32.xlu0 %v1925
    %v1927 = vpop.xlane.xlu0 %1926
    %v1928 = vsel %vm147, %v1699, 0.0
    %1929 = vadd.xlane.f32.xlu0 %v1928
    %v1930 = vpop.xlane.xlu0 %1929
    %v1931 = vsel %vm147, %v1701, 0.0
    %1932 = vadd.xlane.f32.xlu0 %v1931
    %v1933 = vpop.xlane.xlu0 %1932
    %v1934 = vsel %vm147, %v1703, 0.0
    %1935 = vadd.xlane.f32.xlu0 %v1934
    %v1936 = vpop.xlane.xlu0 %1935
    %v1937 = vsel %vm147, %v1705, 0.0
    %1938 = vadd.xlane.f32.xlu0 %v1937
    %v1939 = vpop.xlane.xlu0 %1938
    %v1940 = vsel %vm147, %v1707, 0.0
    %1941 = vadd.xlane.f32.xlu0 %v1940
    %v1942 = vpop.xlane.xlu0 %1941
    %v1943 = vsel %vm147, %v1709, 0.0
    %1944 = vadd.xlane.f32.xlu0 %v1943
    %v1945 = vpop.xlane.xlu0 %1944
    %v1946 = vsel %vm147, %v1711, 0.0
    %1947 = vadd.xlane.f32.xlu0 %v1946
    %v1948 = vpop.xlane.xlu0 %1947
    %v1949 = vsel %vm147, %v1713, 0.0
    %1950 = vadd.xlane.f32.xlu0 %v1949
    %v1951 = vpop.xlane.xlu0 %1950
    %v1952 = vsel %vm147, %v1715, 0.0
    %1953 = vadd.xlane.f32.xlu0 %v1952
    %v1954 = vpop.xlane.xlu0 %1953
    %v1955 = vsel %vm147, %v1717, 0.0
    %1956 = vadd.xlane.f32.xlu0 %v1955
    %v1957 = vpop.xlane.xlu0 %1956
    %v1958 = vsel %vm147, %v1719, 0.0
    %1959 = vadd.xlane.f32.xlu0 %v1958
    %v1960 = vpop.xlane.xlu0 %1959
    %v1961 = vsel %vm147, %v1721, 0.0
    %1962 = vadd.xlane.f32.xlu0 %v1961
    %v1963 = vpop.xlane.xlu0 %1962
    %v1964 = vsel %vm147, %v1723, 0.0
    %1965 = vadd.xlane.f32.xlu0 %v1964
    %v1966 = vpop.xlane.xlu0 %1965
    %v1967 = vsel %vm147, %v1725, 0.0
    %1968 = vadd.xlane.f32.xlu0 %v1967
    %v1969 = vpop.xlane.xlu0 %1968
    %v1970 = vsel %vm147, %v1727, 0.0
    %1971 = vadd.xlane.f32.xlu0 %v1970
    %v1972 = vpop.xlane.xlu0 %1971
    %v1973 = vsel %vm147, %v1729, 0.0
    %1974 = vadd.xlane.f32.xlu0 %v1973
    %v1975 = vpop.xlane.xlu0 %1974
    %v1976 = vsel %vm147, %v1731, 0.0
    %1977 = vadd.xlane.f32.xlu0 %v1976
    %v1978 = vpop.xlane.xlu0 %1977
    %v1979 = vsel %vm147, %v1733, 0.0
    %1980 = vadd.xlane.f32.xlu0 %v1979
    %v1981 = vpop.xlane.xlu0 %1980
    %v1982 = vsel %vm147, %v1735, 0.0
    %1983 = vadd.xlane.f32.xlu0 %v1982
    %v1984 = vpop.xlane.xlu0 %1983
    %v1985 = vsel %vm147, %v1737, 0.0
    %1986 = vadd.xlane.f32.xlu0 %v1985
    %v1987 = vpop.xlane.xlu0 %1986
    %v1988 = vsel %vm147, %v1739, 0.0
    %1989 = vadd.xlane.f32.xlu0 %v1988
    %v1990 = vpop.xlane.xlu0 %1989
    %v1991 = vsel %vm147, %v1741, 0.0
    %1992 = vadd.xlane.f32.xlu0 %v1991
    %v1993 = vpop.xlane.xlu0 %1992
    %v1994 = vsel %vm147, %v1743, 0.0
    %1995 = vadd.xlane.f32.xlu0 %v1994
    %v1996 = vpop.xlane.xlu0 %1995
    %v1997 = vsel %vm147, %v1745, 0.0
    %1998 = vadd.xlane.f32.xlu0 %v1997
    %v1999 = vpop.xlane.xlu0 %1998
    %v2000 = vsel %vm147, %v1747, 0.0
    %2001 = vadd.xlane.f32.xlu0 %v2000
    %v2002 = vpop.xlane.xlu0 %2001
    %v2003 = vsel %vm147, %v1749, 0.0
    %2004 = vadd.xlane.f32.xlu0 %v2003
    %v2005 = vpop.xlane.xlu0 %2004
    %vm2006 = vcmask 130048
    %v2007 = vsel %vm2006, %v1037, -inf
    %2008 = vmax.xlane.f32.xlu0 %v2007
    %v2009 = vpop.xlane.xlu0 %2008
    %v2010 = vsel %vm2006, %v1038, -inf
    %2011 = vmax.xlane.f32.xlu0 %v2010
    %v2012 = vpop.xlane.xlu0 %2011
    %v2013 = vsel %vm2006, %v1039, -inf
    %2014 = vmax.xlane.f32.xlu0 %v2013
    %v2015 = vpop.xlane.xlu0 %2014
    %v2016 = vsel %vm2006, %v1040, -inf
    %2017 = vmax.xlane.f32.xlu0 %v2016
    %v2018 = vpop.xlane.xlu0 %2017
    %v2019 = vsel %vm2006, %v1041, -inf
    %2020 = vmax.xlane.f32.xlu0 %v2019
    %v2021 = vpop.xlane.xlu0 %2020
    %v2022 = vsel %vm2006, %v1042, -inf
    %2023 = vmax.xlane.f32.xlu0 %v2022
    %v2024 = vpop.xlane.xlu0 %2023
    %v2025 = vsel %vm2006, %v1043, -inf
    %2026 = vmax.xlane.f32.xlu0 %v2025
    %v2027 = vpop.xlane.xlu0 %2026
    %v2028 = vsel %vm2006, %v1044, -inf
    %2029 = vmax.xlane.f32.xlu0 %v2028
    %v2030 = vpop.xlane.xlu0 %2029
    %v2031 = vsel %vm2006, %v1045, -inf
    %2032 = vmax.xlane.f32.xlu0 %v2031
    %v2033 = vpop.xlane.xlu0 %2032
    %v2034 = vsel %vm2006, %v1046, -inf
    %2035 = vmax.xlane.f32.xlu0 %v2034
    %v2036 = vpop.xlane.xlu0 %2035
    %v2037 = vsel %vm2006, %v1047, -inf
    %2038 = vmax.xlane.f32.xlu0 %v2037
    %v2039 = vpop.xlane.xlu0 %2038
    %v2040 = vsel %vm2006, %v1048, -inf
    %2041 = vmax.xlane.f32.xlu0 %v2040
    %v2042 = vpop.xlane.xlu0 %2041
    %v2043 = vsel %vm2006, %v1049, -inf
    %2044 = vmax.xlane.f32.xlu0 %v2043
    %v2045 = vpop.xlane.xlu0 %2044
    %v2046 = vsel %vm2006, %v1050, -inf
    %2047 = vmax.xlane.f32.xlu0 %v2046
    %v2048 = vpop.xlane.xlu0 %2047
    %v2049 = vsel %vm2006, %v1051, -inf
    %2050 = vmax.xlane.f32.xlu0 %v2049
    %v2051 = vpop.xlane.xlu0 %2050
    %v2052 = vsel %vm2006, %v1052, -inf
    %2053 = vmax.xlane.f32.xlu0 %v2052
    %v2054 = vpop.xlane.xlu0 %2053
    %v2055 = vsel %vm2006, %v1053, -inf
    %2056 = vmax.xlane.f32.xlu0 %v2055
    %v2057 = vpop.xlane.xlu0 %2056
    %v2058 = vsel %vm2006, %v1054, -inf
    %2059 = vmax.xlane.f32.xlu0 %v2058
    %v2060 = vpop.xlane.xlu0 %2059
    %v2061 = vsel %vm2006, %v1055, -inf
    %2062 = vmax.xlane.f32.xlu0 %v2061
    %v2063 = vpop.xlane.xlu0 %2062
    %v2064 = vsel %vm2006, %v1056, -inf
    %2065 = vmax.xlane.f32.xlu0 %v2064
    %v2066 = vpop.xlane.xlu0 %2065
    %v2067 = vsel %vm2006, %v1057, -inf
    %2068 = vmax.xlane.f32.xlu0 %v2067
    %v2069 = vpop.xlane.xlu0 %2068
    %v2070 = vsel %vm2006, %v1058, -inf
    %2071 = vmax.xlane.f32.xlu0 %v2070
    %v2072 = vpop.xlane.xlu0 %2071
    %v2073 = vsel %vm2006, %v1059, -inf
    %2074 = vmax.xlane.f32.xlu0 %v2073
    %v2075 = vpop.xlane.xlu0 %2074
    %v2076 = vsel %vm2006, %v1060, -inf
    %2077 = vmax.xlane.f32.xlu0 %v2076
    %v2078 = vpop.xlane.xlu0 %2077
    %v2079 = vsel %vm2006, %v1061, -inf
    %2080 = vmax.xlane.f32.xlu0 %v2079
    %v2081 = vpop.xlane.xlu0 %2080
    %v2082 = vsel %vm2006, %v1062, -inf
    %2083 = vmax.xlane.f32.xlu0 %v2082
    %v2084 = vpop.xlane.xlu0 %2083
    %v2085 = vsel %vm2006, %v1063, -inf
    %2086 = vmax.xlane.f32.xlu0 %v2085
    %v2087 = vpop.xlane.xlu0 %2086
    %v2088 = vsel %vm2006, %v1064, -inf
    %2089 = vmax.xlane.f32.xlu0 %v2088
    %v2090 = vpop.xlane.xlu0 %2089
    %v2091 = vsel %vm2006, %v1065, -inf
    %2092 = vmax.xlane.f32.xlu0 %v2091
    %v2093 = vpop.xlane.xlu0 %2092
    %v2094 = vsel %vm2006, %v1066, -inf
    %2095 = vmax.xlane.f32.xlu0 %v2094
    %v2096 = vpop.xlane.xlu0 %2095
    %v2097 = vsel %vm2006, %v1067, -inf
    %2098 = vmax.xlane.f32.xlu0 %v2097
    %v2099 = vpop.xlane.xlu0 %2098
    %v2100 = vsel %vm2006, %v1068, -inf
    %2101 = vmax.xlane.f32.xlu0 %v2100
    %v2102 = vpop.xlane.xlu0 %2101
    %v2103 = vsel %vm2006, %v1069, -inf
    %2104 = vmax.xlane.f32.xlu0 %v2103
    %v2105 = vpop.xlane.xlu0 %2104
    %v2106 = vsel %vm2006, %v1070, -inf
    %2107 = vmax.xlane.f32.xlu0 %v2106
    %v2108 = vpop.xlane.xlu0 %2107
    %v2109 = vsel %vm2006, %v1071, -inf
    %2110 = vmax.xlane.f32.xlu0 %v2109
    %v2111 = vpop.xlane.xlu0 %2110
    %v2112 = vsel %vm2006, %v1072, -inf
    %2113 = vmax.xlane.f32.xlu0 %v2112
    %v2114 = vpop.xlane.xlu0 %2113
    %v2115 = vsel %vm2006, %v1073, -inf
    %2116 = vmax.xlane.f32.xlu0 %v2115
    %v2117 = vpop.xlane.xlu0 %2116
    %v2118 = vsel %vm2006, %v1074, -inf
    %2119 = vmax.xlane.f32.xlu0 %v2118
    %v2120 = vpop.xlane.xlu0 %2119
    %v2121 = vsel %vm2006, %v1075, -inf
    %2122 = vmax.xlane.f32.xlu0 %v2121
    %v2123 = vpop.xlane.xlu0 %2122
    %v2124 = vsel %vm2006, %v1076, -inf
    %2125 = vmax.xlane.f32.xlu0 %v2124
    %v2126 = vpop.xlane.xlu0 %2125
    %v2127 = vsel %vm2006, %v1077, -inf
    %2128 = vmax.xlane.f32.xlu0 %v2127
    %v2129 = vpop.xlane.xlu0 %2128
    %v2130 = vsel %vm2006, %v1078, -inf
    %2131 = vmax.xlane.f32.xlu0 %v2130
    %v2132 = vpop.xlane.xlu0 %2131
    %v2133 = vsel %vm2006, %v1079, -inf
    %2134 = vmax.xlane.f32.xlu0 %v2133
    %v2135 = vpop.xlane.xlu0 %2134
    %v2136 = vsel %vm2006, %v1080, -inf
    %2137 = vmax.xlane.f32.xlu0 %v2136
    %v2138 = vpop.xlane.xlu0 %2137
    %v2139 = vsel %vm2006, %v1081, -inf
    %2140 = vmax.xlane.f32.xlu0 %v2139
    %v2141 = vpop.xlane.xlu0 %2140
    %v2142 = vsel %vm2006, %v1082, -inf
    %2143 = vmax.xlane.f32.xlu0 %v2142
    %v2144 = vpop.xlane.xlu0 %2143
    %v2145 = vsel %vm2006, %v1083, -inf
    %2146 = vmax.xlane.f32.xlu0 %v2145
    %v2147 = vpop.xlane.xlu0 %2146
    %v2148 = vsel %vm2006, %v1084, -inf
    %2149 = vmax.xlane.f32.xlu0 %v2148
    %v2150 = vpop.xlane.xlu0 %2149
    %v2151 = vsel %vm2006, %v1085, -inf
    %2152 = vmax.xlane.f32.xlu0 %v2151
    %v2153 = vpop.xlane.xlu0 %2152
    %v2154 = vsel %vm2006, %v1086, -inf
    %2155 = vmax.xlane.f32.xlu0 %v2154
    %v2156 = vpop.xlane.xlu0 %2155
    %v2157 = vsel %vm2006, %v1087, -inf
    %2158 = vmax.xlane.f32.xlu0 %v2157
    %v2159 = vpop.xlane.xlu0 %2158
    %v2160 = vsel %vm2006, %v1088, -inf
    %2161 = vmax.xlane.f32.xlu0 %v2160
    %v2162 = vpop.xlane.xlu0 %2161
    %v2163 = vsel %vm2006, %v1089, -inf
    %2164 = vmax.xlane.f32.xlu0 %v2163
    %v2165 = vpop.xlane.xlu0 %2164
    %v2166 = vsel %vm2006, %v1090, -inf
    %2167 = vmax.xlane.f32.xlu0 %v2166
    %v2168 = vpop.xlane.xlu0 %2167
    %v2169 = vsel %vm2006, %v1091, -inf
    %2170 = vmax.xlane.f32.xlu0 %v2169
    %v2171 = vpop.xlane.xlu0 %2170
    %v2172 = vsel %vm2006, %v1092, -inf
    %2173 = vmax.xlane.f32.xlu0 %v2172
    %v2174 = vpop.xlane.xlu0 %2173
    %v2175 = vsel %vm2006, %v1093, -inf
    %2176 = vmax.xlane.f32.xlu0 %v2175
    %v2177 = vpop.xlane.xlu0 %2176
    %v2178 = vsel %vm2006, %v1094, -inf
    %2179 = vmax.xlane.f32.xlu0 %v2178
    %v2180 = vpop.xlane.xlu0 %2179
    %v2181 = vsel %vm2006, %v1095, -inf
    %2182 = vmax.xlane.f32.xlu0 %v2181
    %v2183 = vpop.xlane.xlu0 %2182
    %v2184 = vsel %vm2006, %v1096, -inf
    %2185 = vmax.xlane.f32.xlu0 %v2184
    %v2186 = vpop.xlane.xlu0 %2185
    %v2187 = vsel %vm2006, %v1097, -inf
    %2188 = vmax.xlane.f32.xlu0 %v2187
    %v2189 = vpop.xlane.xlu0 %2188
    %v2190 = vsel %vm2006, %v1098, -inf
    %2191 = vmax.xlane.f32.xlu0 %v2190
    %v2192 = vpop.xlane.xlu0 %2191
    %v2193 = vsel %vm2006, %v1099, -inf
    %2194 = vmax.xlane.f32.xlu0 %v2193
    %v2195 = vpop.xlane.xlu0 %2194
    %v2196 = vsel %vm2006, %v1100, -inf
    %2197 = vmax.xlane.f32.xlu0 %v2196
    %v2198 = vpop.xlane.xlu0 %2197
    %v2199 = vsub.f32 %v1037, %v2009
    %v2200 = vsub.f32 %v1038, %v2012
    %v2201 = vsub.f32 %v1039, %v2015
    %v2202 = vsub.f32 %v1040, %v2018
    %v2203 = vsub.f32 %v1041, %v2021
    %v2204 = vsub.f32 %v1042, %v2024
    %v2205 = vsub.f32 %v1043, %v2027
    %v2206 = vsub.f32 %v1044, %v2030
    %v2207 = vsub.f32 %v1045, %v2033
    %v2208 = vsub.f32 %v1046, %v2036
    %v2209 = vsub.f32 %v1047, %v2039
    %v2210 = vsub.f32 %v1048, %v2042
    %v2211 = vsub.f32 %v1049, %v2045
    %v2212 = vsub.f32 %v1050, %v2048
    %v2213 = vsub.f32 %v1051, %v2051
    %v2214 = vsub.f32 %v1052, %v2054
    %v2215 = vsub.f32 %v1053, %v2057
    %v2216 = vsub.f32 %v1054, %v2060
    %v2217 = vsub.f32 %v1055, %v2063
    %v2218 = vsub.f32 %v1056, %v2066
    %v2219 = vsub.f32 %v1057, %v2069
    %v2220 = vsub.f32 %v1058, %v2072
    %v2221 = vsub.f32 %v1059, %v2075
    %v2222 = vsub.f32 %v1060, %v2078
    %v2223 = vsub.f32 %v1061, %v2081
    %v2224 = vsub.f32 %v1062, %v2084
    %v2225 = vsub.f32 %v1063, %v2087
    %v2226 = vsub.f32 %v1064, %v2090
    %v2227 = vsub.f32 %v1065, %v2093
    %v2228 = vsub.f32 %v1066, %v2096
    %v2229 = vsub.f32 %v1067, %v2099
    %v2230 = vsub.f32 %v1068, %v2102
    %v2231 = vsub.f32 %v1069, %v2105
    %v2232 = vsub.f32 %v1070, %v2108
    %v2233 = vsub.f32 %v1071, %v2111
    %v2234 = vsub.f32 %v1072, %v2114
    %v2235 = vsub.f32 %v1073, %v2117
    %v2236 = vsub.f32 %v1074, %v2120
    %v2237 = vsub.f32 %v1075, %v2123
    %v2238 = vsub.f32 %v1076, %v2126
    %v2239 = vsub.f32 %v1077, %v2129
    %v2240 = vsub.f32 %v1078, %v2132
    %v2241 = vsub.f32 %v1079, %v2135
    %v2242 = vsub.f32 %v1080, %v2138
    %v2243 = vsub.f32 %v1081, %v2141
    %v2244 = vsub.f32 %v1082, %v2144
    %v2245 = vsub.f32 %v1083, %v2147
    %v2246 = vsub.f32 %v1084, %v2150
    %v2247 = vsub.f32 %v1085, %v2153
    %v2248 = vsub.f32 %v1086, %v2156
    %v2249 = vsub.f32 %v1087, %v2159
    %v2250 = vsub.f32 %v1088, %v2162
    %v2251 = vsub.f32 %v1089, %v2165
    %v2252 = vsub.f32 %v1090, %v2168
    %v2253 = vsub.f32 %v1091, %v2171
    %v2254 = vsub.f32 %v1092, %v2174
    %v2255 = vsub.f32 %v1093, %v2177
    %v2256 = vsub.f32 %v1094, %v2180
    %v2257 = vsub.f32 %v1095, %v2183
    %v2258 = vsub.f32 %v1096, %v2186
    %v2259 = vsub.f32 %v1097, %v2189
    %v2260 = vsub.f32 %v1098, %v2192
    %v2261 = vsub.f32 %v1099, %v2195
    %v2262 = vsub.f32 %v1100, %v2198
    %v2263 = vmul.f32 %v2199, 1.442695
    %v2264 = vpow.pop %v2263
    %v2265 = vmul.f32 %v2200, 1.442695
    %v2266 = vpow.pop %v2265
    %v2267 = vmul.f32 %v2201, 1.442695
    %v2268 = vpow.pop %v2267
    %v2269 = vmul.f32 %v2202, 1.442695
    %v2270 = vpow.pop %v2269
    %v2271 = vmul.f32 %v2203, 1.442695
    %v2272 = vpow.pop %v2271
    %v2273 = vmul.f32 %v2204, 1.442695
    %v2274 = vpow.pop %v2273
    %v2275 = vmul.f32 %v2205, 1.442695
    %v2276 = vpow.pop %v2275
    %v2277 = vmul.f32 %v2206, 1.442695
    %v2278 = vpow.pop %v2277
    %v2279 = vmul.f32 %v2207, 1.442695
    %v2280 = vpow.pop %v2279
    %v2281 = vmul.f32 %v2208, 1.442695
    %v2282 = vpow.pop %v2281
    %v2283 = vmul.f32 %v2209, 1.442695
    %v2284 = vpow.pop %v2283
    %v2285 = vmul.f32 %v2210, 1.442695
    %v2286 = vpow.pop %v2285
    %v2287 = vmul.f32 %v2211, 1.442695
    %v2288 = vpow.pop %v2287
    %v2289 = vmul.f32 %v2212, 1.442695
    %v2290 = vpow.pop %v2289
    %v2291 = vmul.f32 %v2213, 1.442695
    %v2292 = vpow.pop %v2291
    %v2293 = vmul.f32 %v2214, 1.442695
    %v2294 = vpow.pop %v2293
    %v2295 = vmul.f32 %v2215, 1.442695
    %v2296 = vpow.pop %v2295
    %v2297 = vmul.f32 %v2216, 1.442695
    %v2298 = vpow.pop %v2297
    %v2299 = vmul.f32 %v2217, 1.442695
    %v2300 = vpow.pop %v2299
    %v2301 = vmul.f32 %v2218, 1.442695
    %v2302 = vpow.pop %v2301
    %v2303 = vmul.f32 %v2219, 1.442695
    %v2304 = vpow.pop %v2303
    %v2305 = vmul.f32 %v2220, 1.442695
    %v2306 = vpow.pop %v2305
    %v2307 = vmul.f32 %v2221, 1.442695
    %v2308 = vpow.pop %v2307
    %v2309 = vmul.f32 %v2222, 1.442695
    %v2310 = vpow.pop %v2309
    %v2311 = vmul.f32 %v2223, 1.442695
    %v2312 = vpow.pop %v2311
    %v2313 = vmul.f32 %v2224, 1.442695
    %v2314 = vpow.pop %v2313
    %v2315 = vmul.f32 %v2225, 1.442695
    %v2316 = vpow.pop %v2315
    %v2317 = vmul.f32 %v2226, 1.442695
    %v2318 = vpow.pop %v2317
    %v2319 = vmul.f32 %v2227, 1.442695
    %v2320 = vpow.pop %v2319
    %v2321 = vmul.f32 %v2228, 1.442695
    %v2322 = vpow.pop %v2321
    %v2323 = vmul.f32 %v2229, 1.442695
    %v2324 = vpow.pop %v2323
    %v2325 = vmul.f32 %v2230, 1.442695
    %v2326 = vpow.pop %v2325
    %v2327 = vmul.f32 %v2231, 1.442695
    %v2328 = vpow.pop %v2327
    %v2329 = vmul.f32 %v2232, 1.442695
    %v2330 = vpow.pop %v2329
    %v2331 = vmul.f32 %v2233, 1.442695
    %v2332 = vpow.pop %v2331
    %v2333 = vmul.f32 %v2234, 1.442695
    %v2334 = vpow.pop %v2333
    %v2335 = vmul.f32 %v2235, 1.442695
    %v2336 = vpow.pop %v2335
    %v2337 = vmul.f32 %v2236, 1.442695
    %v2338 = vpow.pop %v2337
    %v2339 = vmul.f32 %v2237, 1.442695
    %v2340 = vpow.pop %v2339
    %v2341 = vmul.f32 %v2238, 1.442695
    %v2342 = vpow.pop %v2341
    %v2343 = vmul.f32 %v2239, 1.442695
    %v2344 = vpow.pop %v2343
    %v2345 = vmul.f32 %v2240, 1.442695
    %v2346 = vpow.pop %v2345
    %v2347 = vmul.f32 %v2241, 1.442695
    %v2348 = vpow.pop %v2347
    %v2349 = vmul.f32 %v2242, 1.442695
    %v2350 = vpow.pop %v2349
    %v2351 = vmul.f32 %v2243, 1.442695
    %v2352 = vpow.pop %v2351
    %v2353 = vmul.f32 %v2244, 1.442695
    %v2354 = vpow.pop %v2353
    %v2355 = vmul.f32 %v2245, 1.442695
    %v2356 = vpow.pop %v2355
    %v2357 = vmul.f32 %v2246, 1.442695
    %v2358 = vpow.pop %v2357
    %v2359 = vmul.f32 %v2247, 1.442695
    %v2360 = vpow.pop %v2359
    %v2361 = vmul.f32 %v2248, 1.442695
    %v2362 = vpow.pop %v2361
    %v2363 = vmul.f32 %v2249, 1.442695
    %v2364 = vpow.pop %v2363
    %v2365 = vmul.f32 %v2250, 1.442695
    %v2366 = vpow.pop %v2365
    %v2367 = vmul.f32 %v2251, 1.442695
    %v2368 = vpow.pop %v2367
    %v2369 = vmul.f32 %v2252, 1.442695
    %v2370 = vpow.pop %v2369
    %v2371 = vmul.f32 %v2253, 1.442695
    %v2372 = vpow.pop %v2371
    %v2373 = vmul.f32 %v2254, 1.442695
    %v2374 = vpow.pop %v2373
    %v2375 = vmul.f32 %v2255, 1.442695
    %v2376 = vpow.pop %v2375
    %v2377 = vmul.f32 %v2256, 1.442695
    %v2378 = vpow.pop %v2377
    %v2379 = vmul.f32 %v2257, 1.442695
    %v2380 = vpow.pop %v2379
    %v2381 = vmul.f32 %v2258, 1.442695
    %v2382 = vpow.pop %v2381
    %v2383 = vmul.f32 %v2259, 1.442695
    %v2384 = vpow.pop %v2383
    %v2385 = vmul.f32 %v2260, 1.442695
    %v2386 = vpow.pop %v2385
    %v2387 = vmul.f32 %v2261, 1.442695
    %v2388 = vpow.pop %v2387
    %v2389 = vmul.f32 %v2262, 1.442695
    %v2390 = vpow.pop %v2389
    %v2391 = vsel %vm2006, %v2264, 0.0
    %2392 = vadd.xlane.f32.xlu0 %v2391
    %v2393 = vpop.xlane.xlu0 %2392
    %v2394 = vsel %vm2006, %v2266, 0.0
    %2395 = vadd.xlane.f32.xlu0 %v2394
    %v2396 = vpop.xlane.xlu0 %2395
    %v2397 = vsel %vm2006, %v2268, 0.0
    %2398 = vadd.xlane.f32.xlu0 %v2397
    %v2399 = vpop.xlane.xlu0 %2398
    %v2400 = vsel %vm2006, %v2270, 0.0
    %2401 = vadd.xlane.f32.xlu0 %v2400
    %v2402 = vpop.xlane.xlu0 %2401
    %v2403 = vsel %vm2006, %v2272, 0.0
    %2404 = vadd.xlane.f32.xlu0 %v2403
    %v2405 = vpop.xlane.xlu0 %2404
    %v2406 = vsel %vm2006, %v2274, 0.0
    %2407 = vadd.xlane.f32.xlu0 %v2406
    %v2408 = vpop.xlane.xlu0 %2407
    %v2409 = vsel %vm2006, %v2276, 0.0
    %2410 = vadd.xlane.f32.xlu0 %v2409
    %v2411 = vpop.xlane.xlu0 %2410
    %v2412 = vsel %vm2006, %v2278, 0.0
    %2413 = vadd.xlane.f32.xlu0 %v2412
    %v2414 = vpop.xlane.xlu0 %2413
    %v2415 = vsel %vm2006, %v2280, 0.0
    %2416 = vadd.xlane.f32.xlu0 %v2415
    %v2417 = vpop.xlane.xlu0 %2416
    %v2418 = vsel %vm2006, %v2282, 0.0
    %2419 = vadd.xlane.f32.xlu0 %v2418
    %v2420 = vpop.xlane.xlu0 %2419
    %v2421 = vsel %vm2006, %v2284, 0.0
    %2422 = vadd.xlane.f32.xlu0 %v2421
    %v2423 = vpop.xlane.xlu0 %2422
    %v2424 = vsel %vm2006, %v2286, 0.0
    %2425 = vadd.xlane.f32.xlu0 %v2424
    %v2426 = vpop.xlane.xlu0 %2425
    %v2427 = vsel %vm2006, %v2288, 0.0
    %2428 = vadd.xlane.f32.xlu0 %v2427
    %v2429 = vpop.xlane.xlu0 %2428
    %v2430 = vsel %vm2006, %v2290, 0.0
    %2431 = vadd.xlane.f32.xlu0 %v2430
    %v2432 = vpop.xlane.xlu0 %2431
    %v2433 = vsel %vm2006, %v2292, 0.0
    %2434 = vadd.xlane.f32.xlu0 %v2433
    %v2435 = vpop.xlane.xlu0 %2434
    %v2436 = vsel %vm2006, %v2294, 0.0
    %2437 = vadd.xlane.f32.xlu0 %v2436
    %v2438 = vpop.xlane.xlu0 %2437
    %v2439 = vsel %vm2006, %v2296, 0.0
    %2440 = vadd.xlane.f32.xlu0 %v2439
    %v2441 = vpop.xlane.xlu0 %2440
    %v2442 = vsel %vm2006, %v2298, 0.0
    %2443 = vadd.xlane.f32.xlu0 %v2442
    %v2444 = vpop.xlane.xlu0 %2443
    %v2445 = vsel %vm2006, %v2300, 0.0
    %2446 = vadd.xlane.f32.xlu0 %v2445
    %v2447 = vpop.xlane.xlu0 %2446
    %v2448 = vsel %vm2006, %v2302, 0.0
    %2449 = vadd.xlane.f32.xlu0 %v2448
    %v2450 = vpop.xlane.xlu0 %2449
    %v2451 = vsel %vm2006, %v2304, 0.0
    %2452 = vadd.xlane.f32.xlu0 %v2451
    %v2453 = vpop.xlane.xlu0 %2452
    %v2454 = vsel %vm2006, %v2306, 0.0
    %2455 = vadd.xlane.f32.xlu0 %v2454
    %v2456 = vpop.xlane.xlu0 %2455
    %v2457 = vsel %vm2006, %v2308, 0.0
    %2458 = vadd.xlane.f32.xlu0 %v2457
    %v2459 = vpop.xlane.xlu0 %2458
    %v2460 = vsel %vm2006, %v2310, 0.0
    %2461 = vadd.xlane.f32.xlu0 %v2460
    %v2462 = vpop.xlane.xlu0 %2461
    %v2463 = vsel %vm2006, %v2312, 0.0
    %2464 = vadd.xlane.f32.xlu0 %v2463
    %v2465 = vpop.xlane.xlu0 %2464
    %v2466 = vsel %vm2006, %v2314, 0.0
    %2467 = vadd.xlane.f32.xlu0 %v2466
    %v2468 = vpop.xlane.xlu0 %2467
    %v2469 = vsel %vm2006, %v2316, 0.0
    %2470 = vadd.xlane.f32.xlu0 %v2469
    %v2471 = vpop.xlane.xlu0 %2470
    %v2472 = vsel %vm2006, %v2318, 0.0
    %2473 = vadd.xlane.f32.xlu0 %v2472
    %v2474 = vpop.xlane.xlu0 %2473
    %v2475 = vsel %vm2006, %v2320, 0.0
    %2476 = vadd.xlane.f32.xlu0 %v2475
    %v2477 = vpop.xlane.xlu0 %2476
    %v2478 = vsel %vm2006, %v2322, 0.0
    %2479 = vadd.xlane.f32.xlu0 %v2478
    %v2480 = vpop.xlane.xlu0 %2479
    %v2481 = vsel %vm2006, %v2324, 0.0
    %2482 = vadd.xlane.f32.xlu0 %v2481
    %v2483 = vpop.xlane.xlu0 %2482
    %v2484 = vsel %vm2006, %v2326, 0.0
    %2485 = vadd.xlane.f32.xlu0 %v2484
    %v2486 = vpop.xlane.xlu0 %2485
    %v2487 = vsel %vm2006, %v2328, 0.0
    %2488 = vadd.xlane.f32.xlu0 %v2487
    %v2489 = vpop.xlane.xlu0 %2488
    %v2490 = vsel %vm2006, %v2330, 0.0
    %2491 = vadd.xlane.f32.xlu0 %v2490
    %v2492 = vpop.xlane.xlu0 %2491
    %v2493 = vsel %vm2006, %v2332, 0.0
    %2494 = vadd.xlane.f32.xlu0 %v2493
    %v2495 = vpop.xlane.xlu0 %2494
    %v2496 = vsel %vm2006, %v2334, 0.0
    %2497 = vadd.xlane.f32.xlu0 %v2496
    %v2498 = vpop.xlane.xlu0 %2497
    %v2499 = vsel %vm2006, %v2336, 0.0
    %2500 = vadd.xlane.f32.xlu0 %v2499
    %v2501 = vpop.xlane.xlu0 %2500
    %v2502 = vsel %vm2006, %v2338, 0.0
    %2503 = vadd.xlane.f32.xlu0 %v2502
    %v2504 = vpop.xlane.xlu0 %2503
    %v2505 = vsel %vm2006, %v2340, 0.0
    %2506 = vadd.xlane.f32.xlu0 %v2505
    %v2507 = vpop.xlane.xlu0 %2506
    %v2508 = vsel %vm2006, %v2342, 0.0
    %2509 = vadd.xlane.f32.xlu0 %v2508
    %v2510 = vpop.xlane.xlu0 %2509
    %v2511 = vsel %vm2006, %v2344, 0.0
    %2512 = vadd.xlane.f32.xlu0 %v2511
    %v2513 = vpop.xlane.xlu0 %2512
    %v2514 = vsel %vm2006, %v2346, 0.0
    %2515 = vadd.xlane.f32.xlu0 %v2514
    %v2516 = vpop.xlane.xlu0 %2515
    %v2517 = vsel %vm2006, %v2348, 0.0
    %2518 = vadd.xlane.f32.xlu0 %v2517
    %v2519 = vpop.xlane.xlu0 %2518
    %v2520 = vsel %vm2006, %v2350, 0.0
    %2521 = vadd.xlane.f32.xlu0 %v2520
    %v2522 = vpop.xlane.xlu0 %2521
    %v2523 = vsel %vm2006, %v2352, 0.0
    %2524 = vadd.xlane.f32.xlu0 %v2523
    %v2525 = vpop.xlane.xlu0 %2524
    %v2526 = vsel %vm2006, %v2354, 0.0
    %2527 = vadd.xlane.f32.xlu0 %v2526
    %v2528 = vpop.xlane.xlu0 %2527
    %v2529 = vsel %vm2006, %v2356, 0.0
    %2530 = vadd.xlane.f32.xlu0 %v2529
    %v2531 = vpop.xlane.xlu0 %2530
    %v2532 = vsel %vm2006, %v2358, 0.0
    %2533 = vadd.xlane.f32.xlu0 %v2532
    %v2534 = vpop.xlane.xlu0 %2533
    %v2535 = vsel %vm2006, %v2360, 0.0
    %2536 = vadd.xlane.f32.xlu0 %v2535
    %v2537 = vpop.xlane.xlu0 %2536
    %v2538 = vsel %vm2006, %v2362, 0.0
    %2539 = vadd.xlane.f32.xlu0 %v2538
    %v2540 = vpop.xlane.xlu0 %2539
    %v2541 = vsel %vm2006, %v2364, 0.0
    %2542 = vadd.xlane.f32.xlu0 %v2541
    %v2543 = vpop.xlane.xlu0 %2542
    %v2544 = vsel %vm2006, %v2366, 0.0
    %2545 = vadd.xlane.f32.xlu0 %v2544
    %v2546 = vpop.xlane.xlu0 %2545
    %v2547 = vsel %vm2006, %v2368, 0.0
    %2548 = vadd.xlane.f32.xlu0 %v2547
    %v2549 = vpop.xlane.xlu0 %2548
    %v2550 = vsel %vm2006, %v2370, 0.0
    %2551 = vadd.xlane.f32.xlu0 %v2550
    %v2552 = vpop.xlane.xlu0 %2551
    %v2553 = vsel %vm2006, %v2372, 0.0
    %2554 = vadd.xlane.f32.xlu0 %v2553
    %v2555 = vpop.xlane.xlu0 %2554
    %v2556 = vsel %vm2006, %v2374, 0.0
    %2557 = vadd.xlane.f32.xlu0 %v2556
    %v2558 = vpop.xlane.xlu0 %2557
    %v2559 = vsel %vm2006, %v2376, 0.0
    %2560 = vadd.xlane.f32.xlu0 %v2559
    %v2561 = vpop.xlane.xlu0 %2560
    %v2562 = vsel %vm2006, %v2378, 0.0
    %2563 = vadd.xlane.f32.xlu0 %v2562
    %v2564 = vpop.xlane.xlu0 %2563
    %v2565 = vsel %vm2006, %v2380, 0.0
    %2566 = vadd.xlane.f32.xlu0 %v2565
    %v2567 = vpop.xlane.xlu0 %2566
    %v2568 = vsel %vm2006, %v2382, 0.0
    %2569 = vadd.xlane.f32.xlu0 %v2568
    %v2570 = vpop.xlane.xlu0 %2569
    %v2571 = vsel %vm2006, %v2384, 0.0
    %2572 = vadd.xlane.f32.xlu0 %v2571
    %v2573 = vpop.xlane.xlu0 %2572
    %v2574 = vsel %vm2006, %v2386, 0.0
    %2575 = vadd.xlane.f32.xlu0 %v2574
    %v2576 = vpop.xlane.xlu0 %2575
    %v2577 = vsel %vm2006, %v2388, 0.0
    %2578 = vadd.xlane.f32.xlu0 %v2577
    %v2579 = vpop.xlane.xlu0 %2578
    %v2580 = vsel %vm2006, %v2390, 0.0
    %2581 = vadd.xlane.f32.xlu0 %v2580
    %v2582 = vpop.xlane.xlu0 %2581
    %v2583 = vlog2.pop %v2393
    %v2584 = vmul.f32 %v2583, 0.6931472
    %v2585 = vlog2.pop %v2396
    %v2586 = vmul.f32 %v2585, 0.6931472
    %v2587 = vlog2.pop %v2399
    %v2588 = vmul.f32 %v2587, 0.6931472
    %v2589 = vlog2.pop %v2402
    %v2590 = vmul.f32 %v2589, 0.6931472
    %v2591 = vlog2.pop %v2405
    %v2592 = vmul.f32 %v2591, 0.6931472
    %v2593 = vlog2.pop %v2408
    %v2594 = vmul.f32 %v2593, 0.6931472
    %v2595 = vlog2.pop %v2411
    %v2596 = vmul.f32 %v2595, 0.6931472
    %v2597 = vlog2.pop %v2414
    %v2598 = vmul.f32 %v2597, 0.6931472
    %v2599 = vlog2.pop %v2417
    %v2600 = vmul.f32 %v2599, 0.6931472
    %v2601 = vlog2.pop %v2420
    %v2602 = vmul.f32 %v2601, 0.6931472
    %v2603 = vlog2.pop %v2423
    %v2604 = vmul.f32 %v2603, 0.6931472
    %v2605 = vlog2.pop %v2426
    %v2606 = vmul.f32 %v2605, 0.6931472
    %v2607 = vlog2.pop %v2429
    %v2608 = vmul.f32 %v2607, 0.6931472
    %v2609 = vlog2.pop %v2432
    %v2610 = vmul.f32 %v2609, 0.6931472
    %v2611 = vlog2.pop %v2435
    %v2612 = vmul.f32 %v2611, 0.6931472
    %v2613 = vlog2.pop %v2438
    %v2614 = vmul.f32 %v2613, 0.6931472
    %v2615 = vlog2.pop %v2441
    %v2616 = vmul.f32 %v2615, 0.6931472
    %v2617 = vlog2.pop %v2444
    %v2618 = vmul.f32 %v2617, 0.6931472
    %v2619 = vlog2.pop %v2447
    %v2620 = vmul.f32 %v2619, 0.6931472
    %v2621 = vlog2.pop %v2450
    %v2622 = vmul.f32 %v2621, 0.6931472
    %v2623 = vlog2.pop %v2453
    %v2624 = vmul.f32 %v2623, 0.6931472
    %v2625 = vlog2.pop %v2456
    %v2626 = vmul.f32 %v2625, 0.6931472
    %v2627 = vlog2.pop %v2459
    %v2628 = vmul.f32 %v2627, 0.6931472
    %v2629 = vlog2.pop %v2462
    %v2630 = vmul.f32 %v2629, 0.6931472
    %v2631 = vlog2.pop %v2465
    %v2632 = vmul.f32 %v2631, 0.6931472
    %v2633 = vlog2.pop %v2468
    %v2634 = vmul.f32 %v2633, 0.6931472
    %v2635 = vlog2.pop %v2471
    %v2636 = vmul.f32 %v2635, 0.6931472
    %v2637 = vlog2.pop %v2474
    %v2638 = vmul.f32 %v2637, 0.6931472
    %v2639 = vlog2.pop %v2477
    %v2640 = vmul.f32 %v2639, 0.6931472
    %v2641 = vlog2.pop %v2480
    %v2642 = vmul.f32 %v2641, 0.6931472
    %v2643 = vlog2.pop %v2483
    %v2644 = vmul.f32 %v2643, 0.6931472
    %v2645 = vlog2.pop %v2486
    %v2646 = vmul.f32 %v2645, 0.6931472
    %v2647 = vlog2.pop %v2489
    %v2648 = vmul.f32 %v2647, 0.6931472
    %v2649 = vlog2.pop %v2492
    %v2650 = vmul.f32 %v2649, 0.6931472
    %v2651 = vlog2.pop %v2495
    %v2652 = vmul.f32 %v2651, 0.6931472
    %v2653 = vlog2.pop %v2498
    %v2654 = vmul.f32 %v2653, 0.6931472
    %v2655 = vlog2.pop %v2501
    %v2656 = vmul.f32 %v2655, 0.6931472
    %v2657 = vlog2.pop %v2504
    %v2658 = vmul.f32 %v2657, 0.6931472
    %v2659 = vlog2.pop %v2507
    %v2660 = vmul.f32 %v2659, 0.6931472
    %v2661 = vlog2.pop %v2510
    %v2662 = vmul.f32 %v2661, 0.6931472
    %v2663 = vlog2.pop %v2513
    %v2664 = vmul.f32 %v2663, 0.6931472
    %v2665 = vlog2.pop %v2516
    %v2666 = vmul.f32 %v2665, 0.6931472
    %v2667 = vlog2.pop %v2519
    %v2668 = vmul.f32 %v2667, 0.6931472
    %v2669 = vlog2.pop %v2522
    %v2670 = vmul.f32 %v2669, 0.6931472
    %v2671 = vlog2.pop %v2525
    %v2672 = vmul.f32 %v2671, 0.6931472
    %v2673 = vlog2.pop %v2528
    %v2674 = vmul.f32 %v2673, 0.6931472
    %v2675 = vlog2.pop %v2531
    %v2676 = vmul.f32 %v2675, 0.6931472
    %v2677 = vlog2.pop %v2534
    %v2678 = vmul.f32 %v2677, 0.6931472
    %v2679 = vlog2.pop %v2537
    %v2680 = vmul.f32 %v2679, 0.6931472
    %v2681 = vlog2.pop %v2540
    %v2682 = vmul.f32 %v2681, 0.6931472
    %v2683 = vlog2.pop %v2543
    %v2684 = vmul.f32 %v2683, 0.6931472
    %v2685 = vlog2.pop %v2546
    %v2686 = vmul.f32 %v2685, 0.6931472
    %v2687 = vlog2.pop %v2549
    %v2688 = vmul.f32 %v2687, 0.6931472
    %v2689 = vlog2.pop %v2552
    %v2690 = vmul.f32 %v2689, 0.6931472
    %v2691 = vlog2.pop %v2555
    %v2692 = vmul.f32 %v2691, 0.6931472
    %v2693 = vlog2.pop %v2558
    %v2694 = vmul.f32 %v2693, 0.6931472
    %v2695 = vlog2.pop %v2561
    %v2696 = vmul.f32 %v2695, 0.6931472
    %v2697 = vlog2.pop %v2564
    %v2698 = vmul.f32 %v2697, 0.6931472
    %v2699 = vlog2.pop %v2567
    %v2700 = vmul.f32 %v2699, 0.6931472
    %v2701 = vlog2.pop %v2570
    %v2702 = vmul.f32 %v2701, 0.6931472
    %v2703 = vlog2.pop %v2573
    %v2704 = vmul.f32 %v2703, 0.6931472
    %v2705 = vlog2.pop %v2576
    %v2706 = vmul.f32 %v2705, 0.6931472
    %v2707 = vlog2.pop %v2579
    %v2708 = vmul.f32 %v2707, 0.6931472
    %v2709 = vlog2.pop %v2582
    %v2710 = vmul.f32 %v2709, 0.6931472
    %v2711 = vadd.f32 %v2009, %v2584
    %v2712 = vadd.f32 %v2012, %v2586
    %v2713 = vadd.f32 %v2015, %v2588
    %v2714 = vadd.f32 %v2018, %v2590
    %v2715 = vadd.f32 %v2021, %v2592
    %v2716 = vadd.f32 %v2024, %v2594
    %v2717 = vadd.f32 %v2027, %v2596
    %v2718 = vadd.f32 %v2030, %v2598
    %v2719 = vadd.f32 %v2033, %v2600
    %v2720 = vadd.f32 %v2036, %v2602
    %v2721 = vadd.f32 %v2039, %v2604
    %v2722 = vadd.f32 %v2042, %v2606
    %v2723 = vadd.f32 %v2045, %v2608
    %v2724 = vadd.f32 %v2048, %v2610
    %v2725 = vadd.f32 %v2051, %v2612
    %v2726 = vadd.f32 %v2054, %v2614
    %v2727 = vadd.f32 %v2057, %v2616
    %v2728 = vadd.f32 %v2060, %v2618
    %v2729 = vadd.f32 %v2063, %v2620
    %v2730 = vadd.f32 %v2066, %v2622
    %v2731 = vadd.f32 %v2069, %v2624
    %v2732 = vadd.f32 %v2072, %v2626
    %v2733 = vadd.f32 %v2075, %v2628
    %v2734 = vadd.f32 %v2078, %v2630
    %v2735 = vadd.f32 %v2081, %v2632
    %v2736 = vadd.f32 %v2084, %v2634
    %v2737 = vadd.f32 %v2087, %v2636
    %v2738 = vadd.f32 %v2090, %v2638
    %v2739 = vadd.f32 %v2093, %v2640
    %v2740 = vadd.f32 %v2096, %v2642
    %v2741 = vadd.f32 %v2099, %v2644
    %v2742 = vadd.f32 %v2102, %v2646
    %v2743 = vadd.f32 %v2105, %v2648
    %v2744 = vadd.f32 %v2108, %v2650
    %v2745 = vadd.f32 %v2111, %v2652
    %v2746 = vadd.f32 %v2114, %v2654
    %v2747 = vadd.f32 %v2117, %v2656
    %v2748 = vadd.f32 %v2120, %v2658
    %v2749 = vadd.f32 %v2123, %v2660
    %v2750 = vadd.f32 %v2126, %v2662
    %v2751 = vadd.f32 %v2129, %v2664
    %v2752 = vadd.f32 %v2132, %v2666
    %v2753 = vadd.f32 %v2135, %v2668
    %v2754 = vadd.f32 %v2138, %v2670
    %v2755 = vadd.f32 %v2141, %v2672
    %v2756 = vadd.f32 %v2144, %v2674
    %v2757 = vadd.f32 %v2147, %v2676
    %v2758 = vadd.f32 %v2150, %v2678
    %v2759 = vadd.f32 %v2153, %v2680
    %v2760 = vadd.f32 %v2156, %v2682
    %v2761 = vadd.f32 %v2159, %v2684
    %v2762 = vadd.f32 %v2162, %v2686
    %v2763 = vadd.f32 %v2165, %v2688
    %v2764 = vadd.f32 %v2168, %v2690
    %v2765 = vadd.f32 %v2171, %v2692
    %v2766 = vadd.f32 %v2174, %v2694
    %v2767 = vadd.f32 %v2177, %v2696
    %v2768 = vadd.f32 %v2180, %v2698
    %v2769 = vadd.f32 %v2183, %v2700
    %v2770 = vadd.f32 %v2186, %v2702
    %v2771 = vadd.f32 %v2189, %v2704
    %v2772 = vadd.f32 %v2192, %v2706
    %v2773 = vadd.f32 %v2195, %v2708
    %v2774 = vadd.f32 %v2198, %v2710
    %v2775 = vlaneseq
    %v2776 = vand.u32 %v2775, 127
    %v2777 = vld [vmem:[%s1] sm:$0xff]
    %v2778 = vld [vmem:[%s1 + $0x8] sm:$0xff]
    %v2779 = vld [vmem:[%s1 + $0x10] sm:$0xff]
    %v2780 = vld [vmem:[%s1 + $0x18] sm:$0xff]
    %v2781 = vld [vmem:[%s1 + $0x20] sm:$0xff]
    %v2782 = vld [vmem:[%s1 + $0x28] sm:$0xff]
    %v2783 = vld [vmem:[%s1 + $0x30] sm:$0xff]
    %v2784 = vld [vmem:[%s1 + $0x38] sm:$0xff]
    %v2785 = vld [vmem:[%s1 + $0x40] sm:$0xff]
    %v2786 = vld [vmem:[%s1 + $0x48] sm:$0xff]
    %v2787 = vld [vmem:[%s1 + $0x50] sm:$0xff]
    %v2788 = vld [vmem:[%s1 + $0x58] sm:$0xff]
    %v2789 = vld [vmem:[%s1 + $0x60] sm:$0xff]
    %v2790 = vld [vmem:[%s1 + $0x68] sm:$0xff]
    %v2791 = vld [vmem:[%s1 + $0x70] sm:$0xff]
    %v2792 = vld [vmem:[%s1 + $0x78] sm:$0xff]
    %v2793 = vld [vmem:[%s1 + $0x80] sm:$0xff]
    %v2794 = vld [vmem:[%s1 + $0x88] sm:$0xff]
    %v2795 = vld [vmem:[%s1 + $0x90] sm:$0xff]
    %v2796 = vld [vmem:[%s1 + $0x98] sm:$0xff]
    %v2797 = vld [vmem:[%s1 + $0xa0] sm:$0xff]
    %v2798 = vld [vmem:[%s1 + $0xa8] sm:$0xff]
    %v2799 = vld [vmem:[%s1 + $0xb0] sm:$0xff]
    %v2800 = vld [vmem:[%s1 + $0xb8] sm:$0xff]
    %v2801 = vld [vmem:[%s1 + $0xc0] sm:$0xff]
    %v2802 = vld [vmem:[%s1 + $0xc8] sm:$0xff]
    %v2803 = vld [vmem:[%s1 + $0xd0] sm:$0xff]
    %v2804 = vld [vmem:[%s1 + $0xd8] sm:$0xff]
    %v2805 = vld [vmem:[%s1 + $0xe0] sm:$0xff]
    %v2806 = vld [vmem:[%s1 + $0xe8] sm:$0xff]
    %v2807 = vld [vmem:[%s1 + $0xf0] sm:$0xff]
    %v2808 = vld [vmem:[%s1 + $0xf8] sm:$0xff]
    %v2809 = vld [vmem:[%s1 + $0x100] sm:$0xff]
    %v2810 = vld [vmem:[%s1 + $0x108] sm:$0xff]
    %v2811 = vld [vmem:[%s1 + $0x110] sm:$0xff]
    %v2812 = vld [vmem:[%s1 + $0x118] sm:$0xff]
    %v2813 = vld [vmem:[%s1 + $0x120] sm:$0xff]
    %v2814 = vld [vmem:[%s1 + $0x128] sm:$0xff]
    %v2815 = vld [vmem:[%s1 + $0x130] sm:$0xff]
    %v2816 = vld [vmem:[%s1 + $0x138] sm:$0xff]
    %v2817 = vld [vmem:[%s1 + $0x140] sm:$0xff]
    %v2818 = vld [vmem:[%s1 + $0x148] sm:$0xff]
    %v2819 = vld [vmem:[%s1 + $0x150] sm:$0xff]
    %v2820 = vld [vmem:[%s1 + $0x158] sm:$0xff]
    %v2821 = vld [vmem:[%s1 + $0x160] sm:$0xff]
    %v2822 = vld [vmem:[%s1 + $0x168] sm:$0xff]
    %v2823 = vld [vmem:[%s1 + $0x170] sm:$0xff]
    %v2824 = vld [vmem:[%s1 + $0x178] sm:$0xff]
    %v2825 = vld [vmem:[%s1 + $0x180] sm:$0xff]
    %v2826 = vld [vmem:[%s1 + $0x188] sm:$0xff]
    %v2827 = vld [vmem:[%s1 + $0x190] sm:$0xff]
    %v2828 = vld [vmem:[%s1 + $0x198] sm:$0xff]
    %v2829 = vld [vmem:[%s1 + $0x1a0] sm:$0xff]
    %v2830 = vld [vmem:[%s1 + $0x1a8] sm:$0xff]
    %v2831 = vld [vmem:[%s1 + $0x1b0] sm:$0xff]
    %v2832 = vld [vmem:[%s1 + $0x1b8] sm:$0xff]
    %v2833 = vld [vmem:[%s1 + $0x1c0] sm:$0xff]
    %v2834 = vld [vmem:[%s1 + $0x1c8] sm:$0xff]
    %v2835 = vld [vmem:[%s1 + $0x1d0] sm:$0xff]
    %v2836 = vld [vmem:[%s1 + $0x1d8] sm:$0xff]
    %v2837 = vld [vmem:[%s1 + $0x1e0] sm:$0xff]
    %v2838 = vld [vmem:[%s1 + $0x1e8] sm:$0xff]
    %v2839 = vld [vmem:[%s1 + $0x1f0] sm:$0xff]
    %v2840 = vld [vmem:[%s1 + $0x1f8] sm:$0xff]
    %2841 = vset.pattern.permute.xlu0 0
    %2842 = vperm.xlu0 %2841, %v2777
    %v2843 = vpop.permute.xlu0 %2842
    %2844 = vset.pattern.permute.xlu0 0
    %2845 = vperm.xlu0 %2844, %v2778
    %v2846 = vpop.permute.xlu0 %2845
    %2847 = vset.pattern.permute.xlu0 0
    %2848 = vperm.xlu0 %2847, %v2779
    %v2849 = vpop.permute.xlu0 %2848
    %2850 = vset.pattern.permute.xlu0 0
    %2851 = vperm.xlu0 %2850, %v2780
    %v2852 = vpop.permute.xlu0 %2851
    %2853 = vset.pattern.permute.xlu0 0
    %2854 = vperm.xlu0 %2853, %v2781
    %v2855 = vpop.permute.xlu0 %2854
    %2856 = vset.pattern.permute.xlu0 0
    %2857 = vperm.xlu0 %2856, %v2782
    %v2858 = vpop.permute.xlu0 %2857
    %2859 = vset.pattern.permute.xlu0 0
    %2860 = vperm.xlu0 %2859, %v2783
    %v2861 = vpop.permute.xlu0 %2860
    %2862 = vset.pattern.permute.xlu0 0
    %2863 = vperm.xlu0 %2862, %v2784
    %v2864 = vpop.permute.xlu0 %2863
    %2865 = vset.pattern.permute.xlu0 0
    %2866 = vperm.xlu0 %2865, %v2785
    %v2867 = vpop.permute.xlu0 %2866
    %2868 = vset.pattern.permute.xlu0 0
    %2869 = vperm.xlu0 %2868, %v2786
    %v2870 = vpop.permute.xlu0 %2869
    %2871 = vset.pattern.permute.xlu0 0
    %2872 = vperm.xlu0 %2871, %v2787
    %v2873 = vpop.permute.xlu0 %2872
    %2874 = vset.pattern.permute.xlu0 0
    %2875 = vperm.xlu0 %2874, %v2788
    %v2876 = vpop.permute.xlu0 %2875
    %2877 = vset.pattern.permute.xlu0 0
    %2878 = vperm.xlu0 %2877, %v2789
    %v2879 = vpop.permute.xlu0 %2878
    %2880 = vset.pattern.permute.xlu0 0
    %2881 = vperm.xlu0 %2880, %v2790
    %v2882 = vpop.permute.xlu0 %2881
    %2883 = vset.pattern.permute.xlu0 0
    %2884 = vperm.xlu0 %2883, %v2791
    %v2885 = vpop.permute.xlu0 %2884
    %2886 = vset.pattern.permute.xlu0 0
    %2887 = vperm.xlu0 %2886, %v2792
    %v2888 = vpop.permute.xlu0 %2887
    %2889 = vset.pattern.permute.xlu0 0
    %2890 = vperm.xlu0 %2889, %v2793
    %v2891 = vpop.permute.xlu0 %2890
    %2892 = vset.pattern.permute.xlu0 0
    %2893 = vperm.xlu0 %2892, %v2794
    %v2894 = vpop.permute.xlu0 %2893
    %2895 = vset.pattern.permute.xlu0 0
    %2896 = vperm.xlu0 %2895, %v2795
    %v2897 = vpop.permute.xlu0 %2896
    %2898 = vset.pattern.permute.xlu0 0
    %2899 = vperm.xlu0 %2898, %v2796
    %v2900 = vpop.permute.xlu0 %2899
    %2901 = vset.pattern.permute.xlu0 0
    %2902 = vperm.xlu0 %2901, %v2797
    %v2903 = vpop.permute.xlu0 %2902
    %2904 = vset.pattern.permute.xlu0 0
    %2905 = vperm.xlu0 %2904, %v2798
    %v2906 = vpop.permute.xlu0 %2905
    %2907 = vset.pattern.permute.xlu0 0
    %2908 = vperm.xlu0 %2907, %v2799
    %v2909 = vpop.permute.xlu0 %2908
    %2910 = vset.pattern.permute.xlu0 0
    %2911 = vperm.xlu0 %2910, %v2800
    %v2912 = vpop.permute.xlu0 %2911
    %2913 = vset.pattern.permute.xlu0 0
    %2914 = vperm.xlu0 %2913, %v2801
    %v2915 = vpop.permute.xlu0 %2914
    %2916 = vset.pattern.permute.xlu0 0
    %2917 = vperm.xlu0 %2916, %v2802
    %v2918 = vpop.permute.xlu0 %2917
    %2919 = vset.pattern.permute.xlu0 0
    %2920 = vperm.xlu0 %2919, %v2803
    %v2921 = vpop.permute.xlu0 %2920
    %2922 = vset.pattern.permute.xlu0 0
    %2923 = vperm.xlu0 %2922, %v2804
    %v2924 = vpop.permute.xlu0 %2923
    %2925 = vset.pattern.permute.xlu0 0
    %2926 = vperm.xlu0 %2925, %v2805
    %v2927 = vpop.permute.xlu0 %2926
    %2928 = vset.pattern.permute.xlu0 0
    %2929 = vperm.xlu0 %2928, %v2806
    %v2930 = vpop.permute.xlu0 %2929
    %2931 = vset.pattern.permute.xlu0 0
    %2932 = vperm.xlu0 %2931, %v2807
    %v2933 = vpop.permute.xlu0 %2932
    %2934 = vset.pattern.permute.xlu0 0
    %2935 = vperm.xlu0 %2934, %v2808
    %v2936 = vpop.permute.xlu0 %2935
    %2937 = vset.pattern.permute.xlu0 0
    %2938 = vperm.xlu0 %2937, %v2809
    %v2939 = vpop.permute.xlu0 %2938
    %2940 = vset.pattern.permute.xlu0 0
    %2941 = vperm.xlu0 %2940, %v2810
    %v2942 = vpop.permute.xlu0 %2941
    %2943 = vset.pattern.permute.xlu0 0
    %2944 = vperm.xlu0 %2943, %v2811
    %v2945 = vpop.permute.xlu0 %2944
    %2946 = vset.pattern.permute.xlu0 0
    %2947 = vperm.xlu0 %2946, %v2812
    %v2948 = vpop.permute.xlu0 %2947
    %2949 = vset.pattern.permute.xlu0 0
    %2950 = vperm.xlu0 %2949, %v2813
    %v2951 = vpop.permute.xlu0 %2950
    %2952 = vset.pattern.permute.xlu0 0
    %2953 = vperm.xlu0 %2952, %v2814
    %v2954 = vpop.permute.xlu0 %2953
    %2955 = vset.pattern.permute.xlu0 0
    %2956 = vperm.xlu0 %2955, %v2815
    %v2957 = vpop.permute.xlu0 %2956
    %2958 = vset.pattern.permute.xlu0 0
    %2959 = vperm.xlu0 %2958, %v2816
    %v2960 = vpop.permute.xlu0 %2959
    %2961 = vset.pattern.permute.xlu0 0
    %2962 = vperm.xlu0 %2961, %v2817
    %v2963 = vpop.permute.xlu0 %2962
    %2964 = vset.pattern.permute.xlu0 0
    %2965 = vperm.xlu0 %2964, %v2818
    %v2966 = vpop.permute.xlu0 %2965
    %2967 = vset.pattern.permute.xlu0 0
    %2968 = vperm.xlu0 %2967, %v2819
    %v2969 = vpop.permute.xlu0 %2968
    %2970 = vset.pattern.permute.xlu0 0
    %2971 = vperm.xlu0 %2970, %v2820
    %v2972 = vpop.permute.xlu0 %2971
    %2973 = vset.pattern.permute.xlu0 0
    %2974 = vperm.xlu0 %2973, %v2821
    %v2975 = vpop.permute.xlu0 %2974
    %2976 = vset.pattern.permute.xlu0 0
    %2977 = vperm.xlu0 %2976, %v2822
    %v2978 = vpop.permute.xlu0 %2977
    %2979 = vset.pattern.permute.xlu0 0
    %2980 = vperm.xlu0 %2979, %v2823
    %v2981 = vpop.permute.xlu0 %2980
    %2982 = vset.pattern.permute.xlu0 0
    %2983 = vperm.xlu0 %2982, %v2824
    %v2984 = vpop.permute.xlu0 %2983
    %2985 = vset.pattern.permute.xlu0 0
    %2986 = vperm.xlu0 %2985, %v2825
    %v2987 = vpop.permute.xlu0 %2986
    %2988 = vset.pattern.permute.xlu0 0
    %2989 = vperm.xlu0 %2988, %v2826
    %v2990 = vpop.permute.xlu0 %2989
    %2991 = vset.pattern.permute.xlu0 0
    %2992 = vperm.xlu0 %2991, %v2827
    %v2993 = vpop.permute.xlu0 %2992
    %2994 = vset.pattern.permute.xlu0 0
    %2995 = vperm.xlu0 %2994, %v2828
    %v2996 = vpop.permute.xlu0 %2995
    %2997 = vset.pattern.permute.xlu0 0
    %2998 = vperm.xlu0 %2997, %v2829
    %v2999 = vpop.permute.xlu0 %2998
    %3000 = vset.pattern.permute.xlu0 0
    %3001 = vperm.xlu0 %3000, %v2830
    %v3002 = vpop.permute.xlu0 %3001
    %3003 = vset.pattern.permute.xlu0 0
    %3004 = vperm.xlu0 %3003, %v2831
    %v3005 = vpop.permute.xlu0 %3004
    %3006 = vset.pattern.permute.xlu0 0
    %3007 = vperm.xlu0 %3006, %v2832
    %v3008 = vpop.permute.xlu0 %3007
    %3009 = vset.pattern.permute.xlu0 0
    %3010 = vperm.xlu0 %3009, %v2833
    %v3011 = vpop.permute.xlu0 %3010
    %3012 = vset.pattern.permute.xlu0 0
    %3013 = vperm.xlu0 %3012, %v2834
    %v3014 = vpop.permute.xlu0 %3013
    %3015 = vset.pattern.permute.xlu0 0
    %3016 = vperm.xlu0 %3015, %v2835
    %v3017 = vpop.permute.xlu0 %3016
    %3018 = vset.pattern.permute.xlu0 0
    %3019 = vperm.xlu0 %3018, %v2836
    %v3020 = vpop.permute.xlu0 %3019
    %3021 = vset.pattern.permute.xlu0 0
    %3022 = vperm.xlu0 %3021, %v2837
    %v3023 = vpop.permute.xlu0 %3022
    %3024 = vset.pattern.permute.xlu0 0
    %3025 = vperm.xlu0 %3024, %v2838
    %v3026 = vpop.permute.xlu0 %3025
    %3027 = vset.pattern.permute.xlu0 0
    %3028 = vperm.xlu0 %3027, %v2839
    %v3029 = vpop.permute.xlu0 %3028
    %3030 = vset.pattern.permute.xlu0 0
    %3031 = vperm.xlu0 %3030, %v2840
    %v3032 = vpop.permute.xlu0 %3031
    %vm3033 = vcmp.eq.s32.totalorder %v2776, %v2843
    %vm3034 = vcmp.eq.s32.totalorder %v2776, %v2846
    %vm3035 = vcmp.eq.s32.totalorder %v2776, %v2849
    %vm3036 = vcmp.eq.s32.totalorder %v2776, %v2852
    %vm3037 = vcmp.eq.s32.totalorder %v2776, %v2855
    %vm3038 = vcmp.eq.s32.totalorder %v2776, %v2858
    %vm3039 = vcmp.eq.s32.totalorder %v2776, %v2861
    %vm3040 = vcmp.eq.s32.totalorder %v2776, %v2864
    %vm3041 = vcmp.eq.s32.totalorder %v2776, %v2867
    %vm3042 = vcmp.eq.s32.totalorder %v2776, %v2870
    %vm3043 = vcmp.eq.s32.totalorder %v2776, %v2873
    %vm3044 = vcmp.eq.s32.totalorder %v2776, %v2876
    %vm3045 = vcmp.eq.s32.totalorder %v2776, %v2879
    %vm3046 = vcmp.eq.s32.totalorder %v2776, %v2882
    %vm3047 = vcmp.eq.s32.totalorder %v2776, %v2885
    %vm3048 = vcmp.eq.s32.totalorder %v2776, %v2888
    %vm3049 = vcmp.eq.s32.totalorder %v2776, %v2891
    %vm3050 = vcmp.eq.s32.totalorder %v2776, %v2894
    %vm3051 = vcmp.eq.s32.totalorder %v2776, %v2897
    %vm3052 = vcmp.eq.s32.totalorder %v2776, %v2900
    %vm3053 = vcmp.eq.s32.totalorder %v2776, %v2903
    %vm3054 = vcmp.eq.s32.totalorder %v2776, %v2906
    %vm3055 = vcmp.eq.s32.totalorder %v2776, %v2909
    %vm3056 = vcmp.eq.s32.totalorder %v2776, %v2912
    %vm3057 = vcmp.eq.s32.totalorder %v2776, %v2915
    %vm3058 = vcmp.eq.s32.totalorder %v2776, %v2918
    %vm3059 = vcmp.eq.s32.totalorder %v2776, %v2921
    %vm3060 = vcmp.eq.s32.totalorder %v2776, %v2924
    %vm3061 = vcmp.eq.s32.totalorder %v2776, %v2927
    %vm3062 = vcmp.eq.s32.totalorder %v2776, %v2930
    %vm3063 = vcmp.eq.s32.totalorder %v2776, %v2933
    %vm3064 = vcmp.eq.s32.totalorder %v2776, %v2936
    %vm3065 = vcmp.eq.s32.totalorder %v2776, %v2939
    %vm3066 = vcmp.eq.s32.totalorder %v2776, %v2942
    %vm3067 = vcmp.eq.s32.totalorder %v2776, %v2945
    %vm3068 = vcmp.eq.s32.totalorder %v2776, %v2948
    %vm3069 = vcmp.eq.s32.totalorder %v2776, %v2951
    %vm3070 = vcmp.eq.s32.totalorder %v2776, %v2954
    %vm3071 = vcmp.eq.s32.totalorder %v2776, %v2957
    %vm3072 = vcmp.eq.s32.totalorder %v2776, %v2960
    %vm3073 = vcmp.eq.s32.totalorder %v2776, %v2963
    %vm3074 = vcmp.eq.s32.totalorder %v2776, %v2966
    %vm3075 = vcmp.eq.s32.totalorder %v2776, %v2969
    %vm3076 = vcmp.eq.s32.totalorder %v2776, %v2972
    %vm3077 = vcmp.eq.s32.totalorder %v2776, %v2975
    %vm3078 = vcmp.eq.s32.totalorder %v2776, %v2978
    %vm3079 = vcmp.eq.s32.totalorder %v2776, %v2981
    %vm3080 = vcmp.eq.s32.totalorder %v2776, %v2984
    %vm3081 = vcmp.eq.s32.totalorder %v2776, %v2987
    %vm3082 = vcmp.eq.s32.totalorder %v2776, %v2990
    %vm3083 = vcmp.eq.s32.totalorder %v2776, %v2993
    %vm3084 = vcmp.eq.s32.totalorder %v2776, %v2996
    %vm3085 = vcmp.eq.s32.totalorder %v2776, %v2999
    %vm3086 = vcmp.eq.s32.totalorder %v2776, %v3002
    %vm3087 = vcmp.eq.s32.totalorder %v2776, %v3005
    %vm3088 = vcmp.eq.s32.totalorder %v2776, %v3008
    %vm3089 = vcmp.eq.s32.totalorder %v2776, %v3011
    %vm3090 = vcmp.eq.s32.totalorder %v2776, %v3014
    %vm3091 = vcmp.eq.s32.totalorder %v2776, %v3017
    %vm3092 = vcmp.eq.s32.totalorder %v2776, %v3020
    %vm3093 = vcmp.eq.s32.totalorder %v2776, %v3023
    %vm3094 = vcmp.eq.s32.totalorder %v2776, %v3026
    %vm3095 = vcmp.eq.s32.totalorder %v2776, %v3029
    %vm3096 = vcmp.eq.s32.totalorder %v2776, %v3032
    %v3097 = vsel %vm3033, %v1037, 0.0
    %v3098 = vsel %vm3034, %v1038, 0.0
    %v3099 = vsel %vm3035, %v1039, 0.0
    %v3100 = vsel %vm3036, %v1040, 0.0
    %v3101 = vsel %vm3037, %v1041, 0.0
    %v3102 = vsel %vm3038, %v1042, 0.0
    %v3103 = vsel %vm3039, %v1043, 0.0
    %v3104 = vsel %vm3040, %v1044, 0.0
    %v3105 = vsel %vm3041, %v1045, 0.0
    %v3106 = vsel %vm3042, %v1046, 0.0
    %v3107 = vsel %vm3043, %v1047, 0.0
    %v3108 = vsel %vm3044, %v1048, 0.0
    %v3109 = vsel %vm3045, %v1049, 0.0
    %v3110 = vsel %vm3046, %v1050, 0.0
    %v3111 = vsel %vm3047, %v1051, 0.0
    %v3112 = vsel %vm3048, %v1052, 0.0
    %v3113 = vsel %vm3049, %v1053, 0.0
    %v3114 = vsel %vm3050, %v1054, 0.0
    %v3115 = vsel %vm3051, %v1055, 0.0
    %v3116 = vsel %vm3052, %v1056, 0.0
    %v3117 = vsel %vm3053, %v1057, 0.0
    %v3118 = vsel %vm3054, %v1058, 0.0
    %v3119 = vsel %vm3055, %v1059, 0.0
    %v3120 = vsel %vm3056, %v1060, 0.0
    %v3121 = vsel %vm3057, %v1061, 0.0
    %v3122 = vsel %vm3058, %v1062, 0.0
    %v3123 = vsel %vm3059, %v1063, 0.0
    %v3124 = vsel %vm3060, %v1064, 0.0
    %v3125 = vsel %vm3061, %v1065, 0.0
    %v3126 = vsel %vm3062, %v1066, 0.0
    %v3127 = vsel %vm3063, %v1067, 0.0
    %v3128 = vsel %vm3064, %v1068, 0.0
    %v3129 = vsel %vm3065, %v1069, 0.0
    %v3130 = vsel %vm3066, %v1070, 0.0
    %v3131 = vsel %vm3067, %v1071, 0.0
    %v3132 = vsel %vm3068, %v1072, 0.0
    %v3133 = vsel %vm3069, %v1073, 0.0
    %v3134 = vsel %vm3070, %v1074, 0.0
    %v3135 = vsel %vm3071, %v1075, 0.0
    %v3136 = vsel %vm3072, %v1076, 0.0
    %v3137 = vsel %vm3073, %v1077, 0.0
    %v3138 = vsel %vm3074, %v1078, 0.0
    %v3139 = vsel %vm3075, %v1079, 0.0
    %v3140 = vsel %vm3076, %v1080, 0.0
    %v3141 = vsel %vm3077, %v1081, 0.0
    %v3142 = vsel %vm3078, %v1082, 0.0
    %v3143 = vsel %vm3079, %v1083, 0.0
    %v3144 = vsel %vm3080, %v1084, 0.0
    %v3145 = vsel %vm3081, %v1085, 0.0
    %v3146 = vsel %vm3082, %v1086, 0.0
    %v3147 = vsel %vm3083, %v1087, 0.0
    %v3148 = vsel %vm3084, %v1088, 0.0
    %v3149 = vsel %vm3085, %v1089, 0.0
    %v3150 = vsel %vm3086, %v1090, 0.0
    %v3151 = vsel %vm3087, %v1091, 0.0
    %v3152 = vsel %vm3088, %v1092, 0.0
    %v3153 = vsel %vm3089, %v1093, 0.0
    %v3154 = vsel %vm3090, %v1094, 0.0
    %v3155 = vsel %vm3091, %v1095, 0.0
    %v3156 = vsel %vm3092, %v1096, 0.0
    %v3157 = vsel %vm3093, %v1097, 0.0
    %v3158 = vsel %vm3094, %v1098, 0.0
    %v3159 = vsel %vm3095, %v1099, 0.0
    %v3160 = vsel %vm3096, %v1100, 0.0
    %v3161 = vsel %vm2006, %v3097, 0.0
    %3162 = vadd.xlane.f32.xlu0 %v3161
    %v3163 = vpop.xlane.xlu0 %3162
    %v3164 = vsel %vm2006, %v3098, 0.0
    %3165 = vadd.xlane.f32.xlu0 %v3164
    %v3166 = vpop.xlane.xlu0 %3165
    %v3167 = vsel %vm2006, %v3099, 0.0
    %3168 = vadd.xlane.f32.xlu0 %v3167
    %v3169 = vpop.xlane.xlu0 %3168
    %v3170 = vsel %vm2006, %v3100, 0.0
    %3171 = vadd.xlane.f32.xlu0 %v3170
    %v3172 = vpop.xlane.xlu0 %3171
    %v3173 = vsel %vm2006, %v3101, 0.0
    %3174 = vadd.xlane.f32.xlu0 %v3173
    %v3175 = vpop.xlane.xlu0 %3174
    %v3176 = vsel %vm2006, %v3102, 0.0
    %3177 = vadd.xlane.f32.xlu0 %v3176
    %v3178 = vpop.xlane.xlu0 %3177
    %v3179 = vsel %vm2006, %v3103, 0.0
    %3180 = vadd.xlane.f32.xlu0 %v3179
    %v3181 = vpop.xlane.xlu0 %3180
    %v3182 = vsel %vm2006, %v3104, 0.0
    %3183 = vadd.xlane.f32.xlu0 %v3182
    %v3184 = vpop.xlane.xlu0 %3183
    %v3185 = vsel %vm2006, %v3105, 0.0
    %3186 = vadd.xlane.f32.xlu0 %v3185
    %v3187 = vpop.xlane.xlu0 %3186
    %v3188 = vsel %vm2006, %v3106, 0.0
    %3189 = vadd.xlane.f32.xlu0 %v3188
    %v3190 = vpop.xlane.xlu0 %3189
    %v3191 = vsel %vm2006, %v3107, 0.0
    %3192 = vadd.xlane.f32.xlu0 %v3191
    %v3193 = vpop.xlane.xlu0 %3192
    %v3194 = vsel %vm2006, %v3108, 0.0
    %3195 = vadd.xlane.f32.xlu0 %v3194
    %v3196 = vpop.xlane.xlu0 %3195
    %v3197 = vsel %vm2006, %v3109, 0.0
    %3198 = vadd.xlane.f32.xlu0 %v3197
    %v3199 = vpop.xlane.xlu0 %3198
    %v3200 = vsel %vm2006, %v3110, 0.0
    %3201 = vadd.xlane.f32.xlu0 %v3200
    %v3202 = vpop.xlane.xlu0 %3201
    %v3203 = vsel %vm2006, %v3111, 0.0
    %3204 = vadd.xlane.f32.xlu0 %v3203
    %v3205 = vpop.xlane.xlu0 %3204
    %v3206 = vsel %vm2006, %v3112, 0.0
    %3207 = vadd.xlane.f32.xlu0 %v3206
    %v3208 = vpop.xlane.xlu0 %3207
    %v3209 = vsel %vm2006, %v3113, 0.0
    %3210 = vadd.xlane.f32.xlu0 %v3209
    %v3211 = vpop.xlane.xlu0 %3210
    %v3212 = vsel %vm2006, %v3114, 0.0
    %3213 = vadd.xlane.f32.xlu0 %v3212
    %v3214 = vpop.xlane.xlu0 %3213
    %v3215 = vsel %vm2006, %v3115, 0.0
    %3216 = vadd.xlane.f32.xlu0 %v3215
    %v3217 = vpop.xlane.xlu0 %3216
    %v3218 = vsel %vm2006, %v3116, 0.0
    %3219 = vadd.xlane.f32.xlu0 %v3218
    %v3220 = vpop.xlane.xlu0 %3219
    %v3221 = vsel %vm2006, %v3117, 0.0
    %3222 = vadd.xlane.f32.xlu0 %v3221
    %v3223 = vpop.xlane.xlu0 %3222
    %v3224 = vsel %vm2006, %v3118, 0.0
    %3225 = vadd.xlane.f32.xlu0 %v3224
    %v3226 = vpop.xlane.xlu0 %3225
    %v3227 = vsel %vm2006, %v3119, 0.0
    %3228 = vadd.xlane.f32.xlu0 %v3227
    %v3229 = vpop.xlane.xlu0 %3228
    %v3230 = vsel %vm2006, %v3120, 0.0
    %3231 = vadd.xlane.f32.xlu0 %v3230
    %v3232 = vpop.xlane.xlu0 %3231
    %v3233 = vsel %vm2006, %v3121, 0.0
    %3234 = vadd.xlane.f32.xlu0 %v3233
    %v3235 = vpop.xlane.xlu0 %3234
    %v3236 = vsel %vm2006, %v3122, 0.0
    %3237 = vadd.xlane.f32.xlu0 %v3236
    %v3238 = vpop.xlane.xlu0 %3237
    %v3239 = vsel %vm2006, %v3123, 0.0
    %3240 = vadd.xlane.f32.xlu0 %v3239
    %v3241 = vpop.xlane.xlu0 %3240
    %v3242 = vsel %vm2006, %v3124, 0.0
    %3243 = vadd.xlane.f32.xlu0 %v3242
    %v3244 = vpop.xlane.xlu0 %3243
    %v3245 = vsel %vm2006, %v3125, 0.0
    %3246 = vadd.xlane.f32.xlu0 %v3245
    %v3247 = vpop.xlane.xlu0 %3246
    %v3248 = vsel %vm2006, %v3126, 0.0
    %3249 = vadd.xlane.f32.xlu0 %v3248
    %v3250 = vpop.xlane.xlu0 %3249
    %v3251 = vsel %vm2006, %v3127, 0.0
    %3252 = vadd.xlane.f32.xlu0 %v3251
    %v3253 = vpop.xlane.xlu0 %3252
    %v3254 = vsel %vm2006, %v3128, 0.0
    %3255 = vadd.xlane.f32.xlu0 %v3254
    %v3256 = vpop.xlane.xlu0 %3255
    %v3257 = vsel %vm2006, %v3129, 0.0
    %3258 = vadd.xlane.f32.xlu0 %v3257
    %v3259 = vpop.xlane.xlu0 %3258
    %v3260 = vsel %vm2006, %v3130, 0.0
    %3261 = vadd.xlane.f32.xlu0 %v3260
    %v3262 = vpop.xlane.xlu0 %3261
    %v3263 = vsel %vm2006, %v3131, 0.0
    %3264 = vadd.xlane.f32.xlu0 %v3263
    %v3265 = vpop.xlane.xlu0 %3264
    %v3266 = vsel %vm2006, %v3132, 0.0
    %3267 = vadd.xlane.f32.xlu0 %v3266
    %v3268 = vpop.xlane.xlu0 %3267
    %v3269 = vsel %vm2006, %v3133, 0.0
    %3270 = vadd.xlane.f32.xlu0 %v3269
    %v3271 = vpop.xlane.xlu0 %3270
    %v3272 = vsel %vm2006, %v3134, 0.0
    %3273 = vadd.xlane.f32.xlu0 %v3272
    %v3274 = vpop.xlane.xlu0 %3273
    %v3275 = vsel %vm2006, %v3135, 0.0
    %3276 = vadd.xlane.f32.xlu0 %v3275
    %v3277 = vpop.xlane.xlu0 %3276
    %v3278 = vsel %vm2006, %v3136, 0.0
    %3279 = vadd.xlane.f32.xlu0 %v3278
    %v3280 = vpop.xlane.xlu0 %3279
    %v3281 = vsel %vm2006, %v3137, 0.0
    %3282 = vadd.xlane.f32.xlu0 %v3281
    %v3283 = vpop.xlane.xlu0 %3282
    %v3284 = vsel %vm2006, %v3138, 0.0
    %3285 = vadd.xlane.f32.xlu0 %v3284
    %v3286 = vpop.xlane.xlu0 %3285
    %v3287 = vsel %vm2006, %v3139, 0.0
    %3288 = vadd.xlane.f32.xlu0 %v3287
    %v3289 = vpop.xlane.xlu0 %3288
    %v3290 = vsel %vm2006, %v3140, 0.0
    %3291 = vadd.xlane.f32.xlu0 %v3290
    %v3292 = vpop.xlane.xlu0 %3291
    %v3293 = vsel %vm2006, %v3141, 0.0
    %3294 = vadd.xlane.f32.xlu0 %v3293
    %v3295 = vpop.xlane.xlu0 %3294
    %v3296 = vsel %vm2006, %v3142, 0.0
    %3297 = vadd.xlane.f32.xlu0 %v3296
    %v3298 = vpop.xlane.xlu0 %3297
    %v3299 = vsel %vm2006, %v3143, 0.0
    %3300 = vadd.xlane.f32.xlu0 %v3299
    %v3301 = vpop.xlane.xlu0 %3300
    %v3302 = vsel %vm2006, %v3144, 0.0
    %3303 = vadd.xlane.f32.xlu0 %v3302
    %v3304 = vpop.xlane.xlu0 %3303
    %v3305 = vsel %vm2006, %v3145, 0.0
    %3306 = vadd.xlane.f32.xlu0 %v3305
    %v3307 = vpop.xlane.xlu0 %3306
    %v3308 = vsel %vm2006, %v3146, 0.0
    %3309 = vadd.xlane.f32.xlu0 %v3308
    %v3310 = vpop.xlane.xlu0 %3309
    %v3311 = vsel %vm2006, %v3147, 0.0
    %3312 = vadd.xlane.f32.xlu0 %v3311
    %v3313 = vpop.xlane.xlu0 %3312
    %v3314 = vsel %vm2006, %v3148, 0.0
    %3315 = vadd.xlane.f32.xlu0 %v3314
    %v3316 = vpop.xlane.xlu0 %3315
    %v3317 = vsel %vm2006, %v3149, 0.0
    %3318 = vadd.xlane.f32.xlu0 %v3317
    %v3319 = vpop.xlane.xlu0 %3318
    %v3320 = vsel %vm2006, %v3150, 0.0
    %3321 = vadd.xlane.f32.xlu0 %v3320
    %v3322 = vpop.xlane.xlu0 %3321
    %v3323 = vsel %vm2006, %v3151, 0.0
    %3324 = vadd.xlane.f32.xlu0 %v3323
    %v3325 = vpop.xlane.xlu0 %3324
    %v3326 = vsel %vm2006, %v3152, 0.0
    %3327 = vadd.xlane.f32.xlu0 %v3326
    %v3328 = vpop.xlane.xlu0 %3327
    %v3329 = vsel %vm2006, %v3153, 0.0
    %3330 = vadd.xlane.f32.xlu0 %v3329
    %v3331 = vpop.xlane.xlu0 %3330
    %v3332 = vsel %vm2006, %v3154, 0.0
    %3333 = vadd.xlane.f32.xlu0 %v3332
    %v3334 = vpop.xlane.xlu0 %3333
    %v3335 = vsel %vm2006, %v3155, 0.0
    %3336 = vadd.xlane.f32.xlu0 %v3335
    %v3337 = vpop.xlane.xlu0 %3336
    %v3338 = vsel %vm2006, %v3156, 0.0
    %3339 = vadd.xlane.f32.xlu0 %v3338
    %v3340 = vpop.xlane.xlu0 %3339
    %v3341 = vsel %vm2006, %v3157, 0.0
    %3342 = vadd.xlane.f32.xlu0 %v3341
    %v3343 = vpop.xlane.xlu0 %3342
    %v3344 = vsel %vm2006, %v3158, 0.0
    %3345 = vadd.xlane.f32.xlu0 %v3344
    %v3346 = vpop.xlane.xlu0 %3345
    %v3347 = vsel %vm2006, %v3159, 0.0
    %3348 = vadd.xlane.f32.xlu0 %v3347
    %v3349 = vpop.xlane.xlu0 %3348
    %v3350 = vsel %vm2006, %v3160, 0.0
    %3351 = vadd.xlane.f32.xlu0 %v3350
    %v3352 = vpop.xlane.xlu0 %3351
    %v3353 = vsub.f32 %v2711, %v3163
    %v3354 = vsub.f32 %v2712, %v3166
    %v3355 = vsub.f32 %v2713, %v3169
    %v3356 = vsub.f32 %v2714, %v3172
    %v3357 = vsub.f32 %v2715, %v3175
    %v3358 = vsub.f32 %v2716, %v3178
    %v3359 = vsub.f32 %v2717, %v3181
    %v3360 = vsub.f32 %v2718, %v3184
    %v3361 = vsub.f32 %v2719, %v3187
    %v3362 = vsub.f32 %v2720, %v3190
    %v3363 = vsub.f32 %v2721, %v3193
    %v3364 = vsub.f32 %v2722, %v3196
    %v3365 = vsub.f32 %v2723, %v3199
    %v3366 = vsub.f32 %v2724, %v3202
    %v3367 = vsub.f32 %v2725, %v3205
    %v3368 = vsub.f32 %v2726, %v3208
    %v3369 = vsub.f32 %v2727, %v3211
    %v3370 = vsub.f32 %v2728, %v3214
    %v3371 = vsub.f32 %v2729, %v3217
    %v3372 = vsub.f32 %v2730, %v3220
    %v3373 = vsub.f32 %v2731, %v3223
    %v3374 = vsub.f32 %v2732, %v3226
    %v3375 = vsub.f32 %v2733, %v3229
    %v3376 = vsub.f32 %v2734, %v3232
    %v3377 = vsub.f32 %v2735, %v3235
    %v3378 = vsub.f32 %v2736, %v3238
    %v3379 = vsub.f32 %v2737, %v3241
    %v3380 = vsub.f32 %v2738, %v3244
    %v3381 = vsub.f32 %v2739, %v3247
    %v3382 = vsub.f32 %v2740, %v3250
    %v3383 = vsub.f32 %v2741, %v3253
    %v3384 = vsub.f32 %v2742, %v3256
    %v3385 = vsub.f32 %v2743, %v3259
    %v3386 = vsub.f32 %v2744, %v3262
    %v3387 = vsub.f32 %v2745, %v3265
    %v3388 = vsub.f32 %v2746, %v3268
    %v3389 = vsub.f32 %v2747, %v3271
    %v3390 = vsub.f32 %v2748, %v3274
    %v3391 = vsub.f32 %v2749, %v3277
    %v3392 = vsub.f32 %v2750, %v3280
    %v3393 = vsub.f32 %v2751, %v3283
    %v3394 = vsub.f32 %v2752, %v3286
    %v3395 = vsub.f32 %v2753, %v3289
    %v3396 = vsub.f32 %v2754, %v3292
    %v3397 = vsub.f32 %v2755, %v3295
    %v3398 = vsub.f32 %v2756, %v3298
    %v3399 = vsub.f32 %v2757, %v3301
    %v3400 = vsub.f32 %v2758, %v3304
    %v3401 = vsub.f32 %v2759, %v3307
    %v3402 = vsub.f32 %v2760, %v3310
    %v3403 = vsub.f32 %v2761, %v3313
    %v3404 = vsub.f32 %v2762, %v3316
    %v3405 = vsub.f32 %v2763, %v3319
    %v3406 = vsub.f32 %v2764, %v3322
    %v3407 = vsub.f32 %v2765, %v3325
    %v3408 = vsub.f32 %v2766, %v3328
    %v3409 = vsub.f32 %v2767, %v3331
    %v3410 = vsub.f32 %v2768, %v3334
    %v3411 = vsub.f32 %v2769, %v3337
    %v3412 = vsub.f32 %v2770, %v3340
    %v3413 = vsub.f32 %v2771, %v3343
    %v3414 = vsub.f32 %v2772, %v3346
    %v3415 = vsub.f32 %v2773, %v3349
    %v3416 = vsub.f32 %v2774, %v3352
    %v3417 = vrcp.pop %v2393
    %v3418 = vmul.f32 %v2264, %v3417
    %v3419 = vrcp.pop %v2396
    %v3420 = vmul.f32 %v2266, %v3419
    %v3421 = vrcp.pop %v2399
    %v3422 = vmul.f32 %v2268, %v3421
    %v3423 = vrcp.pop %v2402
    %v3424 = vmul.f32 %v2270, %v3423
    %v3425 = vrcp.pop %v2405
    %v3426 = vmul.f32 %v2272, %v3425
    %v3427 = vrcp.pop %v2408
    %v3428 = vmul.f32 %v2274, %v3427
    %v3429 = vrcp.pop %v2411
    %v3430 = vmul.f32 %v2276, %v3429
    %v3431 = vrcp.pop %v2414
    %v3432 = vmul.f32 %v2278, %v3431
    %v3433 = vrcp.pop %v2417
    %v3434 = vmul.f32 %v2280, %v3433
    %v3435 = vrcp.pop %v2420
    %v3436 = vmul.f32 %v2282, %v3435
    %v3437 = vrcp.pop %v2423
    %v3438 = vmul.f32 %v2284, %v3437
    %v3439 = vrcp.pop %v2426
    %v3440 = vmul.f32 %v2286, %v3439
    %v3441 = vrcp.pop %v2429
    %v3442 = vmul.f32 %v2288, %v3441
    %v3443 = vrcp.pop %v2432
    %v3444 = vmul.f32 %v2290, %v3443
    %v3445 = vrcp.pop %v2435
    %v3446 = vmul.f32 %v2292, %v3445
    %v3447 = vrcp.pop %v2438
    %v3448 = vmul.f32 %v2294, %v3447
    %v3449 = vrcp.pop %v2441
    %v3450 = vmul.f32 %v2296, %v3449
    %v3451 = vrcp.pop %v2444
    %v3452 = vmul.f32 %v2298, %v3451
    %v3453 = vrcp.pop %v2447
    %v3454 = vmul.f32 %v2300, %v3453
    %v3455 = vrcp.pop %v2450
    %v3456 = vmul.f32 %v2302, %v3455
    %v3457 = vrcp.pop %v2453
    %v3458 = vmul.f32 %v2304, %v3457
    %v3459 = vrcp.pop %v2456
    %v3460 = vmul.f32 %v2306, %v3459
    %v3461 = vrcp.pop %v2459
    %v3462 = vmul.f32 %v2308, %v3461
    %v3463 = vrcp.pop %v2462
    %v3464 = vmul.f32 %v2310, %v3463
    %v3465 = vrcp.pop %v2465
    %v3466 = vmul.f32 %v2312, %v3465
    %v3467 = vrcp.pop %v2468
    %v3468 = vmul.f32 %v2314, %v3467
    %v3469 = vrcp.pop %v2471
    %v3470 = vmul.f32 %v2316, %v3469
    %v3471 = vrcp.pop %v2474
    %v3472 = vmul.f32 %v2318, %v3471
    %v3473 = vrcp.pop %v2477
    %v3474 = vmul.f32 %v2320, %v3473
    %v3475 = vrcp.pop %v2480
    %v3476 = vmul.f32 %v2322, %v3475
    %v3477 = vrcp.pop %v2483
    %v3478 = vmul.f32 %v2324, %v3477
    %v3479 = vrcp.pop %v2486
    %v3480 = vmul.f32 %v2326, %v3479
    %v3481 = vrcp.pop %v2489
    %v3482 = vmul.f32 %v2328, %v3481
    %v3483 = vrcp.pop %v2492
    %v3484 = vmul.f32 %v2330, %v3483
    %v3485 = vrcp.pop %v2495
    %v3486 = vmul.f32 %v2332, %v3485
    %v3487 = vrcp.pop %v2498
    %v3488 = vmul.f32 %v2334, %v3487
    %v3489 = vrcp.pop %v2501
    %v3490 = vmul.f32 %v2336, %v3489
    %v3491 = vrcp.pop %v2504
    %v3492 = vmul.f32 %v2338, %v3491
    %v3493 = vrcp.pop %v2507
    %v3494 = vmul.f32 %v2340, %v3493
    %v3495 = vrcp.pop %v2510
    %v3496 = vmul.f32 %v2342, %v3495
    %v3497 = vrcp.pop %v2513
    %v3498 = vmul.f32 %v2344, %v3497
    %v3499 = vrcp.pop %v2516
    %v3500 = vmul.f32 %v2346, %v3499
    %v3501 = vrcp.pop %v2519
    %v3502 = vmul.f32 %v2348, %v3501
    %v3503 = vrcp.pop %v2522
    %v3504 = vmul.f32 %v2350, %v3503
    %v3505 = vrcp.pop %v2525
    %v3506 = vmul.f32 %v2352, %v3505
    %v3507 = vrcp.pop %v2528
    %v3508 = vmul.f32 %v2354, %v3507
    %v3509 = vrcp.pop %v2531
    %v3510 = vmul.f32 %v2356, %v3509
    %v3511 = vrcp.pop %v2534
    %v3512 = vmul.f32 %v2358, %v3511
    %v3513 = vrcp.pop %v2537
    %v3514 = vmul.f32 %v2360, %v3513
    %v3515 = vrcp.pop %v2540
    %v3516 = vmul.f32 %v2362, %v3515
    %v3517 = vrcp.pop %v2543
    %v3518 = vmul.f32 %v2364, %v3517
    %v3519 = vrcp.pop %v2546
    %v3520 = vmul.f32 %v2366, %v3519
    %v3521 = vrcp.pop %v2549
    %v3522 = vmul.f32 %v2368, %v3521
    %v3523 = vrcp.pop %v2552
    %v3524 = vmul.f32 %v2370, %v3523
    %v3525 = vrcp.pop %v2555
    %v3526 = vmul.f32 %v2372, %v3525
    %v3527 = vrcp.pop %v2558
    %v3528 = vmul.f32 %v2374, %v3527
    %v3529 = vrcp.pop %v2561
    %v3530 = vmul.f32 %v2376, %v3529
    %v3531 = vrcp.pop %v2564
    %v3532 = vmul.f32 %v2378, %v3531
    %v3533 = vrcp.pop %v2567
    %v3534 = vmul.f32 %v2380, %v3533
    %v3535 = vrcp.pop %v2570
    %v3536 = vmul.f32 %v2382, %v3535
    %v3537 = vrcp.pop %v2573
    %v3538 = vmul.f32 %v2384, %v3537
    %v3539 = vrcp.pop %v2576
    %v3540 = vmul.f32 %v2386, %v3539
    %v3541 = vrcp.pop %v2579
    %v3542 = vmul.f32 %v2388, %v3541
    %v3543 = vrcp.pop %v2582
    %v3544 = vmul.f32 %v2390, %v3543
    %v3545 = vadd.f32 %v1816, %v3353
    %v3546 = vadd.f32 %v1819, %v3354
    %v3547 = vadd.f32 %v1822, %v3355
    %v3548 = vadd.f32 %v1825, %v3356
    %v3549 = vadd.f32 %v1828, %v3357
    %v3550 = vadd.f32 %v1831, %v3358
    %v3551 = vadd.f32 %v1834, %v3359
    %v3552 = vadd.f32 %v1837, %v3360
    %v3553 = vadd.f32 %v1840, %v3361
    %v3554 = vadd.f32 %v1843, %v3362
    %v3555 = vadd.f32 %v1846, %v3363
    %v3556 = vadd.f32 %v1849, %v3364
    %v3557 = vadd.f32 %v1852, %v3365
    %v3558 = vadd.f32 %v1855, %v3366
    %v3559 = vadd.f32 %v1858, %v3367
    %v3560 = vadd.f32 %v1861, %v3368
    %v3561 = vadd.f32 %v1864, %v3369
    %v3562 = vadd.f32 %v1867, %v3370
    %v3563 = vadd.f32 %v1870, %v3371
    %v3564 = vadd.f32 %v1873, %v3372
    %v3565 = vadd.f32 %v1876, %v3373
    %v3566 = vadd.f32 %v1879, %v3374
    %v3567 = vadd.f32 %v1882, %v3375
    %v3568 = vadd.f32 %v1885, %v3376
    %v3569 = vadd.f32 %v1888, %v3377
    %v3570 = vadd.f32 %v1891, %v3378
    %v3571 = vadd.f32 %v1894, %v3379
    %v3572 = vadd.f32 %v1897, %v3380
    %v3573 = vadd.f32 %v1900, %v3381
    %v3574 = vadd.f32 %v1903, %v3382
    %v3575 = vadd.f32 %v1906, %v3383
    %v3576 = vadd.f32 %v1909, %v3384
    %v3577 = vadd.f32 %v1912, %v3385
    %v3578 = vadd.f32 %v1915, %v3386
    %v3579 = vadd.f32 %v1918, %v3387
    %v3580 = vadd.f32 %v1921, %v3388
    %v3581 = vadd.f32 %v1924, %v3389
    %v3582 = vadd.f32 %v1927, %v3390
    %v3583 = vadd.f32 %v1930, %v3391
    %v3584 = vadd.f32 %v1933, %v3392
    %v3585 = vadd.f32 %v1936, %v3393
    %v3586 = vadd.f32 %v1939, %v3394
    %v3587 = vadd.f32 %v1942, %v3395
    %v3588 = vadd.f32 %v1945, %v3396
    %v3589 = vadd.f32 %v1948, %v3397
    %v3590 = vadd.f32 %v1951, %v3398
    %v3591 = vadd.f32 %v1954, %v3399
    %v3592 = vadd.f32 %v1957, %v3400
    %v3593 = vadd.f32 %v1960, %v3401
    %v3594 = vadd.f32 %v1963, %v3402
    %v3595 = vadd.f32 %v1966, %v3403
    %v3596 = vadd.f32 %v1969, %v3404
    %v3597 = vadd.f32 %v1972, %v3405
    %v3598 = vadd.f32 %v1975, %v3406
    %v3599 = vadd.f32 %v1978, %v3407
    %v3600 = vadd.f32 %v1981, %v3408
    %v3601 = vadd.f32 %v1984, %v3409
    %v3602 = vadd.f32 %v1987, %v3410
    %v3603 = vadd.f32 %v1990, %v3411
    %v3604 = vadd.f32 %v1993, %v3412
    %v3605 = vadd.f32 %v1996, %v3413
    %v3606 = vadd.f32 %v1999, %v3414
    %v3607 = vadd.f32 %v2002, %v3415
    %v3608 = vadd.f32 %v2005, %v3416
    %v3609 = vsel %vm2006, %v3418, 0.0
    %v3610 = vsel %vm2006, %v3420, 0.0
    %v3611 = vsel %vm2006, %v3422, 0.0
    %v3612 = vsel %vm2006, %v3424, 0.0
    %v3613 = vsel %vm2006, %v3426, 0.0
    %v3614 = vsel %vm2006, %v3428, 0.0
    %v3615 = vsel %vm2006, %v3430, 0.0
    %v3616 = vsel %vm2006, %v3432, 0.0
    %v3617 = vsel %vm2006, %v3434, 0.0
    %v3618 = vsel %vm2006, %v3436, 0.0
    %v3619 = vsel %vm2006, %v3438, 0.0
    %v3620 = vsel %vm2006, %v3440, 0.0
    %v3621 = vsel %vm2006, %v3442, 0.0
    %v3622 = vsel %vm2006, %v3444, 0.0
    %v3623 = vsel %vm2006, %v3446, 0.0
    %v3624 = vsel %vm2006, %v3448, 0.0
    %v3625 = vsel %vm2006, %v3450, 0.0
    %v3626 = vsel %vm2006, %v3452, 0.0
    %v3627 = vsel %vm2006, %v3454, 0.0
    %v3628 = vsel %vm2006, %v3456, 0.0
    %v3629 = vsel %vm2006, %v3458, 0.0
    %v3630 = vsel %vm2006, %v3460, 0.0
    %v3631 = vsel %vm2006, %v3462, 0.0
    %v3632 = vsel %vm2006, %v3464, 0.0
    %v3633 = vsel %vm2006, %v3466, 0.0
    %v3634 = vsel %vm2006, %v3468, 0.0
    %v3635 = vsel %vm2006, %v3470, 0.0
    %v3636 = vsel %vm2006, %v3472, 0.0
    %v3637 = vsel %vm2006, %v3474, 0.0
    %v3638 = vsel %vm2006, %v3476, 0.0
    %v3639 = vsel %vm2006, %v3478, 0.0
    %v3640 = vsel %vm2006, %v3480, 0.0
    %v3641 = vsel %vm2006, %v3482, 0.0
    %v3642 = vsel %vm2006, %v3484, 0.0
    %v3643 = vsel %vm2006, %v3486, 0.0
    %v3644 = vsel %vm2006, %v3488, 0.0
    %v3645 = vsel %vm2006, %v3490, 0.0
    %v3646 = vsel %vm2006, %v3492, 0.0
    %v3647 = vsel %vm2006, %v3494, 0.0
    %v3648 = vsel %vm2006, %v3496, 0.0
    %v3649 = vsel %vm2006, %v3498, 0.0
    %v3650 = vsel %vm2006, %v3500, 0.0
    %v3651 = vsel %vm2006, %v3502, 0.0
    %v3652 = vsel %vm2006, %v3504, 0.0
    %v3653 = vsel %vm2006, %v3506, 0.0
    %v3654 = vsel %vm2006, %v3508, 0.0
    %v3655 = vsel %vm2006, %v3510, 0.0
    %v3656 = vsel %vm2006, %v3512, 0.0
    %v3657 = vsel %vm2006, %v3514, 0.0
    %v3658 = vsel %vm2006, %v3516, 0.0
    %v3659 = vsel %vm2006, %v3518, 0.0
    %v3660 = vsel %vm2006, %v3520, 0.0
    %v3661 = vsel %vm2006, %v3522, 0.0
    %v3662 = vsel %vm2006, %v3524, 0.0
    %v3663 = vsel %vm2006, %v3526, 0.0
    %v3664 = vsel %vm2006, %v3528, 0.0
    %v3665 = vsel %vm2006, %v3530, 0.0
    %v3666 = vsel %vm2006, %v3532, 0.0
    %v3667 = vsel %vm2006, %v3534, 0.0
    %v3668 = vsel %vm2006, %v3536, 0.0
    %v3669 = vsel %vm2006, %v3538, 0.0
    %v3670 = vsel %vm2006, %v3540, 0.0
    %v3671 = vsel %vm2006, %v3542, 0.0
    %v3672 = vsel %vm2006, %v3544, 0.0
    %vm3673 = vcmp.eq.s32.totalorder %v2776, 16
    %v3674 = vsel %vm3673, %v3545, %v3609
    %v3675 = vsel %vm3673, %v3546, %v3610
    %v3676 = vsel %vm3673, %v3547, %v3611
    %v3677 = vsel %vm3673, %v3548, %v3612
    %v3678 = vsel %vm3673, %v3549, %v3613
    %v3679 = vsel %vm3673, %v3550, %v3614
    %v3680 = vsel %vm3673, %v3551, %v3615
    %v3681 = vsel %vm3673, %v3552, %v3616
    %v3682 = vsel %vm3673, %v3553, %v3617
    %v3683 = vsel %vm3673, %v3554, %v3618
    %v3684 = vsel %vm3673, %v3555, %v3619
    %v3685 = vsel %vm3673, %v3556, %v3620
    %v3686 = vsel %vm3673, %v3557, %v3621
    %v3687 = vsel %vm3673, %v3558, %v3622
    %v3688 = vsel %vm3673, %v3559, %v3623
    %v3689 = vsel %vm3673, %v3560, %v3624
    %v3690 = vsel %vm3673, %v3561, %v3625
    %v3691 = vsel %vm3673, %v3562, %v3626
    %v3692 = vsel %vm3673, %v3563, %v3627
    %v3693 = vsel %vm3673, %v3564, %v3628
    %v3694 = vsel %vm3673, %v3565, %v3629
    %v3695 = vsel %vm3673, %v3566, %v3630
    %v3696 = vsel %vm3673, %v3567, %v3631
    %v3697 = vsel %vm3673, %v3568, %v3632
    %v3698 = vsel %vm3673, %v3569, %v3633
    %v3699 = vsel %vm3673, %v3570, %v3634
    %v3700 = vsel %vm3673, %v3571, %v3635
    %v3701 = vsel %vm3673, %v3572, %v3636
    %v3702 = vsel %vm3673, %v3573, %v3637
    %v3703 = vsel %vm3673, %v3574, %v3638
    %v3704 = vsel %vm3673, %v3575, %v3639
    %v3705 = vsel %vm3673, %v3576, %v3640
    %v3706 = vsel %vm3673, %v3577, %v3641
    %v3707 = vsel %vm3673, %v3578, %v3642
    %v3708 = vsel %vm3673, %v3579, %v3643
    %v3709 = vsel %vm3673, %v3580, %v3644
    %v3710 = vsel %vm3673, %v3581, %v3645
    %v3711 = vsel %vm3673, %v3582, %v3646
    %v3712 = vsel %vm3673, %v3583, %v3647
    %v3713 = vsel %vm3673, %v3584, %v3648
    %v3714 = vsel %vm3673, %v3585, %v3649
    %v3715 = vsel %vm3673, %v3586, %v3650
    %v3716 = vsel %vm3673, %v3587, %v3651
    %v3717 = vsel %vm3673, %v3588, %v3652
    %v3718 = vsel %vm3673, %v3589, %v3653
    %v3719 = vsel %vm3673, %v3590, %v3654
    %v3720 = vsel %vm3673, %v3591, %v3655
    %v3721 = vsel %vm3673, %v3592, %v3656
    %v3722 = vsel %vm3673, %v3593, %v3657
    %v3723 = vsel %vm3673, %v3594, %v3658
    %v3724 = vsel %vm3673, %v3595, %v3659
    %v3725 = vsel %vm3673, %v3596, %v3660
    %v3726 = vsel %vm3673, %v3597, %v3661
    %v3727 = vsel %vm3673, %v3598, %v3662
    %v3728 = vsel %vm3673, %v3599, %v3663
    %v3729 = vsel %vm3673, %v3600, %v3664
    %v3730 = vsel %vm3673, %v3601, %v3665
    %v3731 = vsel %vm3673, %v3602, %v3666
    %v3732 = vsel %vm3673, %v3603, %v3667
    %v3733 = vsel %vm3673, %v3604, %v3668
    %v3734 = vsel %vm3673, %v3605, %v3669
    %v3735 = vsel %vm3673, %v3606, %v3670
    %v3736 = vsel %vm3673, %v3607, %v3671
    %v3737 = vsel %vm3673, %v3608, %v3672
    %3738 = vst [vmem:[#allocation2] sm:$0xff] %v3674
    %3739 = vst [vmem:[#allocation2 + $0x8] sm:$0xff] %v3675
    %3740 = vst [vmem:[#allocation2 + $0x10] sm:$0xff] %v3676
    %3741 = vst [vmem:[#allocation2 + $0x18] sm:$0xff] %v3677
    %3742 = vst [vmem:[#allocation2 + $0x20] sm:$0xff] %v3678
    %3743 = vst [vmem:[#allocation2 + $0x28] sm:$0xff] %v3679
    %3744 = vst [vmem:[#allocation2 + $0x30] sm:$0xff] %v3680
    %3745 = vst [vmem:[#allocation2 + $0x38] sm:$0xff] %v3681
    %3746 = vst [vmem:[#allocation2 + $0x40] sm:$0xff] %v3682
    %3747 = vst [vmem:[#allocation2 + $0x48] sm:$0xff] %v3683
    %3748 = vst [vmem:[#allocation2 + $0x50] sm:$0xff] %v3684
    %3749 = vst [vmem:[#allocation2 + $0x58] sm:$0xff] %v3685
    %3750 = vst [vmem:[#allocation2 + $0x60] sm:$0xff] %v3686
    %3751 = vst [vmem:[#allocation2 + $0x68] sm:$0xff] %v3687
    %3752 = vst [vmem:[#allocation2 + $0x70] sm:$0xff] %v3688
    %3753 = vst [vmem:[#allocation2 + $0x78] sm:$0xff] %v3689
    %3754 = vst [vmem:[#allocation2 + $0x80] sm:$0xff] %v3690
    %3755 = vst [vmem:[#allocation2 + $0x88] sm:$0xff] %v3691
    %3756 = vst [vmem:[#allocation2 + $0x90] sm:$0xff] %v3692
    %3757 = vst [vmem:[#allocation2 + $0x98] sm:$0xff] %v3693
    %3758 = vst [vmem:[#allocation2 + $0xa0] sm:$0xff] %v3694
    %3759 = vst [vmem:[#allocation2 + $0xa8] sm:$0xff] %v3695
    %3760 = vst [vmem:[#allocation2 + $0xb0] sm:$0xff] %v3696
    %3761 = vst [vmem:[#allocation2 + $0xb8] sm:$0xff] %v3697
    %3762 = vst [vmem:[#allocation2 + $0xc0] sm:$0xff] %v3698
    %3763 = vst [vmem:[#allocation2 + $0xc8] sm:$0xff] %v3699
    %3764 = vst [vmem:[#allocation2 + $0xd0] sm:$0xff] %v3700
    %3765 = vst [vmem:[#allocation2 + $0xd8] sm:$0xff] %v3701
    %3766 = vst [vmem:[#allocation2 + $0xe0] sm:$0xff] %v3702
    %3767 = vst [vmem:[#allocation2 + $0xe8] sm:$0xff] %v3703
    %3768 = vst [vmem:[#allocation2 + $0xf0] sm:$0xff] %v3704
    %3769 = vst [vmem:[#allocation2 + $0xf8] sm:$0xff] %v3705
    %3770 = vst [vmem:[#allocation2 + $0x100] sm:$0xff] %v3706
    %3771 = vst [vmem:[#allocation2 + $0x108] sm:$0xff] %v3707
    %3772 = vst [vmem:[#allocation2 + $0x110] sm:$0xff] %v3708
    %3773 = vst [vmem:[#allocation2 + $0x118] sm:$0xff] %v3709
    %3774 = vst [vmem:[#allocation2 + $0x120] sm:$0xff] %v3710
    %3775 = vst [vmem:[#allocation2 + $0x128] sm:$0xff] %v3711
    %3776 = vst [vmem:[#allocation2 + $0x130] sm:$0xff] %v3712
    %3777 = vst [vmem:[#allocation2 + $0x138] sm:$0xff] %v3713
    %3778 = vst [vmem:[#allocation2 + $0x140] sm:$0xff] %v3714
    %3779 = vst [vmem:[#allocation2 + $0x148] sm:$0xff] %v3715
    %3780 = vst [vmem:[#allocation2 + $0x150] sm:$0xff] %v3716
    %3781 = vst [vmem:[#allocation2 + $0x158] sm:$0xff] %v3717
    %3782 = vst [vmem:[#allocation2 + $0x160] sm:$0xff] %v3718
    %3783 = vst [vmem:[#allocation2 + $0x168] sm:$0xff] %v3719
    %3784 = vst [vmem:[#allocation2 + $0x170] sm:$0xff] %v3720
    %3785 = vst [vmem:[#allocation2 + $0x178] sm:$0xff] %v3721
    %3786 = vst [vmem:[#allocation2 + $0x180] sm:$0xff] %v3722
    %3787 = vst [vmem:[#allocation2 + $0x188] sm:$0xff] %v3723
    %3788 = vst [vmem:[#allocation2 + $0x190] sm:$0xff] %v3724
    %3789 = vst [vmem:[#allocation2 + $0x198] sm:$0xff] %v3725
    %3790 = vst [vmem:[#allocation2 + $0x1a0] sm:$0xff] %v3726
    %3791 = vst [vmem:[#allocation2 + $0x1a8] sm:$0xff] %v3727
    %3792 = vst [vmem:[#allocation2 + $0x1b0] sm:$0xff] %v3728
    %3793 = vst [vmem:[#allocation2 + $0x1b8] sm:$0xff] %v3729
    %3794 = vst [vmem:[#allocation2 + $0x1c0] sm:$0xff] %v3730
    %3795 = vst [vmem:[#allocation2 + $0x1c8] sm:$0xff] %v3731
    %3796 = vst [vmem:[#allocation2 + $0x1d0] sm:$0xff] %v3732
    %3797 = vst [vmem:[#allocation2 + $0x1d8] sm:$0xff] %v3733
    %3798 = vst [vmem:[#allocation2 + $0x1e0] sm:$0xff] %v3734
    %3799 = vst [vmem:[#allocation2 + $0x1e8] sm:$0xff] %v3735
    %3800 = vst [vmem:[#allocation2 + $0x1f0] sm:$0xff] %v3736
    %3801 = vst [vmem:[#allocation2 + $0x1f8] sm:$0xff] %v3737
    // Predicated region
    $region30: #{tpu_custom_call.1} parent=1 // pred_check
      _
    $region31: #{tpu_custom_call.1} parent=1 // pred_check_branch
      %3803 = sbr.rel (0) target = $region33
    $region32: #{tpu_custom_call.1} parent=1 // pred_region
      %s3805 = ssub.s32 8192, 8192
      %3806 = vsyncadd [#allocation3], %s3805
      %s3807 = sshll.u32 [#allocation2], 4
      %s3808 = int_to_ptr.vmem [resolvable:$true] %s3807
      %3813 = dma.vmem_to_hbm [thread:$0]  %s3808, 8192, %s7, [#allocation3], 128, 128, 8
    $region33: #{tpu_custom_call.1} parent=1 // pred_fallthru
      _
    // Predicated region
    $region34: #{tpu_custom_call.1} parent=1 // pred_check
      _
    $region35: #{tpu_custom_call.1} parent=1 // pred_check_branch
      %3815 = sbr.rel (0) target = $region37
    $region36: #{tpu_custom_call.1} parent=1 // pred_region
      %3816 = dma.done [#allocation3], 8192
    $region37: #{tpu_custom_call.1} parent=1 // pred_fallthru
      _
    %3817 = vsyncpa [#allocation3], 1

</llo_original>
